<compile_context>
chip_gen: v7x
topology: tpu7x:2x2x1
jax: 0.10.0
libtpu: 0.0.40
codegen_flags: <defaults>
</compile_context>

<pallas_src>
import jax
import jax.numpy as jnp
from jax.experimental import pallas as pl
from jax.experimental.pallas import tpu as pltpu


def _decoder_chunk_kernel(
    # ---- inputs ----
    x_ref,        # (C, B, E)   bf16  embedded decoder tokens for this chunk
    h0_ref,       # (B, H)      f32   initial GRU hidden state
    enc_ref,      # (B, Te, H)  f32   encoder outputs (keys == values)
    maskadd_ref,  # (B, Te)     f32   additive mask: 0.0 valid, -1e6 padded
    wk_ref,       # (H, H)      bf16  attention key projection
    wqh_ref,      # (H, 4H)     bf16  fused [Wq | Whr | Whz | Whn]
    wic_ref,      # (H, 3H)     bf16  GRU input gates, context part [r|z|n]
    wix_ref,      # (E, 3H)     bf16  GRU input gates, embedding part [r|z|n]
    wv_ref,       # (1, H)      f32   attention score vector (VPU use -> f32)
    bi3_ref,      # (1, 3H)     f32   [bir+bhr | biz+bhz | bin]
    bhn_ref,      # (1, H)      f32   b_hn (must stay inside r * gh_n)
    wd_ref,       # (H, Vp)     bf16  output dense (V padded to 128 lanes)
    bd_ref,       # (1, Vp)     f32
    # ---- outputs ----
    logits_ref,   # (C, B, Vp)  f32   per-chunk block
    attn_ref,     # (C, B, Te)  f32   per-chunk block
    hT_ref,       # (B, H)      f32   final hidden state; recurrent carry
    # ---- scratch ----
    kproj_scr,    # (B, Te, H)  f32   enc @ Wk, computed once at chunk 0
    gix_scr,      # (C, B, 3H)  f32   x @ Wix + biases, computed once per chunk
):
    C, B, E = x_ref.shape
    _, Te, H = kproj_scr.shape
    f32 = jnp.float32
    bf16 = jnp.bfloat16

    @pl.when(pl.program_id(0) == 0)
    def _init():
        hT_ref[...] = h0_ref[...]
        # Loop-invariant key projection, computed exactly once (bf16 MXU).
        kproj_scr[...] = jnp.dot(
            enc_ref[...].astype(bf16).reshape(B * Te, H), wk_ref[...],
            preferred_element_type=f32).reshape(B, Te, H)

    # x-part of the GRU input gates for the whole chunk, biases folded in.
    gix_scr[...] = (jnp.dot(
        x_ref[...].reshape(C * B, E), wix_ref[...],
        preferred_element_type=f32) + bi3_ref[...]).reshape(C, B, 3 * H)

    # Loop-invariant loads hoisted out of the step loop.
    enc_f = enc_ref[...]          # (B, Te, H) f32 — no per-step cast
    kproj = kproj_scr[...]        # (B, Te, H) f32
    mask_add = maskadd_ref[...]   # (B, Te)    f32
    wv = wv_ref[...]              # (1, H)     f32
    bhn = bhn_ref[...]            # (1, H)     f32
    wqh = wqh_ref[...]
    wic = wic_ref[...]
    wd = wd_ref[...]
    bd = bd_ref[...]

    def step(t, h):
        # --- fused h projection: [attention query | GRU hidden gates] ---
        hproj = jnp.dot(h.astype(bf16), wqh,
                        preferred_element_type=f32)            # (B, 4H)
        q = hproj[:, 0:H]

        # --- additive attention, query = previous hidden state ---
        feats = jnp.tanh(q[:, None, :] + kproj)                # (B, Te, H)
        scores = jnp.sum(feats * wv, axis=-1) + mask_add       # (B, Te)
        m = jnp.max(scores, axis=-1, keepdims=True)
        p = jnp.exp(scores - m)
        attn = p * pl.reciprocal(jnp.sum(p, axis=-1, keepdims=True),
                                 approx=True)
        context = jnp.sum(attn[:, :, None] * enc_f, axis=1)    # (B, H) f32

        # --- GRU cell (PyTorch gate order r, z, n), W_i kept split ---
        gic = jnp.dot(context.astype(bf16), wic,
                      preferred_element_type=f32)               # (B, 3H)
        g = gic + gix_scr[t]                                    # (B, 3H)
        r = jax.nn.sigmoid(g[:, 0:H] + hproj[:, H:2 * H])
        z = jax.nn.sigmoid(g[:, H:2 * H] + hproj[:, 2 * H:3 * H])
        n = jnp.tanh(g[:, 2 * H:3 * H] + r * (hproj[:, 3 * H:4 * H] + bhn))
        h_new = (1.0 - z) * n + z * h

        # --- output projection (dense to padded vocab, lane-dense store) ---
        logits_ref[t] = (jnp.dot(h_new.astype(bf16), wd,
                                 preferred_element_type=f32)
                         + bd).astype(logits_ref.dtype)
        attn_ref[t] = attn.astype(attn_ref.dtype)
        return h_new

    h_final = jax.lax.fori_loop(0, C, step, hT_ref[...], unroll=True)
    hT_ref[...] = h_final


def _pick_chunk(Td, per_step_block_bytes, budget_bytes):
    """Largest divisor of Td whose double-buffered chunk blocks fit the budget."""
    chunk = Td
    while chunk > 1:
        if Td % chunk == 0 and chunk * per_step_block_bytes <= budget_bytes:
            return chunk
        chunk -= 1
    return 1


def seq2seq_attention_decoder(tokens, enc_outputs, enc_valid_lens, h0, params,
                              chunk=None):
    """Glue: embedding lookup, weight fusion/casting, padding, layout transposes."""
    B, Td = tokens.shape
    _, Te, H = enc_outputs.shape
    E = params["embedding"].shape[1]
    V = params["wd"].shape[1]
    f32, bf16 = jnp.float32, jnp.bfloat16
    Vp = max(128, int(pl.cdiv(V, 128)) * 128)   # lane-dense logits store

    xemb = jnp.take(params["embedding"], tokens, axis=0)        # (B, Td, E)
    xemb = jnp.transpose(xemb, (1, 0, 2)).astype(bf16)          # (Td, B, E)
    mask_add = jnp.where(
        jnp.arange(Te)[None, :] < enc_valid_lens.reshape(B, 1),
        0.0, -1e6).astype(f32)                                  # (B, Te)

    # Fused weights.
    wqh = jnp.concatenate(
        [params["wq"], params["whr"], params["whz"], params["whn"]],
        axis=1).astype(bf16)                                    # (H, 4H)
    wic = jnp.concatenate([params["wirc"], params["wizc"], params["winc"]],
                          axis=1).astype(bf16)                  # (H, 3H)
    wix = jnp.concatenate([params["wirx"], params["wizx"], params["winx"]],
                          axis=1).astype(bf16)                  # (E, 3H)
    bi3 = jnp.concatenate([params["bir"] + params["bhr"],
                           params["biz"] + params["bhz"],
                           params["bin"]], axis=1).astype(f32)  # (1, 3H)
    bhn = params["bhn"].astype(f32)                             # (1, H)
    wk = params["wk"].astype(bf16)
    wv = params["wv"].reshape(1, H).astype(f32)
    wd = jnp.zeros((H, Vp), bf16).at[:, :V].set(params["wd"].astype(bf16))
    bd = jnp.zeros((1, Vp), f32).at[:, :V].set(params["bd"].astype(f32))
    enc_f32 = enc_outputs.astype(f32)
    h0f = h0.astype(f32)

    # VMEM capacity (with headroom) — never request full physical VMEM (v7x).
    try:
        vmem_cap = int(pltpu.get_tpu_info().vmem_capacity_bytes)
    except Exception:
        vmem_cap = 64 * 1024 * 1024   # conservative (v7x per-TC)

    per_step_block_bytes = 2 * (B * E * 2 + B * Vp * 4 + B * Te * 4)
    if chunk is None:
        chunk = _pick_chunk(Td, per_step_block_bytes, vmem_cap // 4)
    assert Td % chunk == 0
    C = chunk

    in_specs = [
        pl.BlockSpec((C, B, E), lambda c: (c, 0, 0)),      # xemb (per chunk)
        pl.BlockSpec((B, H), lambda c: (0, 0)),            # h0
        pl.BlockSpec((B, Te, H), lambda c: (0, 0, 0)),     # enc (f32)
        pl.BlockSpec((B, Te), lambda c: (0, 0)),           # additive mask
        pl.BlockSpec((H, H), lambda c: (0, 0)),            # wk
        pl.BlockSpec((H, 4 * H), lambda c: (0, 0)),        # wqh
        pl.BlockSpec((H, 3 * H), lambda c: (0, 0)),        # wic
        pl.BlockSpec((E, 3 * H), lambda c: (0, 0)),        # wix
        pl.BlockSpec((1, H), lambda c: (0, 0)),            # wv
        pl.BlockSpec((1, 3 * H), lambda c: (0, 0)),        # bi3
        pl.BlockSpec((1, H), lambda c: (0, 0)),            # bhn
        pl.BlockSpec((H, Vp), lambda c: (0, 0)),           # wd
        pl.BlockSpec((1, Vp), lambda c: (0, 0)),           # bd
    ]
    out_specs = (
        pl.BlockSpec((C, B, Vp), lambda c: (c, 0, 0)),     # logits (per chunk)
        pl.BlockSpec((C, B, Te), lambda c: (c, 0, 0)),     # attention weights
        pl.BlockSpec((B, H), lambda c: (0, 0)),            # final hidden state
    )

    resident_bytes = (
        B * Te * H * 4 + B * Te * 4 + B * H * 4             # enc, mask, h0
        + H * H * 2 + H * 4 * H * 2 + H * 3 * H * 2         # wk, wqh, wic
        + E * 3 * H * 2 + H * 4 + 3 * H * 4 + H * 4         # wix, wv, bi3, bhn
        + H * Vp * 2 + Vp * 4                               # wd, bd
        + B * Te * H * 4 + C * B * 3 * H * 4 + B * H * 4    # kproj, gix, hT
        + C * per_step_block_bytes)                         # chunk blocks (x2 buf)
    vmem_limit = int(min(max(4 * resident_bytes, 8 * 1024 * 1024),
                         (3 * vmem_cap) // 4))

    logits_tbv, attn_tbe, hT = pl.pallas_call(
        _decoder_chunk_kernel,
        grid=(Td // C,),
        in_specs=in_specs,
        out_specs=out_specs,
        out_shape=(
            jax.ShapeDtypeStruct((Td, B, Vp), jnp.float32),
            jax.ShapeDtypeStruct((Td, B, Te), jnp.float32),
            jax.ShapeDtypeStruct((B, H), jnp.float32),
        ),
        scratch_shapes=[
            pltpu.VMEM((B, Te, H), jnp.float32),
            pltpu.VMEM((C, B, 3 * H), jnp.float32),
        ],
        compiler_params=pltpu.CompilerParams(
            dimension_semantics=("arbitrary",),
            vmem_limit_bytes=vmem_limit),
    )(xemb, h0f, enc_f32, mask_add, wk, wqh, wic, wix, wv, bi3, bhn, wd, bd)

    logits = jnp.transpose(logits_tbv, (1, 0, 2))[:, :, :V]   # (B, Td, V)
    attn_w = jnp.transpose(attn_tbe, (1, 0, 2))               # (B, Td, Te)
    return logits, attn_w, hT


def reference_decoder(tokens, enc_outputs, enc_valid_lens, h0, params):
    """Pure-JAX f32 reference of the same forward pass."""
    B, Td = tokens.shape
    _, Te, H = enc_outputs.shape
    xemb = jnp.take(params["embedding"], tokens, axis=0).transpose(1, 0, 2)
    mask = jnp.arange(Te)[None, :] < enc_valid_lens.reshape(B, 1)
    k_proj = jnp.einsum("bth,hd->btd", enc_outputs, params["wk"])
    wv = params["wv"][:, 0]
    h = h0
    logits_list, attn_list = [], []
    for t in range(Td):
        x = xemb[t]
        q = h @ params["wq"]
        feats = jnp.tanh(q[:, None, :] + k_proj)
        scores = jnp.sum(feats * wv[None, None, :], axis=-1)
        scores = jnp.where(mask, scores, -1e6)
        attn = jax.nn.softmax(scores, axis=-1)
        context = jnp.einsum("bt,bth->bh", attn, enc_outputs)
        gi_r = context @ params["wirc"] + x @ params["wirx"] + params["bir"]
        gi_z = context @ params["wizc"] + x @ params["wizx"] + params["biz"]
        gi_n = context @ params["winc"] + x @ params["winx"] + params["bin"]
        gh_r = h @ params["whr"] + params["bhr"]
        gh_z = h @ params["whz"] + params["bhz"]
        gh_n = h @ params["whn"] + params["bhn"]
        r = jax.nn.sigmoid(gi_r + gh_r)
        z = jax.nn.sigmoid(gi_z + gh_z)
        n = jnp.tanh(gi_n + r * gh_n)
        h = (1.0 - z) * n + z * h
        logits_list.append(h @ params["wd"] + params["bd"])
        attn_list.append(attn)
    logits = jnp.stack(logits_list, 0).transpose(1, 0, 2)
    attn_w = jnp.stack(attn_list, 0).transpose(1, 0, 2)
    return logits, attn_w, h


def init_params(key, vocab, E, H, V):
    ks = jax.random.split(key, 32)
    f = jnp.float32

    def w(k, shape, fan_in):
        return jax.random.normal(k, shape, f) * (1.0 / jnp.sqrt(fan_in))

    p = {}
    p["embedding"] = w(ks[0], (vocab, E), E)
    # additive attention
    p["wq"] = w(ks[1], (H, H), H)
    p["wk"] = w(ks[2], (H, H), H)
    p["wv"] = w(ks[3], (H, 1), H)
    # GRU input->gate weights, split into context (H) and embedding (E) parts
    p["wirc"] = w(ks[4], (H, H), H + E)
    p["wizc"] = w(ks[5], (H, H), H + E)
    p["winc"] = w(ks[6], (H, H), H + E)
    p["wirx"] = w(ks[7], (E, H), H + E)
    p["wizx"] = w(ks[8], (E, H), H + E)
    p["winx"] = w(ks[9], (E, H), H + E)
    # GRU hidden->gate weights
    p["whr"] = w(ks[10], (H, H), H)
    p["whz"] = w(ks[11], (H, H), H)
    p["whn"] = w(ks[12], (H, H), H)
    # GRU biases (PyTorch keeps b_ih and b_hh separate)
    p["bir"] = w(ks[13], (1, H), H)
    p["biz"] = w(ks[14], (1, H), H)
    p["bin"] = w(ks[15], (1, H), H)
    p["bhr"] = w(ks[16], (1, H), H)
    p["bhz"] = w(ks[17], (1, H), H)
    p["bhn"] = w(ks[18], (1, H), H)
    # output dense
    p["wd"] = w(ks[19], (H, V), H)
    p["bd"] = jnp.zeros((1, V), f)
    return p


if __name__ == "__main__":
    B, T_dec, T_enc, E, H, vocab = 2, 8, 8, 16, 32, 32

    key = jax.random.PRNGKey(0)
    k_tok, k_enc, k_h0, k_par = jax.random.split(key, 4)
    tokens = jax.random.randint(k_tok, (B, T_dec), 0, vocab, dtype=jnp.int32)
    enc_outputs = jax.random.normal(k_enc, (B, T_enc, H), jnp.float32) * 0.5
    h0 = jax.random.normal(k_h0, (B, H), jnp.float32) * 0.1
    enc_valid_lens = jnp.array([T_enc, T_enc - 3], dtype=jnp.int32)
    params = init_params(k_par, vocab, E, H, vocab)

    logits, attn_w, hT = seq2seq_attention_decoder(
        tokens, enc_outputs, enc_valid_lens, h0, params)
    jax.block_until_ready((logits, attn_w, hT))

    ref_logits, ref_attn, ref_hT = reference_decoder(
        tokens, enc_outputs, enc_valid_lens, h0, params)

    assert logits.shape == (B, T_dec, vocab)
    assert attn_w.shape == (B, T_dec, T_enc)
    assert hT.shape == (B, H)
    # loose tolerance: bf16 MXU operands (f32 accumulation) + approx reciprocal
    # in the softmax denom vs a pure-f32 XLA reference over an 8-step recurrence
    assert float(jnp.max(jnp.abs(logits - ref_logits))) < 2e-1
    assert float(jnp.max(jnp.abs(attn_w - ref_attn))) < 1e-1
    assert float(jnp.max(jnp.abs(hT - ref_hT))) < 2e-1

    print("KERNEL_OK")
</pallas_src>

<mosaic_0001>
module attributes {stable_mosaic.version = 11 : i64} {
  func.func @_decoder_chunk_kernel(%arg0: i32, %arg1: memref<8x2x16xbf16, #tpu.memory_space<vmem>>, %arg2: memref<2x32xf32, #tpu.memory_space<vmem>>, %arg3: memref<2x8x32xf32, #tpu.memory_space<vmem>>, %arg4: memref<2x8xf32, #tpu.memory_space<vmem>>, %arg5: memref<32x32xbf16, #tpu.memory_space<vmem>>, %arg6: memref<32x128xbf16, #tpu.memory_space<vmem>>, %arg7: memref<32x96xbf16, #tpu.memory_space<vmem>>, %arg8: memref<16x96xbf16, #tpu.memory_space<vmem>>, %arg9: memref<1x32xf32, #tpu.memory_space<vmem>>, %arg10: memref<1x96xf32, #tpu.memory_space<vmem>>, %arg11: memref<1x32xf32, #tpu.memory_space<vmem>>, %arg12: memref<32x128xbf16, #tpu.memory_space<vmem>>, %arg13: memref<1x128xf32, #tpu.memory_space<vmem>>, %arg14: memref<8x2x128xf32, #tpu.memory_space<vmem>>, %arg15: memref<8x2x8xf32, #tpu.memory_space<vmem>>, %arg16: memref<2x32xf32, #tpu.memory_space<vmem>>, %arg17: memref<2x8x32xf32, #tpu.memory_space<vmem>>, %arg18: memref<8x2x96xf32, #tpu.memory_space<vmem>>) attributes {dimension_semantics = [#tpu.dimension_semantics<arbitrary>], iteration_bounds = array<i64: 1>, scalar_prefetch = 0 : i64, scratch_operands = 2 : i64, tpu.core_type = #tpu.core_type<tc>, window_params = [{transform_indices = @transform_0, window_bounds = array<i64: 8, 2, 16>}, {pipeline_mode = #tpu.pipeline_mode<synchronous>, transform_indices = @transform_1, window_bounds = array<i64: 2, 32>}, {pipeline_mode = #tpu.pipeline_mode<synchronous>, transform_indices = @transform_2, window_bounds = array<i64: 2, 8, 32>}, {pipeline_mode = #tpu.pipeline_mode<synchronous>, transform_indices = @transform_3, window_bounds = array<i64: 2, 8>}, {pipeline_mode = #tpu.pipeline_mode<synchronous>, transform_indices = @transform_4, window_bounds = array<i64: 32, 32>}, {pipeline_mode = #tpu.pipeline_mode<synchronous>, transform_indices = @transform_5, window_bounds = array<i64: 32, 128>}, {pipeline_mode = #tpu.pipeline_mode<synchronous>, transform_indices = @transform_6, window_bounds = array<i64: 32, 96>}, {pipeline_mode = #tpu.pipeline_mode<synchronous>, transform_indices = @transform_7, window_bounds = array<i64: 16, 96>}, {pipeline_mode = #tpu.pipeline_mode<synchronous>, transform_indices = @transform_8, window_bounds = array<i64: 1, 32>}, {pipeline_mode = #tpu.pipeline_mode<synchronous>, transform_indices = @transform_9, window_bounds = array<i64: 1, 96>}, {pipeline_mode = #tpu.pipeline_mode<synchronous>, transform_indices = @transform_10, window_bounds = array<i64: 1, 32>}, {pipeline_mode = #tpu.pipeline_mode<synchronous>, transform_indices = @transform_11, window_bounds = array<i64: 32, 128>}, {pipeline_mode = #tpu.pipeline_mode<synchronous>, transform_indices = @transform_12, window_bounds = array<i64: 1, 128>}, {transform_indices = @transform_13, window_bounds = array<i64: 8, 2, 128>}, {transform_indices = @transform_14, window_bounds = array<i64: 8, 2, 8>}, {pipeline_mode = #tpu.pipeline_mode<synchronous>, transform_indices = @transform_15, window_bounds = array<i64: 2, 32>}]} {
    %c0_i32 = arith.constant 0 : i32
    %0 = arith.cmpi eq, %arg0, %c0_i32 : i32
    %1 = arith.extui %0 : i1 to i32
    %c0_i32_0 = arith.constant 0 : i32
    %2 = arith.cmpi ne, %1, %c0_i32_0 : i32
    scf.if %2 {
      %c0_163 = arith.constant 0 : index
      %c0_164 = arith.constant 0 : index
      %599 = vector.load %arg2[%c0_163, %c0_164] : memref<2x32xf32, #tpu.memory_space<vmem>>, vector<2x32xf32>
      %c0_165 = arith.constant 0 : index
      %c0_166 = arith.constant 0 : index
      %600 = vector.load %arg16[%c0_165, %c0_166] : memref<2x32xf32, #tpu.memory_space<vmem>>, vector<2x32xf32>
      tpu.vector_store %arg16[%c0_165, %c0_166], %599 {strides = array<i32>} : memref<2x32xf32, #tpu.memory_space<vmem>>, vector<2x32xf32>,
      %c0_167 = arith.constant 0 : index
      %c0_168 = arith.constant 0 : index
      %c0_169 = arith.constant 0 : index
      %601 = vector.load %arg3[%c0_167, %c0_168, %c0_169] : memref<2x8x32xf32, #tpu.memory_space<vmem>>, vector<2x8x32xf32>
      %602 = arith.truncf %601 : vector<2x8x32xf32> to vector<2x8x32xbf16>
      %603 = vector.shape_cast %602 : vector<2x8x32xbf16> to vector<16x32xbf16>
      %c0_170 = arith.constant 0 : index
      %c0_171 = arith.constant 0 : index
      %604 = vector.load %arg5[%c0_170, %c0_171] : memref<32x32xbf16, #tpu.memory_space<vmem>>, vector<32x32xbf16>
      %cst_172 = arith.constant dense<0.000000e+00> : vector<16x32xf32>
      %605 = tpu.matmul %603, %604, %cst_172 {dimension_numbers = #tpu.dot_dimension_numbers<[1], [0], [0], [1], [0, 0, 1, 1], [], []>} : vector<16x32xbf16>, vector<32x32xbf16>, vector<16x32xf32> -> vector<16x32xf32>
      %606 = vector.shape_cast %605 : vector<16x32xf32> to vector<2x8x32xf32>
      %c0_173 = arith.constant 0 : index
      %c0_174 = arith.constant 0 : index
      %c0_175 = arith.constant 0 : index
      %607 = vector.load %arg17[%c0_173, %c0_174, %c0_175] : memref<2x8x32xf32, #tpu.memory_space<vmem>>, vector<2x8x32xf32>
      tpu.vector_store %arg17[%c0_173, %c0_174, %c0_175], %606 {strides = array<i32>} : memref<2x8x32xf32, #tpu.memory_space<vmem>>, vector<2x8x32xf32>,
    } else {
    }
    %c0 = arith.constant 0 : index
    %c0_1 = arith.constant 0 : index
    %c0_2 = arith.constant 0 : index
    %3 = vector.load %arg1[%c0, %c0_1, %c0_2] : memref<8x2x16xbf16, #tpu.memory_space<vmem>>, vector<8x2x16xbf16>
    %4 = vector.shape_cast %3 : vector<8x2x16xbf16> to vector<16x16xbf16>
    %c0_3 = arith.constant 0 : index
    %c0_4 = arith.constant 0 : index
    %5 = vector.load %arg8[%c0_3, %c0_4] : memref<16x96xbf16, #tpu.memory_space<vmem>>, vector<16x96xbf16>
    %cst = arith.constant dense<0.000000e+00> : vector<16x96xf32>
    %6 = tpu.matmul %4, %5, %cst {dimension_numbers = #tpu.dot_dimension_numbers<[1], [0], [0], [1], [0, 0, 1, 1], [], []>} : vector<16x16xbf16>, vector<16x96xbf16>, vector<16x96xf32> -> vector<16x96xf32>
    %c0_5 = arith.constant 0 : index
    %c0_6 = arith.constant 0 : index
    %7 = vector.load %arg10[%c0_5, %c0_6] : memref<1x96xf32, #tpu.memory_space<vmem>>, vector<1x96xf32>
    %8 = vector.broadcast %7 : vector<1x96xf32> to vector<16x96xf32>
    %9 = arith.addf %6, %8 : vector<16x96xf32>
    %10 = vector.shape_cast %9 : vector<16x96xf32> to vector<8x2x96xf32>
    %c0_7 = arith.constant 0 : index
    %c0_8 = arith.constant 0 : index
    %c0_9 = arith.constant 0 : index
    %11 = vector.load %arg18[%c0_7, %c0_8, %c0_9] : memref<8x2x96xf32, #tpu.memory_space<vmem>>, vector<8x2x96xf32>
    tpu.vector_store %arg18[%c0_7, %c0_8, %c0_9], %10 {strides = array<i32>} : memref<8x2x96xf32, #tpu.memory_space<vmem>>, vector<8x2x96xf32>,
    %c0_10 = arith.constant 0 : index
    %c0_11 = arith.constant 0 : index
    %c0_12 = arith.constant 0 : index
    %12 = vector.load %arg3[%c0_10, %c0_11, %c0_12] : memref<2x8x32xf32, #tpu.memory_space<vmem>>, vector<2x8x32xf32>
    %c0_13 = arith.constant 0 : index
    %c0_14 = arith.constant 0 : index
    %c0_15 = arith.constant 0 : index
    %13 = vector.load %arg17[%c0_13, %c0_14, %c0_15] : memref<2x8x32xf32, #tpu.memory_space<vmem>>, vector<2x8x32xf32>
    %c0_16 = arith.constant 0 : index
    %c0_17 = arith.constant 0 : index
    %14 = vector.load %arg4[%c0_16, %c0_17] : memref<2x8xf32, #tpu.memory_space<vmem>>, vector<2x8xf32>
    %c0_18 = arith.constant 0 : index
    %c0_19 = arith.constant 0 : index
    %15 = vector.load %arg9[%c0_18, %c0_19] : memref<1x32xf32, #tpu.memory_space<vmem>>, vector<1x32xf32>
    %c0_20 = arith.constant 0 : index
    %c0_21 = arith.constant 0 : index
    %16 = vector.load %arg11[%c0_20, %c0_21] : memref<1x32xf32, #tpu.memory_space<vmem>>, vector<1x32xf32>
    %c0_22 = arith.constant 0 : index
    %c0_23 = arith.constant 0 : index
    %17 = vector.load %arg6[%c0_22, %c0_23] : memref<32x128xbf16, #tpu.memory_space<vmem>>, vector<32x128xbf16>
    %c0_24 = arith.constant 0 : index
    %c0_25 = arith.constant 0 : index
    %18 = vector.load %arg7[%c0_24, %c0_25] : memref<32x96xbf16, #tpu.memory_space<vmem>>, vector<32x96xbf16>
    %c0_26 = arith.constant 0 : index
    %c0_27 = arith.constant 0 : index
    %19 = vector.load %arg12[%c0_26, %c0_27] : memref<32x128xbf16, #tpu.memory_space<vmem>>, vector<32x128xbf16>
    %c0_28 = arith.constant 0 : index
    %c0_29 = arith.constant 0 : index
    %20 = vector.load %arg13[%c0_28, %c0_29] : memref<1x128xf32, #tpu.memory_space<vmem>>, vector<1x128xf32>
    %c0_30 = arith.constant 0 : index
    %c0_31 = arith.constant 0 : index
    %21 = vector.load %arg16[%c0_30, %c0_31] : memref<2x32xf32, #tpu.memory_space<vmem>>, vector<2x32xf32>
    %c0_i32_32 = arith.constant 0 : i32
    %22 = arith.truncf %21 : vector<2x32xf32> to vector<2x32xbf16>
    %cst_33 = arith.constant dense<0.000000e+00> : vector<2x128xf32>
    %23 = tpu.matmul %22, %17, %cst_33 {dimension_numbers = #tpu.dot_dimension_numbers<[1], [0], [0], [1], [0, 0, 1, 1], [], []>} : vector<2x32xbf16>, vector<32x128xbf16>, vector<2x128xf32> -> vector<2x128xf32>
    %24 = vector.extract_strided_slice %23 {offsets = [0, 0], sizes = [2, 32], strides = [1, 1]} : vector<2x128xf32> to vector<2x32xf32>
    %25 = vector.shape_cast %24 : vector<2x32xf32> to vector<2x1x32xf32>
    %26 = vector.broadcast %25 : vector<2x1x32xf32> to vector<2x8x32xf32>
    %27 = arith.addf %26, %13 : vector<2x8x32xf32>
    %28 = math.tanh %27 : vector<2x8x32xf32>
    %29 = vector.shape_cast %15 : vector<1x32xf32> to vector<1x1x32xf32>
    %30 = vector.broadcast %29 : vector<1x1x32xf32> to vector<2x8x32xf32>
    %31 = arith.mulf %28, %30 : vector<2x8x32xf32>
    %cst_34 = arith.constant dense<0.000000e+00> : vector<2x8xf32>
    %32 = vector.multi_reduction <add>, %31, %cst_34 [2] : vector<2x8x32xf32> to vector<2x8xf32>
    %33 = arith.addf %32, %14 : vector<2x8xf32>
    %cst_35 = arith.constant dense<0xFF800000> : vector<2xf32>
    %34 = vector.multi_reduction <maximumf>, %33, %cst_35 [1] : vector<2x8xf32> to vector<2xf32>
    %35 = vector.shape_cast %34 : vector<2xf32> to vector<2x1xf32>
    %36 = vector.broadcast %35 : vector<2x1xf32> to vector<2x8xf32>
    %37 = arith.subf %33, %36 : vector<2x8xf32>
    %38 = math.exp %37 : vector<2x8xf32>
    %cst_36 = arith.constant dense<0.000000e+00> : vector<2xf32>
    %39 = vector.multi_reduction <add>, %38, %cst_36 [1] : vector<2x8xf32> to vector<2xf32>
    %40 = vector.shape_cast %39 : vector<2xf32> to vector<2x1xf32>
    %41 = tpu.reciprocal %40 {approx = true} : vector<2x1xf32> -> vector<2x1xf32>
    %42 = vector.broadcast %41 : vector<2x1xf32> to vector<2x8xf32>
    %43 = arith.mulf %38, %42 : vector<2x8xf32>
    %44 = vector.shape_cast %43 : vector<2x8xf32> to vector<2x8x1xf32>
    %45 = vector.broadcast %44 : vector<2x8x1xf32> to vector<2x8x32xf32>
    %46 = arith.mulf %45, %12 : vector<2x8x32xf32>
    %cst_37 = arith.constant dense<0.000000e+00> : vector<2x32xf32>
    %47 = vector.multi_reduction <add>, %46, %cst_37 [1] : vector<2x8x32xf32> to vector<2x32xf32>
    %48 = arith.truncf %47 : vector<2x32xf32> to vector<2x32xbf16>
    %cst_38 = arith.constant dense<0.000000e+00> : vector<2x96xf32>
    %49 = tpu.matmul %48, %18, %cst_38 {dimension_numbers = #tpu.dot_dimension_numbers<[1], [0], [0], [1], [0, 0, 1, 1], [], []>} : vector<2x32xbf16>, vector<32x96xbf16>, vector<2x96xf32> -> vector<2x96xf32>
    %50 = arith.index_cast %c0_i32_32 : i32 to index
    %c0_39 = arith.constant 0 : index
    %c0_40 = arith.constant 0 : index
    %51 = vector.load %arg18[%50, %c0_39, %c0_40] : memref<8x2x96xf32, #tpu.memory_space<vmem>>, vector<1x2x96xf32>
    %52 = vector.shape_cast %51 : vector<1x2x96xf32> to vector<2x96xf32>
    %53 = arith.addf %49, %52 : vector<2x96xf32>
    %54 = vector.extract_strided_slice %53 {offsets = [0, 0], sizes = [2, 32], strides = [1, 1]} : vector<2x96xf32> to vector<2x32xf32>
    %55 = vector.extract_strided_slice %23 {offsets = [0, 32], sizes = [2, 32], strides = [1, 1]} : vector<2x128xf32> to vector<2x32xf32>
    %56 = arith.addf %54, %55 : vector<2x32xf32>
    %57 = arith.negf %56 : vector<2x32xf32>
    %58 = math.exp %57 : vector<2x32xf32>
    %cst_41 = arith.constant 1.000000e+00 : f32
    %59 = vector.broadcast %cst_41 : f32 to vector<2x32xf32>
    %60 = arith.addf %59, %58 : vector<2x32xf32>
    %61 = arith.divf %59, %60 : vector<2x32xf32>
    %62 = vector.extract_strided_slice %53 {offsets = [0, 32], sizes = [2, 32], strides = [1, 1]} : vector<2x96xf32> to vector<2x32xf32>
    %63 = vector.extract_strided_slice %23 {offsets = [0, 64], sizes = [2, 32], strides = [1, 1]} : vector<2x128xf32> to vector<2x32xf32>
    %64 = arith.addf %62, %63 : vector<2x32xf32>
    %65 = arith.negf %64 : vector<2x32xf32>
    %66 = math.exp %65 : vector<2x32xf32>
    %cst_42 = arith.constant 1.000000e+00 : f32
    %67 = vector.broadcast %cst_42 : f32 to vector<2x32xf32>
    %68 = arith.addf %67, %66 : vector<2x32xf32>
    %69 = arith.divf %67, %68 : vector<2x32xf32>
    %70 = vector.extract_strided_slice %53 {offsets = [0, 64], sizes = [2, 32], strides = [1, 1]} : vector<2x96xf32> to vector<2x32xf32>
    %71 = vector.extract_strided_slice %23 {offsets = [0, 96], sizes = [2, 32], strides = [1, 1]} : vector<2x128xf32> to vector<2x32xf32>
    %72 = vector.broadcast %16 : vector<1x32xf32> to vector<2x32xf32>
    %73 = arith.addf %71, %72 : vector<2x32xf32>
    %74 = arith.mulf %61, %73 : vector<2x32xf32>
    %75 = arith.addf %70, %74 : vector<2x32xf32>
    %76 = math.tanh %75 : vector<2x32xf32>
    %cst_43 = arith.constant 1.000000e+00 : f32
    %77 = vector.broadcast %cst_43 : f32 to vector<2x32xf32>
    %78 = arith.subf %77, %69 : vector<2x32xf32>
    %79 = arith.mulf %78, %76 : vector<2x32xf32>
    %80 = arith.mulf %69, %21 : vector<2x32xf32>
    %81 = arith.addf %79, %80 : vector<2x32xf32>
    %82 = arith.truncf %81 : vector<2x32xf32> to vector<2x32xbf16>
    %cst_44 = arith.constant dense<0.000000e+00> : vector<2x128xf32>
    %83 = tpu.matmul %82, %19, %cst_44 {dimension_numbers = #tpu.dot_dimension_numbers<[1], [0], [0], [1], [0, 0, 1, 1], [], []>} : vector<2x32xbf16>, vector<32x128xbf16>, vector<2x128xf32> -> vector<2x128xf32>
    %84 = vector.broadcast %20 : vector<1x128xf32> to vector<2x128xf32>
    %85 = arith.addf %83, %84 : vector<2x128xf32>
    %86 = arith.index_cast %c0_i32_32 : i32 to index
    %c0_45 = arith.constant 0 : index
    %c0_46 = arith.constant 0 : index
    %87 = vector.load %arg14[%86, %c0_45, %c0_46] : memref<8x2x128xf32, #tpu.memory_space<vmem>>, vector<1x2x128xf32>
    %88 = vector.shape_cast %87 : vector<1x2x128xf32> to vector<2x128xf32>
    %89 = vector.shape_cast %85 : vector<2x128xf32> to vector<1x2x128xf32>
    tpu.vector_store %arg14[%86, %c0_45, %c0_46], %89 {strides = array<i32>} : memref<8x2x128xf32, #tpu.memory_space<vmem>>, vector<1x2x128xf32>,
    %90 = arith.index_cast %c0_i32_32 : i32 to index
    %c0_47 = arith.constant 0 : index
    %c0_48 = arith.constant 0 : index
    %91 = vector.load %arg15[%90, %c0_47, %c0_48] : memref<8x2x8xf32, #tpu.memory_space<vmem>>, vector<1x2x8xf32>
    %92 = vector.shape_cast %91 : vector<1x2x8xf32> to vector<2x8xf32>
    %93 = vector.shape_cast %43 : vector<2x8xf32> to vector<1x2x8xf32>
    tpu.vector_store %arg15[%90, %c0_47, %c0_48], %93 {strides = array<i32>} : memref<8x2x8xf32, #tpu.memory_space<vmem>>, vector<1x2x8xf32>,
    %c1_i32 = arith.constant 1 : i32
    %94 = arith.truncf %81 : vector<2x32xf32> to vector<2x32xbf16>
    %cst_49 = arith.constant dense<0.000000e+00> : vector<2x128xf32>
    %95 = tpu.matmul %94, %17, %cst_49 {dimension_numbers = #tpu.dot_dimension_numbers<[1], [0], [0], [1], [0, 0, 1, 1], [], []>} : vector<2x32xbf16>, vector<32x128xbf16>, vector<2x128xf32> -> vector<2x128xf32>
    %96 = vector.extract_strided_slice %95 {offsets = [0, 0], sizes = [2, 32], strides = [1, 1]} : vector<2x128xf32> to vector<2x32xf32>
    %97 = vector.shape_cast %96 : vector<2x32xf32> to vector<2x1x32xf32>
    %98 = vector.broadcast %97 : vector<2x1x32xf32> to vector<2x8x32xf32>
    %99 = arith.addf %98, %13 : vector<2x8x32xf32>
    %100 = math.tanh %99 : vector<2x8x32xf32>
    %101 = vector.shape_cast %15 : vector<1x32xf32> to vector<1x1x32xf32>
    %102 = vector.broadcast %101 : vector<1x1x32xf32> to vector<2x8x32xf32>
    %103 = arith.mulf %100, %102 : vector<2x8x32xf32>
    %cst_50 = arith.constant dense<0.000000e+00> : vector<2x8xf32>
    %104 = vector.multi_reduction <add>, %103, %cst_50 [2] : vector<2x8x32xf32> to vector<2x8xf32>
    %105 = arith.addf %104, %14 : vector<2x8xf32>
    %cst_51 = arith.constant dense<0xFF800000> : vector<2xf32>
    %106 = vector.multi_reduction <maximumf>, %105, %cst_51 [1] : vector<2x8xf32> to vector<2xf32>
    %107 = vector.shape_cast %106 : vector<2xf32> to vector<2x1xf32>
    %108 = vector.broadcast %107 : vector<2x1xf32> to vector<2x8xf32>
    %109 = arith.subf %105, %108 : vector<2x8xf32>
    %110 = math.exp %109 : vector<2x8xf32>
    %cst_52 = arith.constant dense<0.000000e+00> : vector<2xf32>
    %111 = vector.multi_reduction <add>, %110, %cst_52 [1] : vector<2x8xf32> to vector<2xf32>
    %112 = vector.shape_cast %111 : vector<2xf32> to vector<2x1xf32>
    %113 = tpu.reciprocal %112 {approx = true} : vector<2x1xf32> -> vector<2x1xf32>
    %114 = vector.broadcast %113 : vector<2x1xf32> to vector<2x8xf32>
    %115 = arith.mulf %110, %114 : vector<2x8xf32>
    %116 = vector.shape_cast %115 : vector<2x8xf32> to vector<2x8x1xf32>
    %117 = vector.broadcast %116 : vector<2x8x1xf32> to vector<2x8x32xf32>
    %118 = arith.mulf %117, %12 : vector<2x8x32xf32>
    %cst_53 = arith.constant dense<0.000000e+00> : vector<2x32xf32>
    %119 = vector.multi_reduction <add>, %118, %cst_53 [1] : vector<2x8x32xf32> to vector<2x32xf32>
    %120 = arith.truncf %119 : vector<2x32xf32> to vector<2x32xbf16>
    %cst_54 = arith.constant dense<0.000000e+00> : vector<2x96xf32>
    %121 = tpu.matmul %120, %18, %cst_54 {dimension_numbers = #tpu.dot_dimension_numbers<[1], [0], [0], [1], [0, 0, 1, 1], [], []>} : vector<2x32xbf16>, vector<32x96xbf16>, vector<2x96xf32> -> vector<2x96xf32>
    %122 = arith.index_cast %c1_i32 : i32 to index
    %c0_55 = arith.constant 0 : index
    %c0_56 = arith.constant 0 : index
    %123 = vector.load %arg18[%122, %c0_55, %c0_56] : memref<8x2x96xf32, #tpu.memory_space<vmem>>, vector<1x2x96xf32>
    %124 = vector.shape_cast %123 : vector<1x2x96xf32> to vector<2x96xf32>
    %125 = arith.addf %121, %124 : vector<2x96xf32>
    %126 = vector.extract_strided_slice %125 {offsets = [0, 0], sizes = [2, 32], strides = [1, 1]} : vector<2x96xf32> to vector<2x32xf32>
    %127 = vector.extract_strided_slice %95 {offsets = [0, 32], sizes = [2, 32], strides = [1, 1]} : vector<2x128xf32> to vector<2x32xf32>
    %128 = arith.addf %126, %127 : vector<2x32xf32>
    %129 = arith.negf %128 : vector<2x32xf32>
    %130 = math.exp %129 : vector<2x32xf32>
    %cst_57 = arith.constant 1.000000e+00 : f32
    %131 = vector.broadcast %cst_57 : f32 to vector<2x32xf32>
    %132 = arith.addf %131, %130 : vector<2x32xf32>
    %133 = arith.divf %131, %132 : vector<2x32xf32>
    %134 = vector.extract_strided_slice %125 {offsets = [0, 32], sizes = [2, 32], strides = [1, 1]} : vector<2x96xf32> to vector<2x32xf32>
    %135 = vector.extract_strided_slice %95 {offsets = [0, 64], sizes = [2, 32], strides = [1, 1]} : vector<2x128xf32> to vector<2x32xf32>
    %136 = arith.addf %134, %135 : vector<2x32xf32>
    %137 = arith.negf %136 : vector<2x32xf32>
    %138 = math.exp %137 : vector<2x32xf32>
    %cst_58 = arith.constant 1.000000e+00 : f32
    %139 = vector.broadcast %cst_58 : f32 to vector<2x32xf32>
    %140 = arith.addf %139, %138 : vector<2x32xf32>
    %141 = arith.divf %139, %140 : vector<2x32xf32>
    %142 = vector.extract_strided_slice %125 {offsets = [0, 64], sizes = [2, 32], strides = [1, 1]} : vector<2x96xf32> to vector<2x32xf32>
    %143 = vector.extract_strided_slice %95 {offsets = [0, 96], sizes = [2, 32], strides = [1, 1]} : vector<2x128xf32> to vector<2x32xf32>
    %144 = vector.broadcast %16 : vector<1x32xf32> to vector<2x32xf32>
    %145 = arith.addf %143, %144 : vector<2x32xf32>
    %146 = arith.mulf %133, %145 : vector<2x32xf32>
    %147 = arith.addf %142, %146 : vector<2x32xf32>
    %148 = math.tanh %147 : vector<2x32xf32>
    %cst_59 = arith.constant 1.000000e+00 : f32
    %149 = vector.broadcast %cst_59 : f32 to vector<2x32xf32>
    %150 = arith.subf %149, %141 : vector<2x32xf32>
    %151 = arith.mulf %150, %148 : vector<2x32xf32>
    %152 = arith.mulf %141, %81 : vector<2x32xf32>
    %153 = arith.addf %151, %152 : vector<2x32xf32>
    %154 = arith.truncf %153 : vector<2x32xf32> to vector<2x32xbf16>
    %cst_60 = arith.constant dense<0.000000e+00> : vector<2x128xf32>
    %155 = tpu.matmul %154, %19, %cst_60 {dimension_numbers = #tpu.dot_dimension_numbers<[1], [0], [0], [1], [0, 0, 1, 1], [], []>} : vector<2x32xbf16>, vector<32x128xbf16>, vector<2x128xf32> -> vector<2x128xf32>
    %156 = vector.broadcast %20 : vector<1x128xf32> to vector<2x128xf32>
    %157 = arith.addf %155, %156 : vector<2x128xf32>
    %158 = arith.index_cast %c1_i32 : i32 to index
    %c0_61 = arith.constant 0 : index
    %c0_62 = arith.constant 0 : index
    %159 = vector.load %arg14[%158, %c0_61, %c0_62] : memref<8x2x128xf32, #tpu.memory_space<vmem>>, vector<1x2x128xf32>
    %160 = vector.shape_cast %159 : vector<1x2x128xf32> to vector<2x128xf32>
    %161 = vector.shape_cast %157 : vector<2x128xf32> to vector<1x2x128xf32>
    tpu.vector_store %arg14[%158, %c0_61, %c0_62], %161 {strides = array<i32>} : memref<8x2x128xf32, #tpu.memory_space<vmem>>, vector<1x2x128xf32>,
    %162 = arith.index_cast %c1_i32 : i32 to index
    %c0_63 = arith.constant 0 : index
    %c0_64 = arith.constant 0 : index
    %163 = vector.load %arg15[%162, %c0_63, %c0_64] : memref<8x2x8xf32, #tpu.memory_space<vmem>>, vector<1x2x8xf32>
    %164 = vector.shape_cast %163 : vector<1x2x8xf32> to vector<2x8xf32>
    %165 = vector.shape_cast %115 : vector<2x8xf32> to vector<1x2x8xf32>
    tpu.vector_store %arg15[%162, %c0_63, %c0_64], %165 {strides = array<i32>} : memref<8x2x8xf32, #tpu.memory_space<vmem>>, vector<1x2x8xf32>,
    %c2_i32 = arith.constant 2 : i32
    %166 = arith.truncf %153 : vector<2x32xf32> to vector<2x32xbf16>
    %cst_65 = arith.constant dense<0.000000e+00> : vector<2x128xf32>
    %167 = tpu.matmul %166, %17, %cst_65 {dimension_numbers = #tpu.dot_dimension_numbers<[1], [0], [0], [1], [0, 0, 1, 1], [], []>} : vector<2x32xbf16>, vector<32x128xbf16>, vector<2x128xf32> -> vector<2x128xf32>
    %168 = vector.extract_strided_slice %167 {offsets = [0, 0], sizes = [2, 32], strides = [1, 1]} : vector<2x128xf32> to vector<2x32xf32>
    %169 = vector.shape_cast %168 : vector<2x32xf32> to vector<2x1x32xf32>
    %170 = vector.broadcast %169 : vector<2x1x32xf32> to vector<2x8x32xf32>
    %171 = arith.addf %170, %13 : vector<2x8x32xf32>
    %172 = math.tanh %171 : vector<2x8x32xf32>
    %173 = vector.shape_cast %15 : vector<1x32xf32> to vector<1x1x32xf32>
    %174 = vector.broadcast %173 : vector<1x1x32xf32> to vector<2x8x32xf32>
    %175 = arith.mulf %172, %174 : vector<2x8x32xf32>
    %cst_66 = arith.constant dense<0.000000e+00> : vector<2x8xf32>
    %176 = vector.multi_reduction <add>, %175, %cst_66 [2] : vector<2x8x32xf32> to vector<2x8xf32>
    %177 = arith.addf %176, %14 : vector<2x8xf32>
    %cst_67 = arith.constant dense<0xFF800000> : vector<2xf32>
    %178 = vector.multi_reduction <maximumf>, %177, %cst_67 [1] : vector<2x8xf32> to vector<2xf32>
    %179 = vector.shape_cast %178 : vector<2xf32> to vector<2x1xf32>
    %180 = vector.broadcast %179 : vector<2x1xf32> to vector<2x8xf32>
    %181 = arith.subf %177, %180 : vector<2x8xf32>
    %182 = math.exp %181 : vector<2x8xf32>
    %cst_68 = arith.constant dense<0.000000e+00> : vector<2xf32>
    %183 = vector.multi_reduction <add>, %182, %cst_68 [1] : vector<2x8xf32> to vector<2xf32>
    %184 = vector.shape_cast %183 : vector<2xf32> to vector<2x1xf32>
    %185 = tpu.reciprocal %184 {approx = true} : vector<2x1xf32> -> vector<2x1xf32>
    %186 = vector.broadcast %185 : vector<2x1xf32> to vector<2x8xf32>
    %187 = arith.mulf %182, %186 : vector<2x8xf32>
    %188 = vector.shape_cast %187 : vector<2x8xf32> to vector<2x8x1xf32>
    %189 = vector.broadcast %188 : vector<2x8x1xf32> to vector<2x8x32xf32>
    %190 = arith.mulf %189, %12 : vector<2x8x32xf32>
    %cst_69 = arith.constant dense<0.000000e+00> : vector<2x32xf32>
    %191 = vector.multi_reduction <add>, %190, %cst_69 [1] : vector<2x8x32xf32> to vector<2x32xf32>
    %192 = arith.truncf %191 : vector<2x32xf32> to vector<2x32xbf16>
    %cst_70 = arith.constant dense<0.000000e+00> : vector<2x96xf32>
    %193 = tpu.matmul %192, %18, %cst_70 {dimension_numbers = #tpu.dot_dimension_numbers<[1], [0], [0], [1], [0, 0, 1, 1], [], []>} : vector<2x32xbf16>, vector<32x96xbf16>, vector<2x96xf32> -> vector<2x96xf32>
    %194 = arith.index_cast %c2_i32 : i32 to index
    %c0_71 = arith.constant 0 : index
    %c0_72 = arith.constant 0 : index
    %195 = vector.load %arg18[%194, %c0_71, %c0_72] : memref<8x2x96xf32, #tpu.memory_space<vmem>>, vector<1x2x96xf32>
    %196 = vector.shape_cast %195 : vector<1x2x96xf32> to vector<2x96xf32>
    %197 = arith.addf %193, %196 : vector<2x96xf32>
    %198 = vector.extract_strided_slice %197 {offsets = [0, 0], sizes = [2, 32], strides = [1, 1]} : vector<2x96xf32> to vector<2x32xf32>
    %199 = vector.extract_strided_slice %167 {offsets = [0, 32], sizes = [2, 32], strides = [1, 1]} : vector<2x128xf32> to vector<2x32xf32>
    %200 = arith.addf %198, %199 : vector<2x32xf32>
    %201 = arith.negf %200 : vector<2x32xf32>
    %202 = math.exp %201 : vector<2x32xf32>
    %cst_73 = arith.constant 1.000000e+00 : f32
    %203 = vector.broadcast %cst_73 : f32 to vector<2x32xf32>
    %204 = arith.addf %203, %202 : vector<2x32xf32>
    %205 = arith.divf %203, %204 : vector<2x32xf32>
    %206 = vector.extract_strided_slice %197 {offsets = [0, 32], sizes = [2, 32], strides = [1, 1]} : vector<2x96xf32> to vector<2x32xf32>
    %207 = vector.extract_strided_slice %167 {offsets = [0, 64], sizes = [2, 32], strides = [1, 1]} : vector<2x128xf32> to vector<2x32xf32>
    %208 = arith.addf %206, %207 : vector<2x32xf32>
    %209 = arith.negf %208 : vector<2x32xf32>
    %210 = math.exp %209 : vector<2x32xf32>
    %cst_74 = arith.constant 1.000000e+00 : f32
    %211 = vector.broadcast %cst_74 : f32 to vector<2x32xf32>
    %212 = arith.addf %211, %210 : vector<2x32xf32>
    %213 = arith.divf %211, %212 : vector<2x32xf32>
    %214 = vector.extract_strided_slice %197 {offsets = [0, 64], sizes = [2, 32], strides = [1, 1]} : vector<2x96xf32> to vector<2x32xf32>
    %215 = vector.extract_strided_slice %167 {offsets = [0, 96], sizes = [2, 32], strides = [1, 1]} : vector<2x128xf32> to vector<2x32xf32>
    %216 = vector.broadcast %16 : vector<1x32xf32> to vector<2x32xf32>
    %217 = arith.addf %215, %216 : vector<2x32xf32>
    %218 = arith.mulf %205, %217 : vector<2x32xf32>
    %219 = arith.addf %214, %218 : vector<2x32xf32>
    %220 = math.tanh %219 : vector<2x32xf32>
    %cst_75 = arith.constant 1.000000e+00 : f32
    %221 = vector.broadcast %cst_75 : f32 to vector<2x32xf32>
    %222 = arith.subf %221, %213 : vector<2x32xf32>
    %223 = arith.mulf %222, %220 : vector<2x32xf32>
    %224 = arith.mulf %213, %153 : vector<2x32xf32>
    %225 = arith.addf %223, %224 : vector<2x32xf32>
    %226 = arith.truncf %225 : vector<2x32xf32> to vector<2x32xbf16>
    %cst_76 = arith.constant dense<0.000000e+00> : vector<2x128xf32>
    %227 = tpu.matmul %226, %19, %cst_76 {dimension_numbers = #tpu.dot_dimension_numbers<[1], [0], [0], [1], [0, 0, 1, 1], [], []>} : vector<2x32xbf16>, vector<32x128xbf16>, vector<2x128xf32> -> vector<2x128xf32>
    %228 = vector.broadcast %20 : vector<1x128xf32> to vector<2x128xf32>
    %229 = arith.addf %227, %228 : vector<2x128xf32>
    %230 = arith.index_cast %c2_i32 : i32 to index
    %c0_77 = arith.constant 0 : index
    %c0_78 = arith.constant 0 : index
    %231 = vector.load %arg14[%230, %c0_77, %c0_78] : memref<8x2x128xf32, #tpu.memory_space<vmem>>, vector<1x2x128xf32>
    %232 = vector.shape_cast %231 : vector<1x2x128xf32> to vector<2x128xf32>
    %233 = vector.shape_cast %229 : vector<2x128xf32> to vector<1x2x128xf32>
    tpu.vector_store %arg14[%230, %c0_77, %c0_78], %233 {strides = array<i32>} : memref<8x2x128xf32, #tpu.memory_space<vmem>>, vector<1x2x128xf32>,
    %234 = arith.index_cast %c2_i32 : i32 to index
    %c0_79 = arith.constant 0 : index
    %c0_80 = arith.constant 0 : index
    %235 = vector.load %arg15[%234, %c0_79, %c0_80] : memref<8x2x8xf32, #tpu.memory_space<vmem>>, vector<1x2x8xf32>
    %236 = vector.shape_cast %235 : vector<1x2x8xf32> to vector<2x8xf32>
    %237 = vector.shape_cast %187 : vector<2x8xf32> to vector<1x2x8xf32>
    tpu.vector_store %arg15[%234, %c0_79, %c0_80], %237 {strides = array<i32>} : memref<8x2x8xf32, #tpu.memory_space<vmem>>, vector<1x2x8xf32>,
    %c3_i32 = arith.constant 3 : i32
    %238 = arith.truncf %225 : vector<2x32xf32> to vector<2x32xbf16>
    %cst_81 = arith.constant dense<0.000000e+00> : vector<2x128xf32>
    %239 = tpu.matmul %238, %17, %cst_81 {dimension_numbers = #tpu.dot_dimension_numbers<[1], [0], [0], [1], [0, 0, 1, 1], [], []>} : vector<2x32xbf16>, vector<32x128xbf16>, vector<2x128xf32> -> vector<2x128xf32>
    %240 = vector.extract_strided_slice %239 {offsets = [0, 0], sizes = [2, 32], strides = [1, 1]} : vector<2x128xf32> to vector<2x32xf32>
    %241 = vector.shape_cast %240 : vector<2x32xf32> to vector<2x1x32xf32>
    %242 = vector.broadcast %241 : vector<2x1x32xf32> to vector<2x8x32xf32>
    %243 = arith.addf %242, %13 : vector<2x8x32xf32>
    %244 = math.tanh %243 : vector<2x8x32xf32>
    %245 = vector.shape_cast %15 : vector<1x32xf32> to vector<1x1x32xf32>
    %246 = vector.broadcast %245 : vector<1x1x32xf32> to vector<2x8x32xf32>
    %247 = arith.mulf %244, %246 : vector<2x8x32xf32>
    %cst_82 = arith.constant dense<0.000000e+00> : vector<2x8xf32>
    %248 = vector.multi_reduction <add>, %247, %cst_82 [2] : vector<2x8x32xf32> to vector<2x8xf32>
    %249 = arith.addf %248, %14 : vector<2x8xf32>
    %cst_83 = arith.constant dense<0xFF800000> : vector<2xf32>
    %250 = vector.multi_reduction <maximumf>, %249, %cst_83 [1] : vector<2x8xf32> to vector<2xf32>
    %251 = vector.shape_cast %250 : vector<2xf32> to vector<2x1xf32>
    %252 = vector.broadcast %251 : vector<2x1xf32> to vector<2x8xf32>
    %253 = arith.subf %249, %252 : vector<2x8xf32>
    %254 = math.exp %253 : vector<2x8xf32>
    %cst_84 = arith.constant dense<0.000000e+00> : vector<2xf32>
    %255 = vector.multi_reduction <add>, %254, %cst_84 [1] : vector<2x8xf32> to vector<2xf32>
    %256 = vector.shape_cast %255 : vector<2xf32> to vector<2x1xf32>
    %257 = tpu.reciprocal %256 {approx = true} : vector<2x1xf32> -> vector<2x1xf32>
    %258 = vector.broadcast %257 : vector<2x1xf32> to vector<2x8xf32>
    %259 = arith.mulf %254, %258 : vector<2x8xf32>
    %260 = vector.shape_cast %259 : vector<2x8xf32> to vector<2x8x1xf32>
    %261 = vector.broadcast %260 : vector<2x8x1xf32> to vector<2x8x32xf32>
    %262 = arith.mulf %261, %12 : vector<2x8x32xf32>
    %cst_85 = arith.constant dense<0.000000e+00> : vector<2x32xf32>
    %263 = vector.multi_reduction <add>, %262, %cst_85 [1] : vector<2x8x32xf32> to vector<2x32xf32>
    %264 = arith.truncf %263 : vector<2x32xf32> to vector<2x32xbf16>
    %cst_86 = arith.constant dense<0.000000e+00> : vector<2x96xf32>
    %265 = tpu.matmul %264, %18, %cst_86 {dimension_numbers = #tpu.dot_dimension_numbers<[1], [0], [0], [1], [0, 0, 1, 1], [], []>} : vector<2x32xbf16>, vector<32x96xbf16>, vector<2x96xf32> -> vector<2x96xf32>
    %266 = arith.index_cast %c3_i32 : i32 to index
    %c0_87 = arith.constant 0 : index
    %c0_88 = arith.constant 0 : index
    %267 = vector.load %arg18[%266, %c0_87, %c0_88] : memref<8x2x96xf32, #tpu.memory_space<vmem>>, vector<1x2x96xf32>
    %268 = vector.shape_cast %267 : vector<1x2x96xf32> to vector<2x96xf32>
    %269 = arith.addf %265, %268 : vector<2x96xf32>
    %270 = vector.extract_strided_slice %269 {offsets = [0, 0], sizes = [2, 32], strides = [1, 1]} : vector<2x96xf32> to vector<2x32xf32>
    %271 = vector.extract_strided_slice %239 {offsets = [0, 32], sizes = [2, 32], strides = [1, 1]} : vector<2x128xf32> to vector<2x32xf32>
    %272 = arith.addf %270, %271 : vector<2x32xf32>
    %273 = arith.negf %272 : vector<2x32xf32>
    %274 = math.exp %273 : vector<2x32xf32>
    %cst_89 = arith.constant 1.000000e+00 : f32
    %275 = vector.broadcast %cst_89 : f32 to vector<2x32xf32>
    %276 = arith.addf %275, %274 : vector<2x32xf32>
    %277 = arith.divf %275, %276 : vector<2x32xf32>
    %278 = vector.extract_strided_slice %269 {offsets = [0, 32], sizes = [2, 32], strides = [1, 1]} : vector<2x96xf32> to vector<2x32xf32>
    %279 = vector.extract_strided_slice %239 {offsets = [0, 64], sizes = [2, 32], strides = [1, 1]} : vector<2x128xf32> to vector<2x32xf32>
    %280 = arith.addf %278, %279 : vector<2x32xf32>
    %281 = arith.negf %280 : vector<2x32xf32>
    %282 = math.exp %281 : vector<2x32xf32>
    %cst_90 = arith.constant 1.000000e+00 : f32
    %283 = vector.broadcast %cst_90 : f32 to vector<2x32xf32>
    %284 = arith.addf %283, %282 : vector<2x32xf32>
    %285 = arith.divf %283, %284 : vector<2x32xf32>
    %286 = vector.extract_strided_slice %269 {offsets = [0, 64], sizes = [2, 32], strides = [1, 1]} : vector<2x96xf32> to vector<2x32xf32>
    %287 = vector.extract_strided_slice %239 {offsets = [0, 96], sizes = [2, 32], strides = [1, 1]} : vector<2x128xf32> to vector<2x32xf32>
    %288 = vector.broadcast %16 : vector<1x32xf32> to vector<2x32xf32>
    %289 = arith.addf %287, %288 : vector<2x32xf32>
    %290 = arith.mulf %277, %289 : vector<2x32xf32>
    %291 = arith.addf %286, %290 : vector<2x32xf32>
    %292 = math.tanh %291 : vector<2x32xf32>
    %cst_91 = arith.constant 1.000000e+00 : f32
    %293 = vector.broadcast %cst_91 : f32 to vector<2x32xf32>
    %294 = arith.subf %293, %285 : vector<2x32xf32>
    %295 = arith.mulf %294, %292 : vector<2x32xf32>
    %296 = arith.mulf %285, %225 : vector<2x32xf32>
    %297 = arith.addf %295, %296 : vector<2x32xf32>
    %298 = arith.truncf %297 : vector<2x32xf32> to vector<2x32xbf16>
    %cst_92 = arith.constant dense<0.000000e+00> : vector<2x128xf32>
    %299 = tpu.matmul %298, %19, %cst_92 {dimension_numbers = #tpu.dot_dimension_numbers<[1], [0], [0], [1], [0, 0, 1, 1], [], []>} : vector<2x32xbf16>, vector<32x128xbf16>, vector<2x128xf32> -> vector<2x128xf32>
    %300 = vector.broadcast %20 : vector<1x128xf32> to vector<2x128xf32>
    %301 = arith.addf %299, %300 : vector<2x128xf32>
    %302 = arith.index_cast %c3_i32 : i32 to index
    %c0_93 = arith.constant 0 : index
    %c0_94 = arith.constant 0 : index
    %303 = vector.load %arg14[%302, %c0_93, %c0_94] : memref<8x2x128xf32, #tpu.memory_space<vmem>>, vector<1x2x128xf32>
    %304 = vector.shape_cast %303 : vector<1x2x128xf32> to vector<2x128xf32>
    %305 = vector.shape_cast %301 : vector<2x128xf32> to vector<1x2x128xf32>
    tpu.vector_store %arg14[%302, %c0_93, %c0_94], %305 {strides = array<i32>} : memref<8x2x128xf32, #tpu.memory_space<vmem>>, vector<1x2x128xf32>,
    %306 = arith.index_cast %c3_i32 : i32 to index
    %c0_95 = arith.constant 0 : index
    %c0_96 = arith.constant 0 : index
    %307 = vector.load %arg15[%306, %c0_95, %c0_96] : memref<8x2x8xf32, #tpu.memory_space<vmem>>, vector<1x2x8xf32>
    %308 = vector.shape_cast %307 : vector<1x2x8xf32> to vector<2x8xf32>
    %309 = vector.shape_cast %259 : vector<2x8xf32> to vector<1x2x8xf32>
    tpu.vector_store %arg15[%306, %c0_95, %c0_96], %309 {strides = array<i32>} : memref<8x2x8xf32, #tpu.memory_space<vmem>>, vector<1x2x8xf32>,
    %c4_i32 = arith.constant 4 : i32
    %310 = arith.truncf %297 : vector<2x32xf32> to vector<2x32xbf16>
    %cst_97 = arith.constant dense<0.000000e+00> : vector<2x128xf32>
    %311 = tpu.matmul %310, %17, %cst_97 {dimension_numbers = #tpu.dot_dimension_numbers<[1], [0], [0], [1], [0, 0, 1, 1], [], []>} : vector<2x32xbf16>, vector<32x128xbf16>, vector<2x128xf32> -> vector<2x128xf32>
    %312 = vector.extract_strided_slice %311 {offsets = [0, 0], sizes = [2, 32], strides = [1, 1]} : vector<2x128xf32> to vector<2x32xf32>
    %313 = vector.shape_cast %312 : vector<2x32xf32> to vector<2x1x32xf32>
    %314 = vector.broadcast %313 : vector<2x1x32xf32> to vector<2x8x32xf32>
    %315 = arith.addf %314, %13 : vector<2x8x32xf32>
    %316 = math.tanh %315 : vector<2x8x32xf32>
    %317 = vector.shape_cast %15 : vector<1x32xf32> to vector<1x1x32xf32>
    %318 = vector.broadcast %317 : vector<1x1x32xf32> to vector<2x8x32xf32>
    %319 = arith.mulf %316, %318 : vector<2x8x32xf32>
    %cst_98 = arith.constant dense<0.000000e+00> : vector<2x8xf32>
    %320 = vector.multi_reduction <add>, %319, %cst_98 [2] : vector<2x8x32xf32> to vector<2x8xf32>
    %321 = arith.addf %320, %14 : vector<2x8xf32>
    %cst_99 = arith.constant dense<0xFF800000> : vector<2xf32>
    %322 = vector.multi_reduction <maximumf>, %321, %cst_99 [1] : vector<2x8xf32> to vector<2xf32>
    %323 = vector.shape_cast %322 : vector<2xf32> to vector<2x1xf32>
    %324 = vector.broadcast %323 : vector<2x1xf32> to vector<2x8xf32>
    %325 = arith.subf %321, %324 : vector<2x8xf32>
    %326 = math.exp %325 : vector<2x8xf32>
    %cst_100 = arith.constant dense<0.000000e+00> : vector<2xf32>
    %327 = vector.multi_reduction <add>, %326, %cst_100 [1] : vector<2x8xf32> to vector<2xf32>
    %328 = vector.shape_cast %327 : vector<2xf32> to vector<2x1xf32>
    %329 = tpu.reciprocal %328 {approx = true} : vector<2x1xf32> -> vector<2x1xf32>
    %330 = vector.broadcast %329 : vector<2x1xf32> to vector<2x8xf32>
    %331 = arith.mulf %326, %330 : vector<2x8xf32>
    %332 = vector.shape_cast %331 : vector<2x8xf32> to vector<2x8x1xf32>
    %333 = vector.broadcast %332 : vector<2x8x1xf32> to vector<2x8x32xf32>
    %334 = arith.mulf %333, %12 : vector<2x8x32xf32>
    %cst_101 = arith.constant dense<0.000000e+00> : vector<2x32xf32>
    %335 = vector.multi_reduction <add>, %334, %cst_101 [1] : vector<2x8x32xf32> to vector<2x32xf32>
    %336 = arith.truncf %335 : vector<2x32xf32> to vector<2x32xbf16>
    %cst_102 = arith.constant dense<0.000000e+00> : vector<2x96xf32>
    %337 = tpu.matmul %336, %18, %cst_102 {dimension_numbers = #tpu.dot_dimension_numbers<[1], [0], [0], [1], [0, 0, 1, 1], [], []>} : vector<2x32xbf16>, vector<32x96xbf16>, vector<2x96xf32> -> vector<2x96xf32>
    %338 = arith.index_cast %c4_i32 : i32 to index
    %c0_103 = arith.constant 0 : index
    %c0_104 = arith.constant 0 : index
    %339 = vector.load %arg18[%338, %c0_103, %c0_104] : memref<8x2x96xf32, #tpu.memory_space<vmem>>, vector<1x2x96xf32>
    %340 = vector.shape_cast %339 : vector<1x2x96xf32> to vector<2x96xf32>
    %341 = arith.addf %337, %340 : vector<2x96xf32>
    %342 = vector.extract_strided_slice %341 {offsets = [0, 0], sizes = [2, 32], strides = [1, 1]} : vector<2x96xf32> to vector<2x32xf32>
    %343 = vector.extract_strided_slice %311 {offsets = [0, 32], sizes = [2, 32], strides = [1, 1]} : vector<2x128xf32> to vector<2x32xf32>
    %344 = arith.addf %342, %343 : vector<2x32xf32>
    %345 = arith.negf %344 : vector<2x32xf32>
    %346 = math.exp %345 : vector<2x32xf32>
    %cst_105 = arith.constant 1.000000e+00 : f32
    %347 = vector.broadcast %cst_105 : f32 to vector<2x32xf32>
    %348 = arith.addf %347, %346 : vector<2x32xf32>
    %349 = arith.divf %347, %348 : vector<2x32xf32>
    %350 = vector.extract_strided_slice %341 {offsets = [0, 32], sizes = [2, 32], strides = [1, 1]} : vector<2x96xf32> to vector<2x32xf32>
    %351 = vector.extract_strided_slice %311 {offsets = [0, 64], sizes = [2, 32], strides = [1, 1]} : vector<2x128xf32> to vector<2x32xf32>
    %352 = arith.addf %350, %351 : vector<2x32xf32>
    %353 = arith.negf %352 : vector<2x32xf32>
    %354 = math.exp %353 : vector<2x32xf32>
    %cst_106 = arith.constant 1.000000e+00 : f32
    %355 = vector.broadcast %cst_106 : f32 to vector<2x32xf32>
    %356 = arith.addf %355, %354 : vector<2x32xf32>
    %357 = arith.divf %355, %356 : vector<2x32xf32>
    %358 = vector.extract_strided_slice %341 {offsets = [0, 64], sizes = [2, 32], strides = [1, 1]} : vector<2x96xf32> to vector<2x32xf32>
    %359 = vector.extract_strided_slice %311 {offsets = [0, 96], sizes = [2, 32], strides = [1, 1]} : vector<2x128xf32> to vector<2x32xf32>
    %360 = vector.broadcast %16 : vector<1x32xf32> to vector<2x32xf32>
    %361 = arith.addf %359, %360 : vector<2x32xf32>
    %362 = arith.mulf %349, %361 : vector<2x32xf32>
    %363 = arith.addf %358, %362 : vector<2x32xf32>
    %364 = math.tanh %363 : vector<2x32xf32>
    %cst_107 = arith.constant 1.000000e+00 : f32
    %365 = vector.broadcast %cst_107 : f32 to vector<2x32xf32>
    %366 = arith.subf %365, %357 : vector<2x32xf32>
    %367 = arith.mulf %366, %364 : vector<2x32xf32>
    %368 = arith.mulf %357, %297 : vector<2x32xf32>
    %369 = arith.addf %367, %368 : vector<2x32xf32>
    %370 = arith.truncf %369 : vector<2x32xf32> to vector<2x32xbf16>
    %cst_108 = arith.constant dense<0.000000e+00> : vector<2x128xf32>
    %371 = tpu.matmul %370, %19, %cst_108 {dimension_numbers = #tpu.dot_dimension_numbers<[1], [0], [0], [1], [0, 0, 1, 1], [], []>} : vector<2x32xbf16>, vector<32x128xbf16>, vector<2x128xf32> -> vector<2x128xf32>
    %372 = vector.broadcast %20 : vector<1x128xf32> to vector<2x128xf32>
    %373 = arith.addf %371, %372 : vector<2x128xf32>
    %374 = arith.index_cast %c4_i32 : i32 to index
    %c0_109 = arith.constant 0 : index
    %c0_110 = arith.constant 0 : index
    %375 = vector.load %arg14[%374, %c0_109, %c0_110] : memref<8x2x128xf32, #tpu.memory_space<vmem>>, vector<1x2x128xf32>
    %376 = vector.shape_cast %375 : vector<1x2x128xf32> to vector<2x128xf32>
    %377 = vector.shape_cast %373 : vector<2x128xf32> to vector<1x2x128xf32>
    tpu.vector_store %arg14[%374, %c0_109, %c0_110], %377 {strides = array<i32>} : memref<8x2x128xf32, #tpu.memory_space<vmem>>, vector<1x2x128xf32>,
    %378 = arith.index_cast %c4_i32 : i32 to index
    %c0_111 = arith.constant 0 : index
    %c0_112 = arith.constant 0 : index
    %379 = vector.load %arg15[%378, %c0_111, %c0_112] : memref<8x2x8xf32, #tpu.memory_space<vmem>>, vector<1x2x8xf32>
    %380 = vector.shape_cast %379 : vector<1x2x8xf32> to vector<2x8xf32>
    %381 = vector.shape_cast %331 : vector<2x8xf32> to vector<1x2x8xf32>
    tpu.vector_store %arg15[%378, %c0_111, %c0_112], %381 {strides = array<i32>} : memref<8x2x8xf32, #tpu.memory_space<vmem>>, vector<1x2x8xf32>,
    %c5_i32 = arith.constant 5 : i32
    %382 = arith.truncf %369 : vector<2x32xf32> to vector<2x32xbf16>
    %cst_113 = arith.constant dense<0.000000e+00> : vector<2x128xf32>
    %383 = tpu.matmul %382, %17, %cst_113 {dimension_numbers = #tpu.dot_dimension_numbers<[1], [0], [0], [1], [0, 0, 1, 1], [], []>} : vector<2x32xbf16>, vector<32x128xbf16>, vector<2x128xf32> -> vector<2x128xf32>
    %384 = vector.extract_strided_slice %383 {offsets = [0, 0], sizes = [2, 32], strides = [1, 1]} : vector<2x128xf32> to vector<2x32xf32>
    %385 = vector.shape_cast %384 : vector<2x32xf32> to vector<2x1x32xf32>
    %386 = vector.broadcast %385 : vector<2x1x32xf32> to vector<2x8x32xf32>
    %387 = arith.addf %386, %13 : vector<2x8x32xf32>
    %388 = math.tanh %387 : vector<2x8x32xf32>
    %389 = vector.shape_cast %15 : vector<1x32xf32> to vector<1x1x32xf32>
    %390 = vector.broadcast %389 : vector<1x1x32xf32> to vector<2x8x32xf32>
    %391 = arith.mulf %388, %390 : vector<2x8x32xf32>
    %cst_114 = arith.constant dense<0.000000e+00> : vector<2x8xf32>
    %392 = vector.multi_reduction <add>, %391, %cst_114 [2] : vector<2x8x32xf32> to vector<2x8xf32>
    %393 = arith.addf %392, %14 : vector<2x8xf32>
    %cst_115 = arith.constant dense<0xFF800000> : vector<2xf32>
    %394 = vector.multi_reduction <maximumf>, %393, %cst_115 [1] : vector<2x8xf32> to vector<2xf32>
    %395 = vector.shape_cast %394 : vector<2xf32> to vector<2x1xf32>
    %396 = vector.broadcast %395 : vector<2x1xf32> to vector<2x8xf32>
    %397 = arith.subf %393, %396 : vector<2x8xf32>
    %398 = math.exp %397 : vector<2x8xf32>
    %cst_116 = arith.constant dense<0.000000e+00> : vector<2xf32>
    %399 = vector.multi_reduction <add>, %398, %cst_116 [1] : vector<2x8xf32> to vector<2xf32>
    %400 = vector.shape_cast %399 : vector<2xf32> to vector<2x1xf32>
    %401 = tpu.reciprocal %400 {approx = true} : vector<2x1xf32> -> vector<2x1xf32>
    %402 = vector.broadcast %401 : vector<2x1xf32> to vector<2x8xf32>
    %403 = arith.mulf %398, %402 : vector<2x8xf32>
    %404 = vector.shape_cast %403 : vector<2x8xf32> to vector<2x8x1xf32>
    %405 = vector.broadcast %404 : vector<2x8x1xf32> to vector<2x8x32xf32>
    %406 = arith.mulf %405, %12 : vector<2x8x32xf32>
    %cst_117 = arith.constant dense<0.000000e+00> : vector<2x32xf32>
    %407 = vector.multi_reduction <add>, %406, %cst_117 [1] : vector<2x8x32xf32> to vector<2x32xf32>
    %408 = arith.truncf %407 : vector<2x32xf32> to vector<2x32xbf16>
    %cst_118 = arith.constant dense<0.000000e+00> : vector<2x96xf32>
    %409 = tpu.matmul %408, %18, %cst_118 {dimension_numbers = #tpu.dot_dimension_numbers<[1], [0], [0], [1], [0, 0, 1, 1], [], []>} : vector<2x32xbf16>, vector<32x96xbf16>, vector<2x96xf32> -> vector<2x96xf32>
    %410 = arith.index_cast %c5_i32 : i32 to index
    %c0_119 = arith.constant 0 : index
    %c0_120 = arith.constant 0 : index
    %411 = vector.load %arg18[%410, %c0_119, %c0_120] : memref<8x2x96xf32, #tpu.memory_space<vmem>>, vector<1x2x96xf32>
    %412 = vector.shape_cast %411 : vector<1x2x96xf32> to vector<2x96xf32>
    %413 = arith.addf %409, %412 : vector<2x96xf32>
    %414 = vector.extract_strided_slice %413 {offsets = [0, 0], sizes = [2, 32], strides = [1, 1]} : vector<2x96xf32> to vector<2x32xf32>
    %415 = vector.extract_strided_slice %383 {offsets = [0, 32], sizes = [2, 32], strides = [1, 1]} : vector<2x128xf32> to vector<2x32xf32>
    %416 = arith.addf %414, %415 : vector<2x32xf32>
    %417 = arith.negf %416 : vector<2x32xf32>
    %418 = math.exp %417 : vector<2x32xf32>
    %cst_121 = arith.constant 1.000000e+00 : f32
    %419 = vector.broadcast %cst_121 : f32 to vector<2x32xf32>
    %420 = arith.addf %419, %418 : vector<2x32xf32>
    %421 = arith.divf %419, %420 : vector<2x32xf32>
    %422 = vector.extract_strided_slice %413 {offsets = [0, 32], sizes = [2, 32], strides = [1, 1]} : vector<2x96xf32> to vector<2x32xf32>
    %423 = vector.extract_strided_slice %383 {offsets = [0, 64], sizes = [2, 32], strides = [1, 1]} : vector<2x128xf32> to vector<2x32xf32>
    %424 = arith.addf %422, %423 : vector<2x32xf32>
    %425 = arith.negf %424 : vector<2x32xf32>
    %426 = math.exp %425 : vector<2x32xf32>
    %cst_122 = arith.constant 1.000000e+00 : f32
    %427 = vector.broadcast %cst_122 : f32 to vector<2x32xf32>
    %428 = arith.addf %427, %426 : vector<2x32xf32>
    %429 = arith.divf %427, %428 : vector<2x32xf32>
    %430 = vector.extract_strided_slice %413 {offsets = [0, 64], sizes = [2, 32], strides = [1, 1]} : vector<2x96xf32> to vector<2x32xf32>
    %431 = vector.extract_strided_slice %383 {offsets = [0, 96], sizes = [2, 32], strides = [1, 1]} : vector<2x128xf32> to vector<2x32xf32>
    %432 = vector.broadcast %16 : vector<1x32xf32> to vector<2x32xf32>
    %433 = arith.addf %431, %432 : vector<2x32xf32>
    %434 = arith.mulf %421, %433 : vector<2x32xf32>
    %435 = arith.addf %430, %434 : vector<2x32xf32>
    %436 = math.tanh %435 : vector<2x32xf32>
    %cst_123 = arith.constant 1.000000e+00 : f32
    %437 = vector.broadcast %cst_123 : f32 to vector<2x32xf32>
    %438 = arith.subf %437, %429 : vector<2x32xf32>
    %439 = arith.mulf %438, %436 : vector<2x32xf32>
    %440 = arith.mulf %429, %369 : vector<2x32xf32>
    %441 = arith.addf %439, %440 : vector<2x32xf32>
    %442 = arith.truncf %441 : vector<2x32xf32> to vector<2x32xbf16>
    %cst_124 = arith.constant dense<0.000000e+00> : vector<2x128xf32>
    %443 = tpu.matmul %442, %19, %cst_124 {dimension_numbers = #tpu.dot_dimension_numbers<[1], [0], [0], [1], [0, 0, 1, 1], [], []>} : vector<2x32xbf16>, vector<32x128xbf16>, vector<2x128xf32> -> vector<2x128xf32>
    %444 = vector.broadcast %20 : vector<1x128xf32> to vector<2x128xf32>
    %445 = arith.addf %443, %444 : vector<2x128xf32>
    %446 = arith.index_cast %c5_i32 : i32 to index
    %c0_125 = arith.constant 0 : index
    %c0_126 = arith.constant 0 : index
    %447 = vector.load %arg14[%446, %c0_125, %c0_126] : memref<8x2x128xf32, #tpu.memory_space<vmem>>, vector<1x2x128xf32>
    %448 = vector.shape_cast %447 : vector<1x2x128xf32> to vector<2x128xf32>
    %449 = vector.shape_cast %445 : vector<2x128xf32> to vector<1x2x128xf32>
    tpu.vector_store %arg14[%446, %c0_125, %c0_126], %449 {strides = array<i32>} : memref<8x2x128xf32, #tpu.memory_space<vmem>>, vector<1x2x128xf32>,
    %450 = arith.index_cast %c5_i32 : i32 to index
    %c0_127 = arith.constant 0 : index
    %c0_128 = arith.constant 0 : index
    %451 = vector.load %arg15[%450, %c0_127, %c0_128] : memref<8x2x8xf32, #tpu.memory_space<vmem>>, vector<1x2x8xf32>
    %452 = vector.shape_cast %451 : vector<1x2x8xf32> to vector<2x8xf32>
    %453 = vector.shape_cast %403 : vector<2x8xf32> to vector<1x2x8xf32>
    tpu.vector_store %arg15[%450, %c0_127, %c0_128], %453 {strides = array<i32>} : memref<8x2x8xf32, #tpu.memory_space<vmem>>, vector<1x2x8xf32>,
    %c6_i32 = arith.constant 6 : i32
    %454 = arith.truncf %441 : vector<2x32xf32> to vector<2x32xbf16>
    %cst_129 = arith.constant dense<0.000000e+00> : vector<2x128xf32>
    %455 = tpu.matmul %454, %17, %cst_129 {dimension_numbers = #tpu.dot_dimension_numbers<[1], [0], [0], [1], [0, 0, 1, 1], [], []>} : vector<2x32xbf16>, vector<32x128xbf16>, vector<2x128xf32> -> vector<2x128xf32>
    %456 = vector.extract_strided_slice %455 {offsets = [0, 0], sizes = [2, 32], strides = [1, 1]} : vector<2x128xf32> to vector<2x32xf32>
    %457 = vector.shape_cast %456 : vector<2x32xf32> to vector<2x1x32xf32>
    %458 = vector.broadcast %457 : vector<2x1x32xf32> to vector<2x8x32xf32>
    %459 = arith.addf %458, %13 : vector<2x8x32xf32>
    %460 = math.tanh %459 : vector<2x8x32xf32>
    %461 = vector.shape_cast %15 : vector<1x32xf32> to vector<1x1x32xf32>
    %462 = vector.broadcast %461 : vector<1x1x32xf32> to vector<2x8x32xf32>
    %463 = arith.mulf %460, %462 : vector<2x8x32xf32>
    %cst_130 = arith.constant dense<0.000000e+00> : vector<2x8xf32>
    %464 = vector.multi_reduction <add>, %463, %cst_130 [2] : vector<2x8x32xf32> to vector<2x8xf32>
    %465 = arith.addf %464, %14 : vector<2x8xf32>
    %cst_131 = arith.constant dense<0xFF800000> : vector<2xf32>
    %466 = vector.multi_reduction <maximumf>, %465, %cst_131 [1] : vector<2x8xf32> to vector<2xf32>
    %467 = vector.shape_cast %466 : vector<2xf32> to vector<2x1xf32>
    %468 = vector.broadcast %467 : vector<2x1xf32> to vector<2x8xf32>
    %469 = arith.subf %465, %468 : vector<2x8xf32>
    %470 = math.exp %469 : vector<2x8xf32>
    %cst_132 = arith.constant dense<0.000000e+00> : vector<2xf32>
    %471 = vector.multi_reduction <add>, %470, %cst_132 [1] : vector<2x8xf32> to vector<2xf32>
    %472 = vector.shape_cast %471 : vector<2xf32> to vector<2x1xf32>
    %473 = tpu.reciprocal %472 {approx = true} : vector<2x1xf32> -> vector<2x1xf32>
    %474 = vector.broadcast %473 : vector<2x1xf32> to vector<2x8xf32>
    %475 = arith.mulf %470, %474 : vector<2x8xf32>
    %476 = vector.shape_cast %475 : vector<2x8xf32> to vector<2x8x1xf32>
    %477 = vector.broadcast %476 : vector<2x8x1xf32> to vector<2x8x32xf32>
    %478 = arith.mulf %477, %12 : vector<2x8x32xf32>
    %cst_133 = arith.constant dense<0.000000e+00> : vector<2x32xf32>
    %479 = vector.multi_reduction <add>, %478, %cst_133 [1] : vector<2x8x32xf32> to vector<2x32xf32>
    %480 = arith.truncf %479 : vector<2x32xf32> to vector<2x32xbf16>
    %cst_134 = arith.constant dense<0.000000e+00> : vector<2x96xf32>
    %481 = tpu.matmul %480, %18, %cst_134 {dimension_numbers = #tpu.dot_dimension_numbers<[1], [0], [0], [1], [0, 0, 1, 1], [], []>} : vector<2x32xbf16>, vector<32x96xbf16>, vector<2x96xf32> -> vector<2x96xf32>
    %482 = arith.index_cast %c6_i32 : i32 to index
    %c0_135 = arith.constant 0 : index
    %c0_136 = arith.constant 0 : index
    %483 = vector.load %arg18[%482, %c0_135, %c0_136] : memref<8x2x96xf32, #tpu.memory_space<vmem>>, vector<1x2x96xf32>
    %484 = vector.shape_cast %483 : vector<1x2x96xf32> to vector<2x96xf32>
    %485 = arith.addf %481, %484 : vector<2x96xf32>
    %486 = vector.extract_strided_slice %485 {offsets = [0, 0], sizes = [2, 32], strides = [1, 1]} : vector<2x96xf32> to vector<2x32xf32>
    %487 = vector.extract_strided_slice %455 {offsets = [0, 32], sizes = [2, 32], strides = [1, 1]} : vector<2x128xf32> to vector<2x32xf32>
    %488 = arith.addf %486, %487 : vector<2x32xf32>
    %489 = arith.negf %488 : vector<2x32xf32>
    %490 = math.exp %489 : vector<2x32xf32>
    %cst_137 = arith.constant 1.000000e+00 : f32
    %491 = vector.broadcast %cst_137 : f32 to vector<2x32xf32>
    %492 = arith.addf %491, %490 : vector<2x32xf32>
    %493 = arith.divf %491, %492 : vector<2x32xf32>
    %494 = vector.extract_strided_slice %485 {offsets = [0, 32], sizes = [2, 32], strides = [1, 1]} : vector<2x96xf32> to vector<2x32xf32>
    %495 = vector.extract_strided_slice %455 {offsets = [0, 64], sizes = [2, 32], strides = [1, 1]} : vector<2x128xf32> to vector<2x32xf32>
    %496 = arith.addf %494, %495 : vector<2x32xf32>
    %497 = arith.negf %496 : vector<2x32xf32>
    %498 = math.exp %497 : vector<2x32xf32>
    %cst_138 = arith.constant 1.000000e+00 : f32
    %499 = vector.broadcast %cst_138 : f32 to vector<2x32xf32>
    %500 = arith.addf %499, %498 : vector<2x32xf32>
    %501 = arith.divf %499, %500 : vector<2x32xf32>
    %502 = vector.extract_strided_slice %485 {offsets = [0, 64], sizes = [2, 32], strides = [1, 1]} : vector<2x96xf32> to vector<2x32xf32>
    %503 = vector.extract_strided_slice %455 {offsets = [0, 96], sizes = [2, 32], strides = [1, 1]} : vector<2x128xf32> to vector<2x32xf32>
    %504 = vector.broadcast %16 : vector<1x32xf32> to vector<2x32xf32>
    %505 = arith.addf %503, %504 : vector<2x32xf32>
    %506 = arith.mulf %493, %505 : vector<2x32xf32>
    %507 = arith.addf %502, %506 : vector<2x32xf32>
    %508 = math.tanh %507 : vector<2x32xf32>
    %cst_139 = arith.constant 1.000000e+00 : f32
    %509 = vector.broadcast %cst_139 : f32 to vector<2x32xf32>
    %510 = arith.subf %509, %501 : vector<2x32xf32>
    %511 = arith.mulf %510, %508 : vector<2x32xf32>
    %512 = arith.mulf %501, %441 : vector<2x32xf32>
    %513 = arith.addf %511, %512 : vector<2x32xf32>
    %514 = arith.truncf %513 : vector<2x32xf32> to vector<2x32xbf16>
    %cst_140 = arith.constant dense<0.000000e+00> : vector<2x128xf32>
    %515 = tpu.matmul %514, %19, %cst_140 {dimension_numbers = #tpu.dot_dimension_numbers<[1], [0], [0], [1], [0, 0, 1, 1], [], []>} : vector<2x32xbf16>, vector<32x128xbf16>, vector<2x128xf32> -> vector<2x128xf32>
    %516 = vector.broadcast %20 : vector<1x128xf32> to vector<2x128xf32>
    %517 = arith.addf %515, %516 : vector<2x128xf32>
    %518 = arith.index_cast %c6_i32 : i32 to index
    %c0_141 = arith.constant 0 : index
    %c0_142 = arith.constant 0 : index
    %519 = vector.load %arg14[%518, %c0_141, %c0_142] : memref<8x2x128xf32, #tpu.memory_space<vmem>>, vector<1x2x128xf32>
    %520 = vector.shape_cast %519 : vector<1x2x128xf32> to vector<2x128xf32>
    %521 = vector.shape_cast %517 : vector<2x128xf32> to vector<1x2x128xf32>
    tpu.vector_store %arg14[%518, %c0_141, %c0_142], %521 {strides = array<i32>} : memref<8x2x128xf32, #tpu.memory_space<vmem>>, vector<1x2x128xf32>,
    %522 = arith.index_cast %c6_i32 : i32 to index
    %c0_143 = arith.constant 0 : index
    %c0_144 = arith.constant 0 : index
    %523 = vector.load %arg15[%522, %c0_143, %c0_144] : memref<8x2x8xf32, #tpu.memory_space<vmem>>, vector<1x2x8xf32>
    %524 = vector.shape_cast %523 : vector<1x2x8xf32> to vector<2x8xf32>
    %525 = vector.shape_cast %475 : vector<2x8xf32> to vector<1x2x8xf32>
    tpu.vector_store %arg15[%522, %c0_143, %c0_144], %525 {strides = array<i32>} : memref<8x2x8xf32, #tpu.memory_space<vmem>>, vector<1x2x8xf32>,
    %c7_i32 = arith.constant 7 : i32
    %526 = arith.truncf %513 : vector<2x32xf32> to vector<2x32xbf16>
    %cst_145 = arith.constant dense<0.000000e+00> : vector<2x128xf32>
    %527 = tpu.matmul %526, %17, %cst_145 {dimension_numbers = #tpu.dot_dimension_numbers<[1], [0], [0], [1], [0, 0, 1, 1], [], []>} : vector<2x32xbf16>, vector<32x128xbf16>, vector<2x128xf32> -> vector<2x128xf32>
    %528 = vector.extract_strided_slice %527 {offsets = [0, 0], sizes = [2, 32], strides = [1, 1]} : vector<2x128xf32> to vector<2x32xf32>
    %529 = vector.shape_cast %528 : vector<2x32xf32> to vector<2x1x32xf32>
    %530 = vector.broadcast %529 : vector<2x1x32xf32> to vector<2x8x32xf32>
    %531 = arith.addf %530, %13 : vector<2x8x32xf32>
    %532 = math.tanh %531 : vector<2x8x32xf32>
    %533 = vector.shape_cast %15 : vector<1x32xf32> to vector<1x1x32xf32>
    %534 = vector.broadcast %533 : vector<1x1x32xf32> to vector<2x8x32xf32>
    %535 = arith.mulf %532, %534 : vector<2x8x32xf32>
    %cst_146 = arith.constant dense<0.000000e+00> : vector<2x8xf32>
    %536 = vector.multi_reduction <add>, %535, %cst_146 [2] : vector<2x8x32xf32> to vector<2x8xf32>
    %537 = arith.addf %536, %14 : vector<2x8xf32>
    %cst_147 = arith.constant dense<0xFF800000> : vector<2xf32>
    %538 = vector.multi_reduction <maximumf>, %537, %cst_147 [1] : vector<2x8xf32> to vector<2xf32>
    %539 = vector.shape_cast %538 : vector<2xf32> to vector<2x1xf32>
    %540 = vector.broadcast %539 : vector<2x1xf32> to vector<2x8xf32>
    %541 = arith.subf %537, %540 : vector<2x8xf32>
    %542 = math.exp %541 : vector<2x8xf32>
    %cst_148 = arith.constant dense<0.000000e+00> : vector<2xf32>
    %543 = vector.multi_reduction <add>, %542, %cst_148 [1] : vector<2x8xf32> to vector<2xf32>
    %544 = vector.shape_cast %543 : vector<2xf32> to vector<2x1xf32>
    %545 = tpu.reciprocal %544 {approx = true} : vector<2x1xf32> -> vector<2x1xf32>
    %546 = vector.broadcast %545 : vector<2x1xf32> to vector<2x8xf32>
    %547 = arith.mulf %542, %546 : vector<2x8xf32>
    %548 = vector.shape_cast %547 : vector<2x8xf32> to vector<2x8x1xf32>
    %549 = vector.broadcast %548 : vector<2x8x1xf32> to vector<2x8x32xf32>
    %550 = arith.mulf %549, %12 : vector<2x8x32xf32>
    %cst_149 = arith.constant dense<0.000000e+00> : vector<2x32xf32>
    %551 = vector.multi_reduction <add>, %550, %cst_149 [1] : vector<2x8x32xf32> to vector<2x32xf32>
    %552 = arith.truncf %551 : vector<2x32xf32> to vector<2x32xbf16>
    %cst_150 = arith.constant dense<0.000000e+00> : vector<2x96xf32>
    %553 = tpu.matmul %552, %18, %cst_150 {dimension_numbers = #tpu.dot_dimension_numbers<[1], [0], [0], [1], [0, 0, 1, 1], [], []>} : vector<2x32xbf16>, vector<32x96xbf16>, vector<2x96xf32> -> vector<2x96xf32>
    %554 = arith.index_cast %c7_i32 : i32 to index
    %c0_151 = arith.constant 0 : index
    %c0_152 = arith.constant 0 : index
    %555 = vector.load %arg18[%554, %c0_151, %c0_152] : memref<8x2x96xf32, #tpu.memory_space<vmem>>, vector<1x2x96xf32>
    %556 = vector.shape_cast %555 : vector<1x2x96xf32> to vector<2x96xf32>
    %557 = arith.addf %553, %556 : vector<2x96xf32>
    %558 = vector.extract_strided_slice %557 {offsets = [0, 0], sizes = [2, 32], strides = [1, 1]} : vector<2x96xf32> to vector<2x32xf32>
    %559 = vector.extract_strided_slice %527 {offsets = [0, 32], sizes = [2, 32], strides = [1, 1]} : vector<2x128xf32> to vector<2x32xf32>
    %560 = arith.addf %558, %559 : vector<2x32xf32>
    %561 = arith.negf %560 : vector<2x32xf32>
    %562 = math.exp %561 : vector<2x32xf32>
    %cst_153 = arith.constant 1.000000e+00 : f32
    %563 = vector.broadcast %cst_153 : f32 to vector<2x32xf32>
    %564 = arith.addf %563, %562 : vector<2x32xf32>
    %565 = arith.divf %563, %564 : vector<2x32xf32>
    %566 = vector.extract_strided_slice %557 {offsets = [0, 32], sizes = [2, 32], strides = [1, 1]} : vector<2x96xf32> to vector<2x32xf32>
    %567 = vector.extract_strided_slice %527 {offsets = [0, 64], sizes = [2, 32], strides = [1, 1]} : vector<2x128xf32> to vector<2x32xf32>
    %568 = arith.addf %566, %567 : vector<2x32xf32>
    %569 = arith.negf %568 : vector<2x32xf32>
    %570 = math.exp %569 : vector<2x32xf32>
    %cst_154 = arith.constant 1.000000e+00 : f32
    %571 = vector.broadcast %cst_154 : f32 to vector<2x32xf32>
    %572 = arith.addf %571, %570 : vector<2x32xf32>
    %573 = arith.divf %571, %572 : vector<2x32xf32>
    %574 = vector.extract_strided_slice %557 {offsets = [0, 64], sizes = [2, 32], strides = [1, 1]} : vector<2x96xf32> to vector<2x32xf32>
    %575 = vector.extract_strided_slice %527 {offsets = [0, 96], sizes = [2, 32], strides = [1, 1]} : vector<2x128xf32> to vector<2x32xf32>
    %576 = vector.broadcast %16 : vector<1x32xf32> to vector<2x32xf32>
    %577 = arith.addf %575, %576 : vector<2x32xf32>
    %578 = arith.mulf %565, %577 : vector<2x32xf32>
    %579 = arith.addf %574, %578 : vector<2x32xf32>
    %580 = math.tanh %579 : vector<2x32xf32>
    %cst_155 = arith.constant 1.000000e+00 : f32
    %581 = vector.broadcast %cst_155 : f32 to vector<2x32xf32>
    %582 = arith.subf %581, %573 : vector<2x32xf32>
    %583 = arith.mulf %582, %580 : vector<2x32xf32>
    %584 = arith.mulf %573, %513 : vector<2x32xf32>
    %585 = arith.addf %583, %584 : vector<2x32xf32>
    %586 = arith.truncf %585 : vector<2x32xf32> to vector<2x32xbf16>
    %cst_156 = arith.constant dense<0.000000e+00> : vector<2x128xf32>
    %587 = tpu.matmul %586, %19, %cst_156 {dimension_numbers = #tpu.dot_dimension_numbers<[1], [0], [0], [1], [0, 0, 1, 1], [], []>} : vector<2x32xbf16>, vector<32x128xbf16>, vector<2x128xf32> -> vector<2x128xf32>
    %588 = vector.broadcast %20 : vector<1x128xf32> to vector<2x128xf32>
    %589 = arith.addf %587, %588 : vector<2x128xf32>
    %590 = arith.index_cast %c7_i32 : i32 to index
    %c0_157 = arith.constant 0 : index
    %c0_158 = arith.constant 0 : index
    %591 = vector.load %arg14[%590, %c0_157, %c0_158] : memref<8x2x128xf32, #tpu.memory_space<vmem>>, vector<1x2x128xf32>
    %592 = vector.shape_cast %591 : vector<1x2x128xf32> to vector<2x128xf32>
    %593 = vector.shape_cast %589 : vector<2x128xf32> to vector<1x2x128xf32>
    tpu.vector_store %arg14[%590, %c0_157, %c0_158], %593 {strides = array<i32>} : memref<8x2x128xf32, #tpu.memory_space<vmem>>, vector<1x2x128xf32>,
    %594 = arith.index_cast %c7_i32 : i32 to index
    %c0_159 = arith.constant 0 : index
    %c0_160 = arith.constant 0 : index
    %595 = vector.load %arg15[%594, %c0_159, %c0_160] : memref<8x2x8xf32, #tpu.memory_space<vmem>>, vector<1x2x8xf32>
    %596 = vector.shape_cast %595 : vector<1x2x8xf32> to vector<2x8xf32>
    %597 = vector.shape_cast %547 : vector<2x8xf32> to vector<1x2x8xf32>
    tpu.vector_store %arg15[%594, %c0_159, %c0_160], %597 {strides = array<i32>} : memref<8x2x8xf32, #tpu.memory_space<vmem>>, vector<1x2x8xf32>,
    %c8_i32 = arith.constant 8 : i32
    %c0_161 = arith.constant 0 : index
    %c0_162 = arith.constant 0 : index
    %598 = vector.load %arg16[%c0_161, %c0_162] : memref<2x32xf32, #tpu.memory_space<vmem>>, vector<2x32xf32>
    tpu.vector_store %arg16[%c0_161, %c0_162], %585 {strides = array<i32>} : memref<2x32xf32, #tpu.memory_space<vmem>>, vector<2x32xf32>,
    return
  }
  func.func @transform_0(%arg0: i32) -> (i32, i32, i32) {
    %c0_i32 = arith.constant 0 : i32
    %c0_i32_0 = arith.constant 0 : i32
    %c0_i32_1 = arith.constant 0 : i32
    return %arg0, %c0_i32, %c0_i32_0 : i32, i32, i32
  }
  func.func @transform_1(%arg0: i32) -> (i32, i32) {
    %c0_i32 = arith.constant 0 : i32
    %c0_i32_0 = arith.constant 0 : i32
    %c0_i32_1 = arith.constant 0 : i32
    return %c0_i32, %c0_i32_0 : i32, i32
  }
  func.func @transform_2(%arg0: i32) -> (i32, i32, i32) {
    %c0_i32 = arith.constant 0 : i32
    %c0_i32_0 = arith.constant 0 : i32
    %c0_i32_1 = arith.constant 0 : i32
    %c0_i32_2 = arith.constant 0 : i32
    return %c0_i32, %c0_i32_0, %c0_i32_1 : i32, i32, i32
  }
  func.func @transform_3(%arg0: i32) -> (i32, i32) {
    %c0_i32 = arith.constant 0 : i32
    %c0_i32_0 = arith.constant 0 : i32
    %c0_i32_1 = arith.constant 0 : i32
    return %c0_i32, %c0_i32_0 : i32, i32
  }
  func.func @transform_4(%arg0: i32) -> (i32, i32) {
    %c0_i32 = arith.constant 0 : i32
    %c0_i32_0 = arith.constant 0 : i32
    %c0_i32_1 = arith.constant 0 : i32
    return %c0_i32, %c0_i32_0 : i32, i32
  }
  func.func @transform_5(%arg0: i32) -> (i32, i32) {
    %c0_i32 = arith.constant 0 : i32
    %c0_i32_0 = arith.constant 0 : i32
    %c0_i32_1 = arith.constant 0 : i32
    return %c0_i32, %c0_i32_0 : i32, i32
  }
  func.func @transform_6(%arg0: i32) -> (i32, i32) {
    %c0_i32 = arith.constant 0 : i32
    %c0_i32_0 = arith.constant 0 : i32
    %c0_i32_1 = arith.constant 0 : i32
    return %c0_i32, %c0_i32_0 : i32, i32
  }
  func.func @transform_7(%arg0: i32) -> (i32, i32) {
    %c0_i32 = arith.constant 0 : i32
    %c0_i32_0 = arith.constant 0 : i32
    %c0_i32_1 = arith.constant 0 : i32
    return %c0_i32, %c0_i32_0 : i32, i32
  }
  func.func @transform_8(%arg0: i32) -> (i32, i32) {
    %c0_i32 = arith.constant 0 : i32
    %c0_i32_0 = arith.constant 0 : i32
    %c0_i32_1 = arith.constant 0 : i32
    return %c0_i32, %c0_i32_0 : i32, i32
  }
  func.func @transform_9(%arg0: i32) -> (i32, i32) {
    %c0_i32 = arith.constant 0 : i32
    %c0_i32_0 = arith.constant 0 : i32
    %c0_i32_1 = arith.constant 0 : i32
    return %c0_i32, %c0_i32_0 : i32, i32
  }
  func.func @transform_10(%arg0: i32) -> (i32, i32) {
    %c0_i32 = arith.constant 0 : i32
    %c0_i32_0 = arith.constant 0 : i32
    %c0_i32_1 = arith.constant 0 : i32
    return %c0_i32, %c0_i32_0 : i32, i32
  }
  func.func @transform_11(%arg0: i32) -> (i32, i32) {
    %c0_i32 = arith.constant 0 : i32
    %c0_i32_0 = arith.constant 0 : i32
    %c0_i32_1 = arith.constant 0 : i32
    return %c0_i32, %c0_i32_0 : i32, i32
  }
  func.func @transform_12(%arg0: i32) -> (i32, i32) {
    %c0_i32 = arith.constant 0 : i32
    %c0_i32_0 = arith.constant 0 : i32
    %c0_i32_1 = arith.constant 0 : i32
    return %c0_i32, %c0_i32_0 : i32, i32
  }
  func.func @transform_13(%arg0: i32) -> (i32, i32, i32) {
    %c0_i32 = arith.constant 0 : i32
    %c0_i32_0 = arith.constant 0 : i32
    %c0_i32_1 = arith.constant 0 : i32
    return %arg0, %c0_i32, %c0_i32_0 : i32, i32, i32
  }
  func.func @transform_14(%arg0: i32) -> (i32, i32, i32) {
    %c0_i32 = arith.constant 0 : i32
    %c0_i32_0 = arith.constant 0 : i32
    %c0_i32_1 = arith.constant 0 : i32
    return %arg0, %c0_i32, %c0_i32_0 : i32, i32, i32
  }
  func.func @transform_15(%arg0: i32) -> (i32, i32) {
    %c0_i32 = arith.constant 0 : i32
    %c0_i32_0 = arith.constant 0 : i32
    %c0_i32_1 = arith.constant 0 : i32
    return %c0_i32, %c0_i32_0 : i32, i32
  }
}

</mosaic_0001>

<llo_original>
// kernel: tpu_custom_call.1
$region0: #{tpu_custom_call.1}
  #allocation0 [shape = 'u32[]', space=smem, size = 0x4, offset = 0x4, fixed_abs, tag = 'smem constant byte address 0x4 - core index']
  #allocation1 [shape = 'u32[144,128]{1,0:T(1,128)}', space=vmem, size = 0x12000, scoped, tag = 'internal scratch']
  #allocation2 [shape = 'f32[2,8,32]{2,1,0:T(8,128)}', space=vmem, size = 0x2000, scoped, tag = 'scratch operand']
  #allocation3 [shape = 'f32[8,2,96]{2,1,0:T(2,128)}', space=vmem, size = 0x2000, scoped, tag = 'scratch operand']
  %s0 = inlined_call_operand.hbm [shape: bf16[8,2,16], index: 0, kind: input, shape index: {}]
  %s1 = inlined_call_operand.vmem [shape: f32[2,32], index: 1, kind: input, shape index: {}]
  %s2 = inlined_call_operand.hbm [shape: f32[2,8,32], index: 2, kind: input, shape index: {}]
  %s3 = inlined_call_operand.hbm [shape: f32[2,8], index: 3, kind: input, shape index: {}]
  %s4 = inlined_call_operand.hbm [shape: bf16[32,32], index: 4, kind: input, shape index: {}]
  %s5 = inlined_call_operand.vmem [shape: bf16[32,128], index: 5, kind: input, shape index: {}]
  %s6 = inlined_call_operand.hbm [shape: bf16[32,96], index: 6, kind: input, shape index: {}]
  %s7 = inlined_call_operand.hbm [shape: bf16[16,96], index: 7, kind: input, shape index: {}]
  %s8 = inlined_call_operand.hbm [shape: f32[1,32], index: 8, kind: input, shape index: {}]
  %s9 = inlined_call_operand.hbm [shape: f32[1,96], index: 9, kind: input, shape index: {}]
  %s10 = inlined_call_operand.vmem [shape: f32[1,32], index: 10, kind: input, shape index: {}]
  %s11 = inlined_call_operand.vmem [shape: bf16[32,128], index: 11, kind: input, shape index: {}]
  %s12 = inlined_call_operand.vmem [shape: f32[1,128], index: 12, kind: input, shape index: {}]
  %s13 = inlined_call_operand.hbm [shape: f32[8,2,128], index: 13, kind: output, shape index: {0}]
  %s14 = inlined_call_operand.hbm [shape: f32[8,2,8], index: 14, kind: output, shape index: {1}]
  %s15 = inlined_call_operand.hbm [shape: f32[2,32], index: 15, kind: output, shape index: {2}]
  %16 = xla_tuple %s13, %s14, %s15
  %s17 = sld [smem:[#allocation0]]
  $region114: #{tpu_custom_call.1} parent=0
    _
  %s19 = ssub.s32 1, %s17
  %s20 = scalar_select 0, %s19, %s17
  $region1: #{tpu_custom_call.1} parent=0
    #allocation4 [shape = 'u8[4096]{0}', space=vmem, size = 0x1000, scoped, tag = 'input window, operand 0, single buffered']
    #allocation5 [shape = 's32[1]{0}', space=sflag, size = 0x4, scoped, tag = 'scoped memory for tpu_custom_call.1']
    #allocation6 [shape = 's32[1]{0}', space=sflag, size = 0x4, scoped, tag = 'scoped memory for tpu_custom_call.1']
    #allocation7 [shape = 'u8[8192]{0}', space=vmem, size = 0x2000, scoped, tag = 'input window, operand 2, single buffered']
    #allocation8 [shape = 's32[1]{0}', space=sflag, size = 0x4, scoped, tag = 'scoped memory for tpu_custom_call.1']
    #allocation9 [shape = 'u8[1024]{0}', space=vmem, size = 0x400, scoped, tag = 'input window, operand 3, single buffered']
    #allocation10 [shape = 'u8[8192]{0}', space=vmem, size = 0x2000, scoped, tag = 'input window, operand 4, single buffered']
    #allocation11 [shape = 's32[1]{0}', space=sflag, size = 0x4, scoped, tag = 'scoped memory for tpu_custom_call.1']
    #allocation12 [shape = 'u8[8192]{0}', space=vmem, size = 0x2000, scoped, tag = 'input window, operand 6, single buffered']
    #allocation13 [shape = 'u8[4096]{0}', space=vmem, size = 0x1000, scoped, tag = 'input window, operand 7, single buffered']
    #allocation14 [shape = 's32[1]{0}', space=sflag, size = 0x4, scoped, tag = 'scoped memory for tpu_custom_call.1']
    #allocation15 [shape = 'u8[512]{0}', space=vmem, size = 0x400, scoped, tag = 'input window, operand 8, single buffered']
    #allocation16 [shape = 'u8[512]{0}', space=vmem, size = 0x400, scoped, tag = 'input window, operand 9, single buffered']
    #allocation17 [shape = 's32[1]{0}', space=sflag, size = 0x4, scoped, tag = 'scoped memory for tpu_custom_call.1']
    #allocation18 [shape = 'u8[8192]{0}', space=vmem, size = 0x2000, scoped, tag = 'output window, operand 0, single buffered']
    #allocation19 [shape = 'u8[8192]{0}', space=vmem, size = 0x2000, scoped, tag = 'output window, operand 1, single buffered']
    #allocation20 [shape = 's32[1]{0}', space=sflag, size = 0x4, scoped, tag = 'scoped memory for tpu_custom_call.1']
    #allocation21 [shape = 'u8[1024]{0}', space=vmem, size = 0x400, scoped, tag = 'output window, operand 2, single buffered']
    %21 = vsyncpa [#allocation5], 0
    %22 = vsyncpa [#allocation8], 0
    %23 = vsyncpa [#allocation11], 0
    %24 = vsyncpa [#allocation14], 0
    %25 = vsyncpa [#allocation17], 0
    %26 = vsyncpa [#allocation6], 0
    %27 = vsyncpa [#allocation20], 0
    // Predicated region
    $region2: #{tpu_custom_call.1} parent=1 // pred_check
      _
    $region3: #{tpu_custom_call.1} parent=1 // pred_check_branch
      %29 = sbr.rel (0) target = $region5
    $region4: #{tpu_custom_call.1} parent=1 // pred_region
      %s31 = ssub.s32 128, 128
      %32 = vsyncadd [#allocation5], %s31
      %s33 = sshll.u32 [#allocation4], 4
      %s34 = int_to_ptr.vmem [resolvable:$true] %s33
      %39 = dma.hbm_to_vmem [thread:$0]  %s0, 128, %s34, [#allocation5], 16, 16, 1
    $region5: #{tpu_custom_call.1} parent=1 // pred_fallthru
      _
    // Predicated region
    $region6: #{tpu_custom_call.1} parent=1 // pred_check
      _
    $region7: #{tpu_custom_call.1} parent=1 // pred_check_branch
      %41 = sbr.rel (0) target = $region9
    $region8: #{tpu_custom_call.1} parent=1 // pred_region
      _
    $region9: #{tpu_custom_call.1} parent=1 // pred_fallthru
      _
    // Predicated region
    $region10: #{tpu_custom_call.1} parent=1 // pred_check
      _
    $region11: #{tpu_custom_call.1} parent=1 // pred_check_branch
      %43 = sbr.rel (0) target = $region13
    $region12: #{tpu_custom_call.1} parent=1 // pred_region
      %s45 = ssub.s32 256, 256
      %46 = vsyncadd [#allocation8], %s45
      %s47 = sshll.u32 [#allocation7], 4
      %s48 = int_to_ptr.vmem [resolvable:$true] %s47
      %53 = dma.hbm_to_vmem [thread:$0]  %s2, 256, %s48, [#allocation8], 128, 128, 8
    $region13: #{tpu_custom_call.1} parent=1 // pred_fallthru
      _
    // Predicated region
    $region14: #{tpu_custom_call.1} parent=1 // pred_check
      _
    $region15: #{tpu_custom_call.1} parent=1 // pred_check_branch
      %55 = sbr.rel (0) target = $region17
    $region16: #{tpu_custom_call.1} parent=1 // pred_region
      %s57 = ssub.s32 32, 32
      %58 = vsyncadd [#allocation8], %s57
      %s60 = sshll.u32 [#allocation9], 4
      %s61 = int_to_ptr.vmem [resolvable:$true] %s60
      %63 = dma.hbm_to_vmem [thread:$0]  %s3, 32, %s61, [#allocation8]
    $region17: #{tpu_custom_call.1} parent=1 // pred_fallthru
      _
    // Predicated region
    $region18: #{tpu_custom_call.1} parent=1 // pred_check
      _
    $region19: #{tpu_custom_call.1} parent=1 // pred_check_branch
      %65 = sbr.rel (0) target = $region21
    $region20: #{tpu_custom_call.1} parent=1 // pred_region
      %s67 = ssub.s32 256, 256
      %68 = vsyncadd [#allocation11], %s67
      %s69 = sshll.u32 [#allocation10], 4
      %s70 = int_to_ptr.vmem [resolvable:$true] %s69
      %75 = dma.hbm_to_vmem [thread:$0]  %s4, 256, %s70, [#allocation11], 64, 64, 4
    $region21: #{tpu_custom_call.1} parent=1 // pred_fallthru
      _
    // Predicated region
    $region22: #{tpu_custom_call.1} parent=1 // pred_check
      _
    $region23: #{tpu_custom_call.1} parent=1 // pred_check_branch
      %77 = sbr.rel (0) target = $region25
    $region24: #{tpu_custom_call.1} parent=1 // pred_region
      _
    $region25: #{tpu_custom_call.1} parent=1 // pred_fallthru
      _
    // Predicated region
    $region26: #{tpu_custom_call.1} parent=1 // pred_check
      _
    $region27: #{tpu_custom_call.1} parent=1 // pred_check_branch
      %79 = sbr.rel (0) target = $region29
    $region28: #{tpu_custom_call.1} parent=1 // pred_region
      %s81 = ssub.s32 256, 256
      %82 = vsyncadd [#allocation11], %s81
      %s83 = sshll.u32 [#allocation12], 4
      %s84 = int_to_ptr.vmem [resolvable:$true] %s83
      %89 = dma.hbm_to_vmem [thread:$0]  %s6, 256, %s84, [#allocation11], 64, 64, 4
    $region29: #{tpu_custom_call.1} parent=1 // pred_fallthru
      _
    // Predicated region
    $region30: #{tpu_custom_call.1} parent=1 // pred_check
      _
    $region31: #{tpu_custom_call.1} parent=1 // pred_check_branch
      %91 = sbr.rel (0) target = $region33
    $region32: #{tpu_custom_call.1} parent=1 // pred_region
      %s93 = ssub.s32 128, 128
      %94 = vsyncadd [#allocation14], %s93
      %s95 = sshll.u32 [#allocation13], 4
      %s96 = int_to_ptr.vmem [resolvable:$true] %s95
      %101 = dma.hbm_to_vmem [thread:$0]  %s7, 128, %s96, [#allocation14], 64, 64, 4
    $region33: #{tpu_custom_call.1} parent=1 // pred_fallthru
      _
    // Predicated region
    $region34: #{tpu_custom_call.1} parent=1 // pred_check
      _
    $region35: #{tpu_custom_call.1} parent=1 // pred_check_branch
      %103 = sbr.rel (0) target = $region37
    $region36: #{tpu_custom_call.1} parent=1 // pred_region
      %s105 = ssub.s32 16, 16
      %106 = vsyncadd [#allocation14], %s105
      %s108 = sshll.u32 [#allocation15], 4
      %s109 = int_to_ptr.vmem [resolvable:$true] %s108
      %111 = dma.hbm_to_vmem [thread:$0]  %s8, 16, %s109, [#allocation14]
    $region37: #{tpu_custom_call.1} parent=1 // pred_fallthru
      _
    // Predicated region
    $region38: #{tpu_custom_call.1} parent=1 // pred_check
      _
    $region39: #{tpu_custom_call.1} parent=1 // pred_check_branch
      %113 = sbr.rel (0) target = $region41
    $region40: #{tpu_custom_call.1} parent=1 // pred_region
      %s115 = ssub.s32 16, 16
      %116 = vsyncadd [#allocation17], %s115
      %s118 = sshll.u32 [#allocation16], 4
      %s119 = int_to_ptr.vmem [resolvable:$true] %s118
      %121 = dma.hbm_to_vmem [thread:$0]  %s9, 16, %s119, [#allocation17]
    $region41: #{tpu_custom_call.1} parent=1 // pred_fallthru
      _
    // Predicated region
    $region42: #{tpu_custom_call.1} parent=1 // pred_check
      _
    $region43: #{tpu_custom_call.1} parent=1 // pred_check_branch
      %123 = sbr.rel (0) target = $region45
    $region44: #{tpu_custom_call.1} parent=1 // pred_region
      _
    $region45: #{tpu_custom_call.1} parent=1 // pred_fallthru
      _
    // Predicated region
    $region46: #{tpu_custom_call.1} parent=1 // pred_check
      _
    $region47: #{tpu_custom_call.1} parent=1 // pred_check_branch
      %125 = sbr.rel (0) target = $region49
    $region48: #{tpu_custom_call.1} parent=1 // pred_region
      _
    $region49: #{tpu_custom_call.1} parent=1 // pred_fallthru
      _
    // Predicated region
    $region50: #{tpu_custom_call.1} parent=1 // pred_check
      _
    $region51: #{tpu_custom_call.1} parent=1 // pred_check_branch
      %127 = sbr.rel (0) target = $region53
    $region52: #{tpu_custom_call.1} parent=1 // pred_region
      _
    $region53: #{tpu_custom_call.1} parent=1 // pred_fallthru
      _
    // Predicated region
    $region54: #{tpu_custom_call.1} parent=1 // pred_check
      _
    $region55: #{tpu_custom_call.1} parent=1 // pred_check_branch
      %129 = sbr.rel (0) target = $region57
    $region56: #{tpu_custom_call.1} parent=1 // pred_region
      %130 = dma.done [#allocation5], 128
    $region57: #{tpu_custom_call.1} parent=1 // pred_fallthru
      _
    // Predicated region
    $region58: #{tpu_custom_call.1} parent=1 // pred_check
      _
    $region59: #{tpu_custom_call.1} parent=1 // pred_check_branch
      %132 = sbr.rel (0) target = $region61
    $region60: #{tpu_custom_call.1} parent=1 // pred_region
      %133 = dma.done [#allocation8], 256
    $region61: #{tpu_custom_call.1} parent=1 // pred_fallthru
      _
    // Predicated region
    $region62: #{tpu_custom_call.1} parent=1 // pred_check
      _
    $region63: #{tpu_custom_call.1} parent=1 // pred_check_branch
      %135 = sbr.rel (0) target = $region65
    $region64: #{tpu_custom_call.1} parent=1 // pred_region
      %136 = dma.done [#allocation8], 32
    $region65: #{tpu_custom_call.1} parent=1 // pred_fallthru
      _
    // Predicated region
    $region66: #{tpu_custom_call.1} parent=1 // pred_check
      _
    $region67: #{tpu_custom_call.1} parent=1 // pred_check_branch
      %138 = sbr.rel (0) target = $region69
    $region68: #{tpu_custom_call.1} parent=1 // pred_region
      %139 = dma.done [#allocation11], 256
    $region69: #{tpu_custom_call.1} parent=1 // pred_fallthru
      _
    // Predicated region
    $region70: #{tpu_custom_call.1} parent=1 // pred_check
      _
    $region71: #{tpu_custom_call.1} parent=1 // pred_check_branch
      %141 = sbr.rel (0) target = $region73
    $region72: #{tpu_custom_call.1} parent=1 // pred_region
      %142 = dma.done [#allocation11], 256
    $region73: #{tpu_custom_call.1} parent=1 // pred_fallthru
      _
    // Predicated region
    $region74: #{tpu_custom_call.1} parent=1 // pred_check
      _
    $region75: #{tpu_custom_call.1} parent=1 // pred_check_branch
      %144 = sbr.rel (0) target = $region77
    $region76: #{tpu_custom_call.1} parent=1 // pred_region
      %145 = dma.done [#allocation14], 128
    $region77: #{tpu_custom_call.1} parent=1 // pred_fallthru
      _
    // Predicated region
    $region78: #{tpu_custom_call.1} parent=1 // pred_check
      _
    $region79: #{tpu_custom_call.1} parent=1 // pred_check_branch
      %147 = sbr.rel (0) target = $region81
    $region80: #{tpu_custom_call.1} parent=1 // pred_region
      %148 = dma.done [#allocation14], 16
    $region81: #{tpu_custom_call.1} parent=1 // pred_fallthru
      _
    // Predicated region
    $region82: #{tpu_custom_call.1} parent=1 // pred_check
      _
    $region83: #{tpu_custom_call.1} parent=1 // pred_check_branch
      %150 = sbr.rel (0) target = $region85
    $region84: #{tpu_custom_call.1} parent=1 // pred_region
      %151 = dma.done [#allocation17], 16
    $region85: #{tpu_custom_call.1} parent=1 // pred_fallthru
      _
    %p153 = scmp.eq.s32.totalorder 0, 0
    // Predicated region
    $region86: #{tpu_custom_call.1} parent=1 // pred_check
      %p154 = pneg %p153
    $region87: #{tpu_custom_call.1} parent=1 // pred_check_branch
      %156 = sbr.rel (%p154) target = $region89
    $region88: #{tpu_custom_call.1} parent=1 // pred_region
      %v157 = vld [vmem:[%s1] sm:$0x3]
      %vm158 = vcmask 254976
      %159 = vst.msk [vmem:[#allocation21] sm:$0x3] %vm158, %v157
      %v160 = vld [vmem:[#allocation7] sm:$0xff]
      %v161 = vld [vmem:[#allocation7 + $0x8] sm:$0xff]
      %v162 = vpack.c.bf16 %v160, %v160
      %v163 = vpack.c.bf16 %v161, %v161
      %v164 = vld [vmem:[#allocation10] sm:$0xf]
      %v165 = vld [vmem:[#allocation10 + $0x4] sm:$0xf]
      %v166 = vld [vmem:[#allocation10 + $0x8] sm:$0xf]
      %v167 = vld [vmem:[#allocation10 + $0xc] sm:$0xf]
      %v170 = vunpack.c.l.b16 %v162
      %v171 = vunpack.c.l.b16 %v163
      %v172 = vpack.c.b16 %v171, %v170
      %v177 = vunpack.c.l.b16 %v164
      %v178 = vunpack.c.l.b16 %v165
      %v179 = vunpack.c.l.b16 %v166
      %v180 = vunpack.c.l.b16 %v167
      %v181 = vpack.c.b16 %v178, %v177
      %v182 = vpack.c.b16 %v180, %v179
      %vm185 = vcmask 261120
      %v187 = vsel %vm185, %v172, 0
      %189 = vmatprep.subr.bf16.mxu0 0
      %190 = vmatpush1.bf16.msra.mxu0 %v181
      %191 = vmatprep.subr.bf16.mxu0 0
      %192 = vmatpush1.bf16.msra.mxu0 %v182
      %193 = vmatprep.subr.bf16.mxu0 0
      %194 = vmatpush1.bf16.msra.mxu0 0
      %195 = vmatprep.subr.bf16.mxu0 0
      %196 = vmatpush1.bf16.msra.mxu0 0
      %197 = vmatprep.subr.bf16.mxu0 0
      %198 = vmatpush1.bf16.msra.mxu0 0
      %199 = vmatprep.subr.bf16.mxu0 0
      %200 = vmatpush1.bf16.msra.mxu0 0
      %201 = vmatprep.subr.bf16.mxu0 0
      %202 = vmatpush1.bf16.msra.mxu0 0
      %203 = vmatprep.subr.bf16.mxu0 0
      %204 = vmatpush1.bf16.msra.mxu0 0
      %205 = vmatprep.subr.bf16.mxu0 0
      %206 = vmatpush1.bf16.msra.mxu0 0
      %207 = vmatprep.subr.bf16.mxu0 0
      %208 = vmatpush1.bf16.msra.mxu0 0
      %209 = vmatprep.subr.bf16.mxu0 0
      %210 = vmatpush1.bf16.msra.mxu0 0
      %211 = vmatprep.subr.bf16.mxu0 0
      %212 = vmatpush1.bf16.msra.mxu0 0
      %213 = vmatprep.subr.bf16.mxu0 0
      %214 = vmatpush1.bf16.msra.mxu0 0
      %215 = vmatprep.subr.bf16.mxu0 0
      %216 = vmatpush1.bf16.msra.mxu0 0
      %217 = vmatprep.subr.bf16.mxu0 0
      %218 = vmatpush1.bf16.msra.mxu0 0
      %219 = vmatprep.subr.bf16.mxu0 0
      %220 = vmatpush1.bf16.msra.mxu0 0
      %221 = vmatprep.mubr.bf16.mxu0 0
      %222 = vmatmul.mubr.bf16.gmra.mrb[0].mxu0 %v187
      %v223 = vpop.f32.mrb[0].mxu0
      %v224 = vadd.f32 0.0, %v223
      %v225 = vpop.f32.mrb[0].mxu0
      %v226 = vpop.f32.mrb[0].mxu0
      %v227 = vadd.f32 0.0, %v226
      %v228 = vpop.f32.mrb[0].mxu0
      %229 = vdwg.mxu0
      %230 = vst.msk [vmem:[#allocation2] sm:$0xff] %vm185, %v224
      %231 = vst.msk [vmem:[#allocation2 + $0x8] sm:$0xff] %vm185, %v227
    $region89: #{tpu_custom_call.1} parent=1 // pred_fallthru
      _
    %v232 = vld [vmem:[#allocation4] sm:$0x1]
    %v233 = vld [vmem:[#allocation4 + $0x1] sm:$0x1]
    %v234 = vld [vmem:[#allocation4 + $0x2] sm:$0x1]
    %v235 = vld [vmem:[#allocation4 + $0x3] sm:$0x1]
    %v236 = vld [vmem:[#allocation4 + $0x4] sm:$0x1]
    %v237 = vld [vmem:[#allocation4 + $0x5] sm:$0x1]
    %v238 = vld [vmem:[#allocation4 + $0x6] sm:$0x1]
    %v239 = vld [vmem:[#allocation4 + $0x7] sm:$0x1]
    %v240 = vld [vmem:[#allocation13] sm:$0xf]
    %v241 = vld [vmem:[#allocation13 + $0x4] sm:$0xf]
    %v242 = vld [vmem:[#allocation16] sm:$0x1]
    %v244 = vlaneseq
    %v245 = vshrl.u32 %v244, 7
    %v246 = vsub.s32 0, %v245
    %v247 = vrot.slane %v242, %v246
    %v257 = vcombine.low %v232, %v233
    %v258 = vcombine.low %v234, %v235
    %v259 = vcombine.low %v236, %v237
    %v260 = vcombine.low %v238, %v239
    %v262 = vunpack.c.l.s4 1966171168
    %v263 = vunpack.c.0.s8 %v262
    %v264 = vlaneseq
    %v265 = vshrl.u32 %v264, 7
    %v266 = vsub.s32 %v263, %v265
    %v267 = vrot.slane %v257, %v266
    %v269 = vunpack.c.l.s4 1966171168
    %v270 = vunpack.c.0.s8 %v269
    %v271 = vlaneseq
    %v272 = vshrl.u32 %v271, 7
    %v273 = vsub.s32 %v270, %v272
    %v274 = vrot.slane %v258, %v273
    %v276 = vunpack.c.l.s4 1966171168
    %v277 = vunpack.c.0.s8 %v276
    %v278 = vlaneseq
    %v279 = vshrl.u32 %v278, 7
    %v280 = vsub.s32 %v277, %v279
    %v281 = vrot.slane %v259, %v280
    %v283 = vunpack.c.l.s4 1966171168
    %v284 = vunpack.c.0.s8 %v283
    %v285 = vlaneseq
    %v286 = vshrl.u32 %v285, 7
    %v287 = vsub.s32 %v284, %v286
    %v288 = vrot.slane %v260, %v287
    %v289 = vcombine.low %v267, %v274
    %v290 = vcombine.low %v281, %v288
    %v292 = vunpack.c.l.s4 1966171168
    %v293 = vunpack.c.0.s8 %v292
    %v294 = vlaneseq
    %v295 = vshrl.u32 %v294, 7
    %v296 = vsub.s32 %v293, %v295
    %v297 = vrot.slane %v289, %v296
    %v299 = vunpack.c.l.s4 1966171168
    %v300 = vunpack.c.0.s8 %v299
    %v301 = vlaneseq
    %v302 = vshrl.u32 %v301, 7
    %v303 = vsub.s32 %v300, %v302
    %v304 = vrot.slane %v290, %v303
    %v305 = vcombine.low %v297, %v304
    %v308 = vunpack.c.l.b16 %v240
    %v309 = vunpack.c.l.b16 %v241
    %v310 = vpack.c.b16 %v309, %v308
    %vm312 = vcmask 130048
    %v314 = vsel %vm312, %v305, 0
    %316 = vmatprep.subr.bf16.mxu0 0
    %317 = vmatpush1.bf16.msra.mxu0 %v310
    %318 = vmatprep.subr.bf16.mxu0 0
    %319 = vmatpush1.bf16.msra.mxu0 0
    %320 = vmatprep.subr.bf16.mxu0 0
    %321 = vmatpush1.bf16.msra.mxu0 0
    %322 = vmatprep.subr.bf16.mxu0 0
    %323 = vmatpush1.bf16.msra.mxu0 0
    %324 = vmatprep.subr.bf16.mxu0 0
    %325 = vmatpush1.bf16.msra.mxu0 0
    %326 = vmatprep.subr.bf16.mxu0 0
    %327 = vmatpush1.bf16.msra.mxu0 0
    %328 = vmatprep.subr.bf16.mxu0 0
    %329 = vmatpush1.bf16.msra.mxu0 0
    %330 = vmatprep.subr.bf16.mxu0 0
    %331 = vmatpush1.bf16.msra.mxu0 0
    %332 = vmatprep.subr.bf16.mxu0 0
    %333 = vmatpush1.bf16.msra.mxu0 0
    %334 = vmatprep.subr.bf16.mxu0 0
    %335 = vmatpush1.bf16.msra.mxu0 0
    %336 = vmatprep.subr.bf16.mxu0 0
    %337 = vmatpush1.bf16.msra.mxu0 0
    %338 = vmatprep.subr.bf16.mxu0 0
    %339 = vmatpush1.bf16.msra.mxu0 0
    %340 = vmatprep.subr.bf16.mxu0 0
    %341 = vmatpush1.bf16.msra.mxu0 0
    %342 = vmatprep.subr.bf16.mxu0 0
    %343 = vmatpush1.bf16.msra.mxu0 0
    %344 = vmatprep.subr.bf16.mxu0 0
    %345 = vmatpush1.bf16.msra.mxu0 0
    %346 = vmatprep.subr.bf16.mxu0 0
    %347 = vmatpush1.bf16.msra.mxu0 0
    %348 = vmatprep.mubr.bf16.mxu0 0
    %349 = vmatmul.mubr.bf16.gmra.mrb[0].mxu0 %v314
    %v350 = vpop.f32.mrb[0].mxu0
    %v351 = vadd.f32 %v247, %v350
    %v352 = vpop.f32.mrb[0].mxu0
    %v353 = vpop.f32.mrb[0].mxu0
    %v354 = vadd.f32 %v247, %v353
    %v355 = vpop.f32.mrb[0].mxu0
    %356 = vdwg.mxu0
    %v359 = vcombine.high %v351, %v351
    %v361 = vunpack.c.l.s4 1983009808
    %v362 = vunpack.c.0.s8 %v361
    %v363 = vlaneseq
    %v364 = vshrl.u32 %v363, 7
    %v365 = vsub.s32 %v362, %v364
    %v366 = vrot.slane %v351, %v365
    %v368 = vunpack.c.l.s4 1983009808
    %v369 = vunpack.c.0.s8 %v368
    %v370 = vlaneseq
    %v371 = vshrl.u32 %v370, 7
    %v372 = vsub.s32 %v369, %v371
    %v373 = vrot.slane %v359, %v372
    %v374 = vcombine.high %v366, %v366
    %v375 = vcombine.high %v373, %v373
    %v376 = vcombine.high %v354, %v354
    %v378 = vunpack.c.l.s4 1983009808
    %v379 = vunpack.c.0.s8 %v378
    %v380 = vlaneseq
    %v381 = vshrl.u32 %v380, 7
    %v382 = vsub.s32 %v379, %v381
    %v383 = vrot.slane %v354, %v382
    %v385 = vunpack.c.l.s4 1983009808
    %v386 = vunpack.c.0.s8 %v385
    %v387 = vlaneseq
    %v388 = vshrl.u32 %v387, 7
    %v389 = vsub.s32 %v386, %v388
    %v390 = vrot.slane %v376, %v389
    %v391 = vcombine.high %v383, %v383
    %v392 = vcombine.high %v390, %v390
    %vm401 = vcmask 779264
    %402 = vst.msk [vmem:[#allocation3] sm:$0x3] %vm401, %v366
    %403 = vst.msk [vmem:[#allocation3 + $0x2] sm:$0x3] %vm401, %v374
    %404 = vst.msk [vmem:[#allocation3 + $0x4] sm:$0x3] %vm401, %v373
    %405 = vst.msk [vmem:[#allocation3 + $0x6] sm:$0x3] %vm401, %v375
    %406 = vst.msk [vmem:[#allocation3 + $0x8] sm:$0x3] %vm401, %v383
    %407 = vst.msk [vmem:[#allocation3 + $0xa] sm:$0x3] %vm401, %v391
    %408 = vst.msk [vmem:[#allocation3 + $0xc] sm:$0x3] %vm401, %v390
    %409 = vst.msk [vmem:[#allocation3 + $0xe] sm:$0x3] %vm401, %v392
    %v410 = vld [vmem:[#allocation7] sm:$0xff]
    %v411 = vld [vmem:[#allocation7 + $0x8] sm:$0xff]
    %v412 = vld [vmem:[#allocation2] sm:$0xff]
    %v413 = vld [vmem:[#allocation2 + $0x8] sm:$0xff]
    %v414 = vld [vmem:[#allocation9] sm:$0x3]
    %v415 = vld [vmem:[#allocation15] sm:$0x1]
    %v416 = vld [vmem:[%s10] sm:$0x1]
    %v417 = vld [vmem:[%s5] sm:$0xf]
    %v418 = vld [vmem:[%s5 + $0x4] sm:$0xf]
    %v419 = vld [vmem:[%s5 + $0x8] sm:$0xf]
    %v420 = vld [vmem:[%s5 + $0xc] sm:$0xf]
    %v421 = vld [vmem:[#allocation12] sm:$0xf]
    %v422 = vld [vmem:[#allocation12 + $0x4] sm:$0xf]
    %v423 = vld [vmem:[#allocation12 + $0x8] sm:$0xf]
    %v424 = vld [vmem:[#allocation12 + $0xc] sm:$0xf]
    %v425 = vld [vmem:[%s11] sm:$0xf]
    %v426 = vld [vmem:[%s11 + $0x4] sm:$0xf]
    %v427 = vld [vmem:[%s11 + $0x8] sm:$0xf]
    %v428 = vld [vmem:[%s11 + $0xc] sm:$0xf]
    %v429 = vld [vmem:[%s12] sm:$0x1]
    %v430 = vld [vmem:[#allocation21] sm:$0x3]
    %v431 = vpack.c.bf16 %v430, %v430
    %v436 = vunpack.c.l.b16 %v417
    %v437 = vunpack.c.l.b16 %v418
    %v438 = vunpack.c.l.b16 %v419
    %v439 = vunpack.c.l.b16 %v420
    %v440 = vpack.c.b16 %v437, %v436
    %v441 = vpack.c.b16 %v439, %v438
    %vm444 = vcmask 261120
    %v446 = vsel %vm444, %v431, 0
    %448 = vmatprep.subr.bf16.mxu0 0
    %449 = vmatpush1.bf16.msra.mxu0 %v440
    %450 = vmatprep.subr.bf16.mxu0 0
    %451 = vmatpush1.bf16.msra.mxu0 %v441
    %452 = vmatprep.subr.bf16.mxu0 0
    %453 = vmatpush1.bf16.msra.mxu0 0
    %454 = vmatprep.subr.bf16.mxu0 0
    %455 = vmatpush1.bf16.msra.mxu0 0
    %456 = vmatprep.subr.bf16.mxu0 0
    %457 = vmatpush1.bf16.msra.mxu0 0
    %458 = vmatprep.subr.bf16.mxu0 0
    %459 = vmatpush1.bf16.msra.mxu0 0
    %460 = vmatprep.subr.bf16.mxu0 0
    %461 = vmatpush1.bf16.msra.mxu0 0
    %462 = vmatprep.subr.bf16.mxu0 0
    %463 = vmatpush1.bf16.msra.mxu0 0
    %464 = vmatprep.subr.bf16.mxu0 0
    %465 = vmatpush1.bf16.msra.mxu0 0
    %466 = vmatprep.subr.bf16.mxu0 0
    %467 = vmatpush1.bf16.msra.mxu0 0
    %468 = vmatprep.subr.bf16.mxu0 0
    %469 = vmatpush1.bf16.msra.mxu0 0
    %470 = vmatprep.subr.bf16.mxu0 0
    %471 = vmatpush1.bf16.msra.mxu0 0
    %472 = vmatprep.subr.bf16.mxu0 0
    %473 = vmatpush1.bf16.msra.mxu0 0
    %474 = vmatprep.subr.bf16.mxu0 0
    %475 = vmatpush1.bf16.msra.mxu0 0
    %476 = vmatprep.subr.bf16.mxu0 0
    %477 = vmatpush1.bf16.msra.mxu0 0
    %478 = vmatprep.subr.bf16.mxu0 0
    %479 = vmatpush1.bf16.msra.mxu0 0
    %480 = vmatprep.mubr.bf16.mxu0 0
    %481 = vmatmul.mubr.bf16.gmra.mrb[0].mxu0 %v446
    %v482 = vpop.f32.mrb[0].mxu0
    %v483 = vadd.f32 0.0, %v482
    %v484 = vpop.f32.mrb[0].mxu0
    %v485 = vpop.f32.mrb[0].mxu0
    %v486 = vpop.f32.mrb[0].mxu0
    %487 = vdwg.mxu0
    %v490 = vunpack.c.l.s4 1966171168
    %v491 = vunpack.c.0.s8 %v490
    %v492 = vlaneseq
    %v493 = vshrl.u32 %v492, 7
    %v494 = vsub.s32 %v491, %v493
    %v495 = vrot.slane %v483, %v494
    %v496 = vcombine.high %v495, %v495
    %v498 = vunpack.c.l.s4 1966171168
    %v499 = vunpack.c.0.s8 %v498
    %v500 = vlaneseq
    %v501 = vshrl.u32 %v500, 7
    %v502 = vsub.s32 %v499, %v501
    %v503 = vrot.slane %v495, %v502
    %v505 = vunpack.c.l.s4 1966171168
    %v506 = vunpack.c.0.s8 %v505
    %v507 = vlaneseq
    %v508 = vshrl.u32 %v507, 7
    %v509 = vsub.s32 %v506, %v508
    %v510 = vrot.slane %v496, %v509
    %v511 = vlaneseq
    %v512 = vshrl.u32 %v511, 7
    %v513 = vsub.s32 0, %v512
    %v514 = vrot.slane %v503, %v513
    %v515 = vlaneseq
    %v516 = vshrl.u32 %v515, 7
    %v517 = vsub.s32 0, %v516
    %v518 = vrot.slane %v510, %v517
    %v521 = vadd.f32 %v514, %v412
    %v522 = vadd.f32 %v518, %v413
    %v523 = vtanh.pop %v521
    %v524 = vtanh.pop %v522
    %v526 = vlaneseq
    %v527 = vshrl.u32 %v526, 7
    %v528 = vsub.s32 0, %v527
    %v529 = vrot.slane %v415, %v528
    %v531 = vmul.f32 %v523, %v529
    %v532 = vmul.f32 %v524, %v529
    %v533 = vsel %vm444, %v531, 0.0
    %534 = vadd.xlane.f32.xlu0 %v533
    %v535 = vpop.xlane.xlu0 %534
    %v536 = vsel %vm444, %v532, 0.0
    %537 = vadd.xlane.f32.xlu0 %v536
    %v538 = vpop.xlane.xlu0 %537
    %v540 = vlaneseq
    %v541 = vshrl.u32 %v540, 7
    %v542 = vsub.s32 0, %v541
    %v543 = vrot.slane %v414, %v542
    %545 = vbcast.lane.b32.xlu0 %v543, 256
    %v546 = vpop.permute.xlu0 %545
    %v547 = vlaneseq
    %v548 = vshrl.u32 %v547, 7
    %v549 = vsub.s32 1, %v548
    %v550 = vrot.slane %v414, %v549
    %552 = vbcast.lane.b32.xlu0 %v550, 256
    %v553 = vpop.permute.xlu0 %552
    %v556 = vadd.f32 %v535, %v546
    %v557 = vadd.f32 %v538, %v553
    %560 = vset.pattern.permute.xlu0 0
    %561 = vperm.xlu0 %560, %v556
    %v562 = vpop.permute.xlu0 %561
    %563 = vset.pattern.permute.xlu0 0
    %564 = vperm.xlu0 %563, %v557
    %v565 = vpop.permute.xlu0 %564
    %v566 = vlaneseq
    %v567 = vand.u32 %v566, 127
    %v568 = vlaneseq
    %v569 = vshrl.u32 %v568, 7
    %v570 = vsub.s32 %v567, %v569
    %v571 = vrot.slane %v562, %v570
    %v572 = vlaneseq
    %v573 = vshrl.u32 %v572, 7
    %v574 = vsub.s32 %v567, %v573
    %v575 = vrot.slane %v565, %v574
    %vm576 = vcmask 1041409
    %v577 = vsel %vm576, %v575, %v571
    %vm579 = vcmask 58368
    %v580 = vsel %vm579, %v577, -inf
    %581 = vmax.xlane.f32.xlu0 %v580
    %v582 = vpop.xlane.xlu0 %581
    %v584 = vlaneseq
    %v585 = vshrl.u32 %v584, 7
    %v586 = vsub.s32 0, %v585
    %v587 = vrot.slane %v582, %v586
    %v588 = vlaneseq
    %v589 = vshrl.u32 %v588, 7
    %v590 = vsub.s32 1, %v589
    %v591 = vrot.slane %v582, %v590
    %v594 = vsub.f32 %v556, %v587
    %v595 = vsub.f32 %v557, %v591
    %v596 = vmul.f32 %v594, 1.442695
    %v597 = vpow.pop %v596
    %v598 = vmul.f32 %v595, 1.442695
    %v599 = vpow.pop %v598
    %602 = vset.pattern.permute.xlu0 0
    %603 = vperm.xlu0 %602, %v597
    %v604 = vpop.permute.xlu0 %603
    %605 = vset.pattern.permute.xlu0 0
    %606 = vperm.xlu0 %605, %v599
    %v607 = vpop.permute.xlu0 %606
    %v608 = vlaneseq
    %v609 = vshrl.u32 %v608, 7
    %v610 = vsub.s32 %v567, %v609
    %v611 = vrot.slane %v604, %v610
    %v612 = vlaneseq
    %v613 = vshrl.u32 %v612, 7
    %v614 = vsub.s32 %v567, %v613
    %v615 = vrot.slane %v607, %v614
    %v616 = vsel %vm576, %v615, %v611
    %v618 = vsel %vm579, %v616, 0.0
    %619 = vadd.xlane.f32.xlu0 %v618
    %v620 = vpop.xlane.xlu0 %619
    %v621 = vrcp.pop %v620
    %v623 = vlaneseq
    %v624 = vshrl.u32 %v623, 7
    %v625 = vsub.s32 0, %v624
    %v626 = vrot.slane %v621, %v625
    %v627 = vlaneseq
    %v628 = vshrl.u32 %v627, 7
    %v629 = vsub.s32 1, %v628
    %v630 = vrot.slane %v621, %v629
    %v633 = vmul.f32 %v597, %v626
    %v634 = vmul.f32 %v599, %v630
    %636 = vset.pattern.permute.xlu0 0
    %637 = vperm.xlu0 %636, %v633
    %v638 = vpop.permute.xlu0 %637
    %641 = vset.pattern.permute.xlu0 0
    %642 = vperm.xlu0 %641, %v634
    %v643 = vpop.permute.xlu0 %642
    %v645 = vmul.f32 %v638, %v410
    %v646 = vmul.f32 %v643, %v411
    %v647 = vsel %vm444, %v645, 0.0
    %v648 = vrot.slane %v647, 4
    %v649 = vadd.f32 %v647, %v648
    %v650 = vrot.slane %v649, 2
    %v651 = vadd.f32 %v649, %v650
    %v652 = vrot.slane %v651, 1
    %v653 = vadd.f32 %v651, %v652
    %v654 = vsel %vm444, %v646, 0.0
    %v655 = vrot.slane %v654, 4
    %v656 = vadd.f32 %v654, %v655
    %v657 = vrot.slane %v656, 2
    %v658 = vadd.f32 %v656, %v657
    %v659 = vrot.slane %v658, 1
    %v660 = vadd.f32 %v658, %v659
    %v661 = vpack.c.bf16 %v653, %v653
    %v662 = vpack.c.bf16 %v660, %v660
    %v663 = vld [vmem:[#allocation3] sm:$0x3]
    %v666 = vunpack.c.l.b16 %v661
    %v667 = vunpack.c.l.b16 %v662
    %v668 = vsel %vm576, %v667, %v666
    %v669 = vpack.c.b16 %v668, %v668
    %v674 = vunpack.c.l.b16 %v421
    %v675 = vunpack.c.l.b16 %v422
    %v676 = vunpack.c.l.b16 %v423
    %v677 = vunpack.c.l.b16 %v424
    %v678 = vpack.c.b16 %v675, %v674
    %v679 = vpack.c.b16 %v677, %v676
    %v683 = vsel %vm444, %v669, 0
    %685 = vmatprep.subr.bf16.mxu0 0
    %686 = vmatpush1.bf16.msra.mxu0 %v678
    %687 = vmatprep.subr.bf16.mxu0 0
    %688 = vmatpush1.bf16.msra.mxu0 %v679
    %689 = vmatprep.subr.bf16.mxu0 0
    %690 = vmatpush1.bf16.msra.mxu0 0
    %691 = vmatprep.subr.bf16.mxu0 0
    %692 = vmatpush1.bf16.msra.mxu0 0
    %693 = vmatprep.subr.bf16.mxu0 0
    %694 = vmatpush1.bf16.msra.mxu0 0
    %695 = vmatprep.subr.bf16.mxu0 0
    %696 = vmatpush1.bf16.msra.mxu0 0
    %697 = vmatprep.subr.bf16.mxu0 0
    %698 = vmatpush1.bf16.msra.mxu0 0
    %699 = vmatprep.subr.bf16.mxu0 0
    %700 = vmatpush1.bf16.msra.mxu0 0
    %701 = vmatprep.subr.bf16.mxu0 0
    %702 = vmatpush1.bf16.msra.mxu0 0
    %703 = vmatprep.subr.bf16.mxu0 0
    %704 = vmatpush1.bf16.msra.mxu0 0
    %705 = vmatprep.subr.bf16.mxu0 0
    %706 = vmatpush1.bf16.msra.mxu0 0
    %707 = vmatprep.subr.bf16.mxu0 0
    %708 = vmatpush1.bf16.msra.mxu0 0
    %709 = vmatprep.subr.bf16.mxu0 0
    %710 = vmatpush1.bf16.msra.mxu0 0
    %711 = vmatprep.subr.bf16.mxu0 0
    %712 = vmatpush1.bf16.msra.mxu0 0
    %713 = vmatprep.subr.bf16.mxu0 0
    %714 = vmatpush1.bf16.msra.mxu0 0
    %715 = vmatprep.subr.bf16.mxu0 0
    %716 = vmatpush1.bf16.msra.mxu0 0
    %717 = vmatprep.mubr.bf16.mxu0 0
    %718 = vmatmul.mubr.bf16.gmra.mrb[0].mxu0 %v683
    %v719 = vpop.f32.mrb[0].mxu0
    %v720 = vadd.f32 %v663, %v719
    %v721 = vpop.f32.mrb[0].mxu0
    %v722 = vpop.f32.mrb[0].mxu0
    %v723 = vpop.f32.mrb[0].mxu0
    %724 = vdwg.mxu0
    %725 = vrot.lane.b32.xlu0 %v483, 96
    %v726 = vpop.permute.xlu0 %725
    %v728 = vadd.f32 %v720, %v726
    %v729 = vxor.u32 %v728, 2147483648
    %v730 = vmul.f32 %v729, 1.442695
    %v731 = vpow.pop %v730
    %v732 = vadd.f32 %v731, 1.0
    %v733 = vrcp.pop %v732
    %v734 = vmul.f32 1.0, %v733
    %v736 = vlaneseq
    %v737 = vshrl.u32 %v736, 7
    %v738 = vsub.s32 0, %v737
    %v739 = vrot.slane %v416, %v738
    %740 = vrot.lane.b32.xlu0 %v739, 96
    %v741 = vpop.permute.xlu0 %740
    %v743 = vadd.f32 %v483, %v741
    %745 = vrot.lane.b32.xlu0 %v743, 32
    %v746 = vpop.permute.xlu0 %745
    %v748 = vmul.f32 %v734, %v746
    %750 = vrot.lane.b32.xlu0 %v748, 64
    %v751 = vpop.permute.xlu0 %750
    %v753 = vadd.f32 %v720, %v751
    %v754 = vtanh.pop %v753
    %v755 = vsub.f32 1.0, %v734
    %757 = vrot.lane.b32.xlu0 %v754, 96
    %v758 = vpop.permute.xlu0 %757
    %v760 = vmul.f32 %v755, %v758
    %762 = vrot.lane.b32.xlu0 %v430, 32
    %v763 = vpop.permute.xlu0 %762
    %v765 = vmul.f32 %v734, %v763
    %v766 = vadd.f32 %v760, %v765
    %v767 = vpack.c.bf16 %v766, %v766
    %v769 = vlaneseq
    %v770 = vshrl.u32 %v769, 7
    %v771 = vsub.s32 0, %v770
    %v772 = vrot.slane %v429, %v771
    %775 = vrot.lane.b32.xlu0 %v767, 96
    %v776 = vpop.permute.xlu0 %775
    %v781 = vunpack.c.l.b16 %v425
    %v782 = vunpack.c.l.b16 %v426
    %v783 = vunpack.c.l.b16 %v427
    %v784 = vunpack.c.l.b16 %v428
    %v785 = vpack.c.b16 %v782, %v781
    %v786 = vpack.c.b16 %v784, %v783
    %v790 = vsel %vm444, %v776, 0
    %792 = vmatprep.subr.bf16.mxu0 0
    %793 = vmatpush1.bf16.msra.mxu0 %v785
    %794 = vmatprep.subr.bf16.mxu0 0
    %795 = vmatpush1.bf16.msra.mxu0 %v786
    %796 = vmatprep.subr.bf16.mxu0 0
    %797 = vmatpush1.bf16.msra.mxu0 0
    %798 = vmatprep.subr.bf16.mxu0 0
    %799 = vmatpush1.bf16.msra.mxu0 0
    %800 = vmatprep.subr.bf16.mxu0 0
    %801 = vmatpush1.bf16.msra.mxu0 0
    %802 = vmatprep.subr.bf16.mxu0 0
    %803 = vmatpush1.bf16.msra.mxu0 0
    %804 = vmatprep.subr.bf16.mxu0 0
    %805 = vmatpush1.bf16.msra.mxu0 0
    %806 = vmatprep.subr.bf16.mxu0 0
    %807 = vmatpush1.bf16.msra.mxu0 0
    %808 = vmatprep.subr.bf16.mxu0 0
    %809 = vmatpush1.bf16.msra.mxu0 0
    %810 = vmatprep.subr.bf16.mxu0 0
    %811 = vmatpush1.bf16.msra.mxu0 0
    %812 = vmatprep.subr.bf16.mxu0 0
    %813 = vmatpush1.bf16.msra.mxu0 0
    %814 = vmatprep.subr.bf16.mxu0 0
    %815 = vmatpush1.bf16.msra.mxu0 0
    %816 = vmatprep.subr.bf16.mxu0 0
    %817 = vmatpush1.bf16.msra.mxu0 0
    %818 = vmatprep.subr.bf16.mxu0 0
    %819 = vmatpush1.bf16.msra.mxu0 0
    %820 = vmatprep.subr.bf16.mxu0 0
    %821 = vmatpush1.bf16.msra.mxu0 0
    %822 = vmatprep.subr.bf16.mxu0 0
    %823 = vmatpush1.bf16.msra.mxu0 0
    %824 = vmatprep.mubr.bf16.mxu0 0
    %825 = vmatmul.mubr.bf16.gmra.mrb[0].mxu0 %v790
    %v826 = vpop.f32.mrb[0].mxu0
    %v827 = vadd.f32 %v772, %v826
    %v828 = vpop.f32.mrb[0].mxu0
    %v829 = vpop.f32.mrb[0].mxu0
    %v830 = vpop.f32.mrb[0].mxu0
    %831 = vdwg.mxu0
    %832 = vst [vmem:[#allocation18] sm:$0x3] %v827
    %v833 = vlaneseq
    %v834 = vshrl.u32 %v833, 7
    %v835 = vsub.s32 %v567, %v834
    %v836 = vrot.slane %v638, %v835
    %v837 = vlaneseq
    %v838 = vshrl.u32 %v837, 7
    %v839 = vsub.s32 %v567, %v838
    %v840 = vrot.slane %v643, %v839
    %v841 = vsel %vm576, %v840, %v836
    %843 = vst.msk [vmem:[#allocation19] sm:$0x3] %vm579, %v841
    %844 = vmatprep.subr.bf16.mxu0 0
    %845 = vmatpush1.bf16.msra.mxu0 %v440
    %846 = vmatprep.subr.bf16.mxu0 0
    %847 = vmatpush1.bf16.msra.mxu0 %v441
    %848 = vmatprep.subr.bf16.mxu0 0
    %849 = vmatpush1.bf16.msra.mxu0 0
    %850 = vmatprep.subr.bf16.mxu0 0
    %851 = vmatpush1.bf16.msra.mxu0 0
    %852 = vmatprep.subr.bf16.mxu0 0
    %853 = vmatpush1.bf16.msra.mxu0 0
    %854 = vmatprep.subr.bf16.mxu0 0
    %855 = vmatpush1.bf16.msra.mxu0 0
    %856 = vmatprep.subr.bf16.mxu0 0
    %857 = vmatpush1.bf16.msra.mxu0 0
    %858 = vmatprep.subr.bf16.mxu0 0
    %859 = vmatpush1.bf16.msra.mxu0 0
    %860 = vmatprep.subr.bf16.mxu0 0
    %861 = vmatpush1.bf16.msra.mxu0 0
    %862 = vmatprep.subr.bf16.mxu0 0
    %863 = vmatpush1.bf16.msra.mxu0 0
    %864 = vmatprep.subr.bf16.mxu0 0
    %865 = vmatpush1.bf16.msra.mxu0 0
    %866 = vmatprep.subr.bf16.mxu0 0
    %867 = vmatpush1.bf16.msra.mxu0 0
    %868 = vmatprep.subr.bf16.mxu0 0
    %869 = vmatpush1.bf16.msra.mxu0 0
    %870 = vmatprep.subr.bf16.mxu0 0
    %871 = vmatpush1.bf16.msra.mxu0 0
    %872 = vmatprep.subr.bf16.mxu0 0
    %873 = vmatpush1.bf16.msra.mxu0 0
    %874 = vmatprep.subr.bf16.mxu0 0
    %875 = vmatpush1.bf16.msra.mxu0 0
    %876 = vmatprep.mubr.bf16.mxu0 0
    %877 = vmatmul.mubr.bf16.gmra.mrb[0].mxu0 %v790
    %v878 = vpop.f32.mrb[0].mxu0
    %v879 = vadd.f32 0.0, %v878
    %v880 = vpop.f32.mrb[0].mxu0
    %v881 = vpop.f32.mrb[0].mxu0
    %v882 = vpop.f32.mrb[0].mxu0
    %883 = vdwg.mxu0
    %v886 = vunpack.c.l.s4 1966171168
    %v887 = vunpack.c.0.s8 %v886
    %v888 = vlaneseq
    %v889 = vshrl.u32 %v888, 7
    %v890 = vsub.s32 %v887, %v889
    %v891 = vrot.slane %v879, %v890
    %v892 = vcombine.high %v891, %v891
    %v894 = vunpack.c.l.s4 1966171168
    %v895 = vunpack.c.0.s8 %v894
    %v896 = vlaneseq
    %v897 = vshrl.u32 %v896, 7
    %v898 = vsub.s32 %v895, %v897
    %v899 = vrot.slane %v891, %v898
    %v901 = vunpack.c.l.s4 1966171168
    %v902 = vunpack.c.0.s8 %v901
    %v903 = vlaneseq
    %v904 = vshrl.u32 %v903, 7
    %v905 = vsub.s32 %v902, %v904
    %v906 = vrot.slane %v892, %v905
    %v907 = vlaneseq
    %v908 = vshrl.u32 %v907, 7
    %v909 = vsub.s32 0, %v908
    %v910 = vrot.slane %v899, %v909
    %v911 = vlaneseq
    %v912 = vshrl.u32 %v911, 7
    %v913 = vsub.s32 0, %v912
    %v914 = vrot.slane %v906, %v913
    %v917 = vadd.f32 %v910, %v412
    %v918 = vadd.f32 %v914, %v413
    %v919 = vtanh.pop %v917
    %v920 = vtanh.pop %v918
    %v921 = vmul.f32 %v919, %v529
    %v922 = vmul.f32 %v920, %v529
    %v923 = vsel %vm444, %v921, 0.0
    %924 = vadd.xlane.f32.xlu0 %v923
    %v925 = vpop.xlane.xlu0 %924
    %v926 = vsel %vm444, %v922, 0.0
    %927 = vadd.xlane.f32.xlu0 %v926
    %v928 = vpop.xlane.xlu0 %927
    %v929 = vadd.f32 %v925, %v546
    %v930 = vadd.f32 %v928, %v553
    %933 = vset.pattern.permute.xlu0 0
    %934 = vperm.xlu0 %933, %v929
    %v935 = vpop.permute.xlu0 %934
    %936 = vset.pattern.permute.xlu0 0
    %937 = vperm.xlu0 %936, %v930
    %v938 = vpop.permute.xlu0 %937
    %v939 = vlaneseq
    %v940 = vshrl.u32 %v939, 7
    %v941 = vsub.s32 %v567, %v940
    %v942 = vrot.slane %v935, %v941
    %v943 = vlaneseq
    %v944 = vshrl.u32 %v943, 7
    %v945 = vsub.s32 %v567, %v944
    %v946 = vrot.slane %v938, %v945
    %v947 = vsel %vm576, %v946, %v942
    %v949 = vsel %vm579, %v947, -inf
    %950 = vmax.xlane.f32.xlu0 %v949
    %v951 = vpop.xlane.xlu0 %950
    %v953 = vlaneseq
    %v954 = vshrl.u32 %v953, 7
    %v955 = vsub.s32 0, %v954
    %v956 = vrot.slane %v951, %v955
    %v957 = vlaneseq
    %v958 = vshrl.u32 %v957, 7
    %v959 = vsub.s32 1, %v958
    %v960 = vrot.slane %v951, %v959
    %v963 = vsub.f32 %v929, %v956
    %v964 = vsub.f32 %v930, %v960
    %v965 = vmul.f32 %v963, 1.442695
    %v966 = vpow.pop %v965
    %v967 = vmul.f32 %v964, 1.442695
    %v968 = vpow.pop %v967
    %971 = vset.pattern.permute.xlu0 0
    %972 = vperm.xlu0 %971, %v966
    %v973 = vpop.permute.xlu0 %972
    %974 = vset.pattern.permute.xlu0 0
    %975 = vperm.xlu0 %974, %v968
    %v976 = vpop.permute.xlu0 %975
    %v977 = vlaneseq
    %v978 = vshrl.u32 %v977, 7
    %v979 = vsub.s32 %v567, %v978
    %v980 = vrot.slane %v973, %v979
    %v981 = vlaneseq
    %v982 = vshrl.u32 %v981, 7
    %v983 = vsub.s32 %v567, %v982
    %v984 = vrot.slane %v976, %v983
    %v985 = vsel %vm576, %v984, %v980
    %v987 = vsel %vm579, %v985, 0.0
    %988 = vadd.xlane.f32.xlu0 %v987
    %v989 = vpop.xlane.xlu0 %988
    %v990 = vrcp.pop %v989
    %v992 = vlaneseq
    %v993 = vshrl.u32 %v992, 7
    %v994 = vsub.s32 0, %v993
    %v995 = vrot.slane %v990, %v994
    %v996 = vlaneseq
    %v997 = vshrl.u32 %v996, 7
    %v998 = vsub.s32 1, %v997
    %v999 = vrot.slane %v990, %v998
    %v1002 = vmul.f32 %v966, %v995
    %v1003 = vmul.f32 %v968, %v999
    %1005 = vset.pattern.permute.xlu0 0
    %1006 = vperm.xlu0 %1005, %v1002
    %v1007 = vpop.permute.xlu0 %1006
    %1010 = vset.pattern.permute.xlu0 0
    %1011 = vperm.xlu0 %1010, %v1003
    %v1012 = vpop.permute.xlu0 %1011
    %v1014 = vmul.f32 %v1007, %v410
    %v1015 = vmul.f32 %v1012, %v411
    %v1016 = vsel %vm444, %v1014, 0.0
    %v1017 = vrot.slane %v1016, 4
    %v1018 = vadd.f32 %v1016, %v1017
    %v1019 = vrot.slane %v1018, 2
    %v1020 = vadd.f32 %v1018, %v1019
    %v1021 = vrot.slane %v1020, 1
    %v1022 = vadd.f32 %v1020, %v1021
    %v1023 = vsel %vm444, %v1015, 0.0
    %v1024 = vrot.slane %v1023, 4
    %v1025 = vadd.f32 %v1023, %v1024
    %v1026 = vrot.slane %v1025, 2
    %v1027 = vadd.f32 %v1025, %v1026
    %v1028 = vrot.slane %v1027, 1
    %v1029 = vadd.f32 %v1027, %v1028
    %v1030 = vpack.c.bf16 %v1022, %v1022
    %v1031 = vpack.c.bf16 %v1029, %v1029
    %s1032 = scalar_lea.vmem [#allocation3], 2
    %v1033 = vld [vmem:[%s1032] sm:$0x3]
    %v1036 = vunpack.c.l.b16 %v1030
    %v1037 = vunpack.c.l.b16 %v1031
    %v1038 = vsel %vm576, %v1037, %v1036
    %v1039 = vpack.c.b16 %v1038, %v1038
    %v1041 = vsel %vm444, %v1039, 0
    %1043 = vmatprep.subr.bf16.mxu0 0
    %1044 = vmatpush1.bf16.msra.mxu0 %v678
    %1045 = vmatprep.subr.bf16.mxu0 0
    %1046 = vmatpush1.bf16.msra.mxu0 %v679
    %1047 = vmatprep.subr.bf16.mxu0 0
    %1048 = vmatpush1.bf16.msra.mxu0 0
    %1049 = vmatprep.subr.bf16.mxu0 0
    %1050 = vmatpush1.bf16.msra.mxu0 0
    %1051 = vmatprep.subr.bf16.mxu0 0
    %1052 = vmatpush1.bf16.msra.mxu0 0
    %1053 = vmatprep.subr.bf16.mxu0 0
    %1054 = vmatpush1.bf16.msra.mxu0 0
    %1055 = vmatprep.subr.bf16.mxu0 0
    %1056 = vmatpush1.bf16.msra.mxu0 0
    %1057 = vmatprep.subr.bf16.mxu0 0
    %1058 = vmatpush1.bf16.msra.mxu0 0
    %1059 = vmatprep.subr.bf16.mxu0 0
    %1060 = vmatpush1.bf16.msra.mxu0 0
    %1061 = vmatprep.subr.bf16.mxu0 0
    %1062 = vmatpush1.bf16.msra.mxu0 0
    %1063 = vmatprep.subr.bf16.mxu0 0
    %1064 = vmatpush1.bf16.msra.mxu0 0
    %1065 = vmatprep.subr.bf16.mxu0 0
    %1066 = vmatpush1.bf16.msra.mxu0 0
    %1067 = vmatprep.subr.bf16.mxu0 0
    %1068 = vmatpush1.bf16.msra.mxu0 0
    %1069 = vmatprep.subr.bf16.mxu0 0
    %1070 = vmatpush1.bf16.msra.mxu0 0
    %1071 = vmatprep.subr.bf16.mxu0 0
    %1072 = vmatpush1.bf16.msra.mxu0 0
    %1073 = vmatprep.subr.bf16.mxu0 0
    %1074 = vmatpush1.bf16.msra.mxu0 0
    %1075 = vmatprep.mubr.bf16.mxu0 0
    %1076 = vmatmul.mubr.bf16.gmra.mrb[0].mxu0 %v1041
    %v1077 = vpop.f32.mrb[0].mxu0
    %v1078 = vadd.f32 %v1033, %v1077
    %v1079 = vpop.f32.mrb[0].mxu0
    %v1080 = vpop.f32.mrb[0].mxu0
    %v1081 = vpop.f32.mrb[0].mxu0
    %1082 = vdwg.mxu0
    %1083 = vrot.lane.b32.xlu0 %v879, 96
    %v1084 = vpop.permute.xlu0 %1083
    %v1086 = vadd.f32 %v1078, %v1084
    %v1087 = vxor.u32 %v1086, 2147483648
    %v1088 = vmul.f32 %v1087, 1.442695
    %v1089 = vpow.pop %v1088
    %v1090 = vadd.f32 %v1089, 1.0
    %v1091 = vrcp.pop %v1090
    %v1092 = vmul.f32 1.0, %v1091
    %v1093 = vadd.f32 %v879, %v741
    %1095 = vrot.lane.b32.xlu0 %v1093, 32
    %v1096 = vpop.permute.xlu0 %1095
    %v1098 = vmul.f32 %v1092, %v1096
    %1100 = vrot.lane.b32.xlu0 %v1098, 64
    %v1101 = vpop.permute.xlu0 %1100
    %v1103 = vadd.f32 %v1078, %v1101
    %v1104 = vtanh.pop %v1103
    %v1105 = vsub.f32 1.0, %v1092
    %1107 = vrot.lane.b32.xlu0 %v1104, 96
    %v1108 = vpop.permute.xlu0 %1107
    %v1110 = vmul.f32 %v1105, %v1108
    %v1111 = vmul.f32 %v1092, %v766
    %v1112 = vadd.f32 %v1110, %v1111
    %v1113 = vpack.c.bf16 %v1112, %v1112
    %1115 = vrot.lane.b32.xlu0 %v1113, 96
    %v1116 = vpop.permute.xlu0 %1115
    %v1118 = vsel %vm444, %v1116, 0
    %1120 = vmatprep.subr.bf16.mxu0 0
    %1121 = vmatpush1.bf16.msra.mxu0 %v785
    %1122 = vmatprep.subr.bf16.mxu0 0
    %1123 = vmatpush1.bf16.msra.mxu0 %v786
    %1124 = vmatprep.subr.bf16.mxu0 0
    %1125 = vmatpush1.bf16.msra.mxu0 0
    %1126 = vmatprep.subr.bf16.mxu0 0
    %1127 = vmatpush1.bf16.msra.mxu0 0
    %1128 = vmatprep.subr.bf16.mxu0 0
    %1129 = vmatpush1.bf16.msra.mxu0 0
    %1130 = vmatprep.subr.bf16.mxu0 0
    %1131 = vmatpush1.bf16.msra.mxu0 0
    %1132 = vmatprep.subr.bf16.mxu0 0
    %1133 = vmatpush1.bf16.msra.mxu0 0
    %1134 = vmatprep.subr.bf16.mxu0 0
    %1135 = vmatpush1.bf16.msra.mxu0 0
    %1136 = vmatprep.subr.bf16.mxu0 0
    %1137 = vmatpush1.bf16.msra.mxu0 0
    %1138 = vmatprep.subr.bf16.mxu0 0
    %1139 = vmatpush1.bf16.msra.mxu0 0
    %1140 = vmatprep.subr.bf16.mxu0 0
    %1141 = vmatpush1.bf16.msra.mxu0 0
    %1142 = vmatprep.subr.bf16.mxu0 0
    %1143 = vmatpush1.bf16.msra.mxu0 0
    %1144 = vmatprep.subr.bf16.mxu0 0
    %1145 = vmatpush1.bf16.msra.mxu0 0
    %1146 = vmatprep.subr.bf16.mxu0 0
    %1147 = vmatpush1.bf16.msra.mxu0 0
    %1148 = vmatprep.subr.bf16.mxu0 0
    %1149 = vmatpush1.bf16.msra.mxu0 0
    %1150 = vmatprep.subr.bf16.mxu0 0
    %1151 = vmatpush1.bf16.msra.mxu0 0
    %1152 = vmatprep.mubr.bf16.mxu0 0
    %1153 = vmatmul.mubr.bf16.gmra.mrb[0].mxu0 %v1118
    %v1154 = vpop.f32.mrb[0].mxu0
    %v1155 = vadd.f32 %v772, %v1154
    %v1156 = vpop.f32.mrb[0].mxu0
    %v1157 = vpop.f32.mrb[0].mxu0
    %v1158 = vpop.f32.mrb[0].mxu0
    %1159 = vdwg.mxu0
    %s1160 = scalar_lea.vmem [#allocation18], 2
    %1161 = vst [vmem:[%s1160] sm:$0x3] %v1155
    %v1162 = vlaneseq
    %v1163 = vshrl.u32 %v1162, 7
    %v1164 = vsub.s32 %v567, %v1163
    %v1165 = vrot.slane %v1007, %v1164
    %v1166 = vlaneseq
    %v1167 = vshrl.u32 %v1166, 7
    %v1168 = vsub.s32 %v567, %v1167
    %v1169 = vrot.slane %v1012, %v1168
    %v1170 = vsel %vm576, %v1169, %v1165
    %s1172 = scalar_lea.vmem [#allocation19], 2
    %1173 = vst.msk [vmem:[%s1172] sm:$0x3] %vm579, %v1170
    %1174 = vmatprep.subr.bf16.mxu0 0
    %1175 = vmatpush1.bf16.msra.mxu0 %v440
    %1176 = vmatprep.subr.bf16.mxu0 0
    %1177 = vmatpush1.bf16.msra.mxu0 %v441
    %1178 = vmatprep.subr.bf16.mxu0 0
    %1179 = vmatpush1.bf16.msra.mxu0 0
    %1180 = vmatprep.subr.bf16.mxu0 0
    %1181 = vmatpush1.bf16.msra.mxu0 0
    %1182 = vmatprep.subr.bf16.mxu0 0
    %1183 = vmatpush1.bf16.msra.mxu0 0
    %1184 = vmatprep.subr.bf16.mxu0 0
    %1185 = vmatpush1.bf16.msra.mxu0 0
    %1186 = vmatprep.subr.bf16.mxu0 0
    %1187 = vmatpush1.bf16.msra.mxu0 0
    %1188 = vmatprep.subr.bf16.mxu0 0
    %1189 = vmatpush1.bf16.msra.mxu0 0
    %1190 = vmatprep.subr.bf16.mxu0 0
    %1191 = vmatpush1.bf16.msra.mxu0 0
    %1192 = vmatprep.subr.bf16.mxu0 0
    %1193 = vmatpush1.bf16.msra.mxu0 0
    %1194 = vmatprep.subr.bf16.mxu0 0
    %1195 = vmatpush1.bf16.msra.mxu0 0
    %1196 = vmatprep.subr.bf16.mxu0 0
    %1197 = vmatpush1.bf16.msra.mxu0 0
    %1198 = vmatprep.subr.bf16.mxu0 0
    %1199 = vmatpush1.bf16.msra.mxu0 0
    %1200 = vmatprep.subr.bf16.mxu0 0
    %1201 = vmatpush1.bf16.msra.mxu0 0
    %1202 = vmatprep.subr.bf16.mxu0 0
    %1203 = vmatpush1.bf16.msra.mxu0 0
    %1204 = vmatprep.subr.bf16.mxu0 0
    %1205 = vmatpush1.bf16.msra.mxu0 0
    %1206 = vmatprep.mubr.bf16.mxu0 0
    %1207 = vmatmul.mubr.bf16.gmra.mrb[0].mxu0 %v1118
    %v1208 = vpop.f32.mrb[0].mxu0
    %v1209 = vadd.f32 0.0, %v1208
    %v1210 = vpop.f32.mrb[0].mxu0
    %v1211 = vpop.f32.mrb[0].mxu0
    %v1212 = vpop.f32.mrb[0].mxu0
    %1213 = vdwg.mxu0
    %v1216 = vunpack.c.l.s4 1966171168
    %v1217 = vunpack.c.0.s8 %v1216
    %v1218 = vlaneseq
    %v1219 = vshrl.u32 %v1218, 7
    %v1220 = vsub.s32 %v1217, %v1219
    %v1221 = vrot.slane %v1209, %v1220
    %v1222 = vcombine.high %v1221, %v1221
    %v1224 = vunpack.c.l.s4 1966171168
    %v1225 = vunpack.c.0.s8 %v1224
    %v1226 = vlaneseq
    %v1227 = vshrl.u32 %v1226, 7
    %v1228 = vsub.s32 %v1225, %v1227
    %v1229 = vrot.slane %v1221, %v1228
    %v1231 = vunpack.c.l.s4 1966171168
    %v1232 = vunpack.c.0.s8 %v1231
    %v1233 = vlaneseq
    %v1234 = vshrl.u32 %v1233, 7
    %v1235 = vsub.s32 %v1232, %v1234
    %v1236 = vrot.slane %v1222, %v1235
    %v1237 = vlaneseq
    %v1238 = vshrl.u32 %v1237, 7
    %v1239 = vsub.s32 0, %v1238
    %v1240 = vrot.slane %v1229, %v1239
    %v1241 = vlaneseq
    %v1242 = vshrl.u32 %v1241, 7
    %v1243 = vsub.s32 0, %v1242
    %v1244 = vrot.slane %v1236, %v1243
    %v1247 = vadd.f32 %v1240, %v412
    %v1248 = vadd.f32 %v1244, %v413
    %v1249 = vtanh.pop %v1247
    %v1250 = vtanh.pop %v1248
    %v1251 = vmul.f32 %v1249, %v529
    %v1252 = vmul.f32 %v1250, %v529
    %v1253 = vsel %vm444, %v1251, 0.0
    %1254 = vadd.xlane.f32.xlu0 %v1253
    %v1255 = vpop.xlane.xlu0 %1254
    %v1256 = vsel %vm444, %v1252, 0.0
    %1257 = vadd.xlane.f32.xlu0 %v1256
    %v1258 = vpop.xlane.xlu0 %1257
    %v1259 = vadd.f32 %v1255, %v546
    %v1260 = vadd.f32 %v1258, %v553
    %1263 = vset.pattern.permute.xlu0 0
    %1264 = vperm.xlu0 %1263, %v1259
    %v1265 = vpop.permute.xlu0 %1264
    %1266 = vset.pattern.permute.xlu0 0
    %1267 = vperm.xlu0 %1266, %v1260
    %v1268 = vpop.permute.xlu0 %1267
    %v1269 = vlaneseq
    %v1270 = vshrl.u32 %v1269, 7
    %v1271 = vsub.s32 %v567, %v1270
    %v1272 = vrot.slane %v1265, %v1271
    %v1273 = vlaneseq
    %v1274 = vshrl.u32 %v1273, 7
    %v1275 = vsub.s32 %v567, %v1274
    %v1276 = vrot.slane %v1268, %v1275
    %v1277 = vsel %vm576, %v1276, %v1272
    %v1279 = vsel %vm579, %v1277, -inf
    %1280 = vmax.xlane.f32.xlu0 %v1279
    %v1281 = vpop.xlane.xlu0 %1280
    %v1283 = vlaneseq
    %v1284 = vshrl.u32 %v1283, 7
    %v1285 = vsub.s32 0, %v1284
    %v1286 = vrot.slane %v1281, %v1285
    %v1287 = vlaneseq
    %v1288 = vshrl.u32 %v1287, 7
    %v1289 = vsub.s32 1, %v1288
    %v1290 = vrot.slane %v1281, %v1289
    %v1293 = vsub.f32 %v1259, %v1286
    %v1294 = vsub.f32 %v1260, %v1290
    %v1295 = vmul.f32 %v1293, 1.442695
    %v1296 = vpow.pop %v1295
    %v1297 = vmul.f32 %v1294, 1.442695
    %v1298 = vpow.pop %v1297
    %1301 = vset.pattern.permute.xlu0 0
    %1302 = vperm.xlu0 %1301, %v1296
    %v1303 = vpop.permute.xlu0 %1302
    %1304 = vset.pattern.permute.xlu0 0
    %1305 = vperm.xlu0 %1304, %v1298
    %v1306 = vpop.permute.xlu0 %1305
    %v1307 = vlaneseq
    %v1308 = vshrl.u32 %v1307, 7
    %v1309 = vsub.s32 %v567, %v1308
    %v1310 = vrot.slane %v1303, %v1309
    %v1311 = vlaneseq
    %v1312 = vshrl.u32 %v1311, 7
    %v1313 = vsub.s32 %v567, %v1312
    %v1314 = vrot.slane %v1306, %v1313
    %v1315 = vsel %vm576, %v1314, %v1310
    %v1317 = vsel %vm579, %v1315, 0.0
    %1318 = vadd.xlane.f32.xlu0 %v1317
    %v1319 = vpop.xlane.xlu0 %1318
    %v1320 = vrcp.pop %v1319
    %v1322 = vlaneseq
    %v1323 = vshrl.u32 %v1322, 7
    %v1324 = vsub.s32 0, %v1323
    %v1325 = vrot.slane %v1320, %v1324
    %v1326 = vlaneseq
    %v1327 = vshrl.u32 %v1326, 7
    %v1328 = vsub.s32 1, %v1327
    %v1329 = vrot.slane %v1320, %v1328
    %v1332 = vmul.f32 %v1296, %v1325
    %v1333 = vmul.f32 %v1298, %v1329
    %1335 = vset.pattern.permute.xlu0 0
    %1336 = vperm.xlu0 %1335, %v1332
    %v1337 = vpop.permute.xlu0 %1336
    %1340 = vset.pattern.permute.xlu0 0
    %1341 = vperm.xlu0 %1340, %v1333
    %v1342 = vpop.permute.xlu0 %1341
    %v1344 = vmul.f32 %v1337, %v410
    %v1345 = vmul.f32 %v1342, %v411
    %v1346 = vsel %vm444, %v1344, 0.0
    %v1347 = vrot.slane %v1346, 4
    %v1348 = vadd.f32 %v1346, %v1347
    %v1349 = vrot.slane %v1348, 2
    %v1350 = vadd.f32 %v1348, %v1349
    %v1351 = vrot.slane %v1350, 1
    %v1352 = vadd.f32 %v1350, %v1351
    %v1353 = vsel %vm444, %v1345, 0.0
    %v1354 = vrot.slane %v1353, 4
    %v1355 = vadd.f32 %v1353, %v1354
    %v1356 = vrot.slane %v1355, 2
    %v1357 = vadd.f32 %v1355, %v1356
    %v1358 = vrot.slane %v1357, 1
    %v1359 = vadd.f32 %v1357, %v1358
    %v1360 = vpack.c.bf16 %v1352, %v1352
    %v1361 = vpack.c.bf16 %v1359, %v1359
    %s1362 = scalar_lea.vmem [#allocation3], 4
    %v1363 = vld [vmem:[%s1362] sm:$0x3]
    %v1366 = vunpack.c.l.b16 %v1360
    %v1367 = vunpack.c.l.b16 %v1361
    %v1368 = vsel %vm576, %v1367, %v1366
    %v1369 = vpack.c.b16 %v1368, %v1368
    %v1371 = vsel %vm444, %v1369, 0
    %1373 = vmatprep.subr.bf16.mxu0 0
    %1374 = vmatpush1.bf16.msra.mxu0 %v678
    %1375 = vmatprep.subr.bf16.mxu0 0
    %1376 = vmatpush1.bf16.msra.mxu0 %v679
    %1377 = vmatprep.subr.bf16.mxu0 0
    %1378 = vmatpush1.bf16.msra.mxu0 0
    %1379 = vmatprep.subr.bf16.mxu0 0
    %1380 = vmatpush1.bf16.msra.mxu0 0
    %1381 = vmatprep.subr.bf16.mxu0 0
    %1382 = vmatpush1.bf16.msra.mxu0 0
    %1383 = vmatprep.subr.bf16.mxu0 0
    %1384 = vmatpush1.bf16.msra.mxu0 0
    %1385 = vmatprep.subr.bf16.mxu0 0
    %1386 = vmatpush1.bf16.msra.mxu0 0
    %1387 = vmatprep.subr.bf16.mxu0 0
    %1388 = vmatpush1.bf16.msra.mxu0 0
    %1389 = vmatprep.subr.bf16.mxu0 0
    %1390 = vmatpush1.bf16.msra.mxu0 0
    %1391 = vmatprep.subr.bf16.mxu0 0
    %1392 = vmatpush1.bf16.msra.mxu0 0
    %1393 = vmatprep.subr.bf16.mxu0 0
    %1394 = vmatpush1.bf16.msra.mxu0 0
    %1395 = vmatprep.subr.bf16.mxu0 0
    %1396 = vmatpush1.bf16.msra.mxu0 0
    %1397 = vmatprep.subr.bf16.mxu0 0
    %1398 = vmatpush1.bf16.msra.mxu0 0
    %1399 = vmatprep.subr.bf16.mxu0 0
    %1400 = vmatpush1.bf16.msra.mxu0 0
    %1401 = vmatprep.subr.bf16.mxu0 0
    %1402 = vmatpush1.bf16.msra.mxu0 0
    %1403 = vmatprep.subr.bf16.mxu0 0
    %1404 = vmatpush1.bf16.msra.mxu0 0
    %1405 = vmatprep.mubr.bf16.mxu0 0
    %1406 = vmatmul.mubr.bf16.gmra.mrb[0].mxu0 %v1371
    %v1407 = vpop.f32.mrb[0].mxu0
    %v1408 = vadd.f32 %v1363, %v1407
    %v1409 = vpop.f32.mrb[0].mxu0
    %v1410 = vpop.f32.mrb[0].mxu0
    %v1411 = vpop.f32.mrb[0].mxu0
    %1412 = vdwg.mxu0
    %1413 = vrot.lane.b32.xlu0 %v1209, 96
    %v1414 = vpop.permute.xlu0 %1413
    %v1416 = vadd.f32 %v1408, %v1414
    %v1417 = vxor.u32 %v1416, 2147483648
    %v1418 = vmul.f32 %v1417, 1.442695
    %v1419 = vpow.pop %v1418
    %v1420 = vadd.f32 %v1419, 1.0
    %v1421 = vrcp.pop %v1420
    %v1422 = vmul.f32 1.0, %v1421
    %v1423 = vadd.f32 %v1209, %v741
    %1425 = vrot.lane.b32.xlu0 %v1423, 32
    %v1426 = vpop.permute.xlu0 %1425
    %v1428 = vmul.f32 %v1422, %v1426
    %1430 = vrot.lane.b32.xlu0 %v1428, 64
    %v1431 = vpop.permute.xlu0 %1430
    %v1433 = vadd.f32 %v1408, %v1431
    %v1434 = vtanh.pop %v1433
    %v1435 = vsub.f32 1.0, %v1422
    %1437 = vrot.lane.b32.xlu0 %v1434, 96
    %v1438 = vpop.permute.xlu0 %1437
    %v1440 = vmul.f32 %v1435, %v1438
    %v1441 = vmul.f32 %v1422, %v1112
    %v1442 = vadd.f32 %v1440, %v1441
    %v1443 = vpack.c.bf16 %v1442, %v1442
    %1445 = vrot.lane.b32.xlu0 %v1443, 96
    %v1446 = vpop.permute.xlu0 %1445
    %v1448 = vsel %vm444, %v1446, 0
    %1450 = vmatprep.subr.bf16.mxu0 0
    %1451 = vmatpush1.bf16.msra.mxu0 %v785
    %1452 = vmatprep.subr.bf16.mxu0 0
    %1453 = vmatpush1.bf16.msra.mxu0 %v786
    %1454 = vmatprep.subr.bf16.mxu0 0
    %1455 = vmatpush1.bf16.msra.mxu0 0
    %1456 = vmatprep.subr.bf16.mxu0 0
    %1457 = vmatpush1.bf16.msra.mxu0 0
    %1458 = vmatprep.subr.bf16.mxu0 0
    %1459 = vmatpush1.bf16.msra.mxu0 0
    %1460 = vmatprep.subr.bf16.mxu0 0
    %1461 = vmatpush1.bf16.msra.mxu0 0
    %1462 = vmatprep.subr.bf16.mxu0 0
    %1463 = vmatpush1.bf16.msra.mxu0 0
    %1464 = vmatprep.subr.bf16.mxu0 0
    %1465 = vmatpush1.bf16.msra.mxu0 0
    %1466 = vmatprep.subr.bf16.mxu0 0
    %1467 = vmatpush1.bf16.msra.mxu0 0
    %1468 = vmatprep.subr.bf16.mxu0 0
    %1469 = vmatpush1.bf16.msra.mxu0 0
    %1470 = vmatprep.subr.bf16.mxu0 0
    %1471 = vmatpush1.bf16.msra.mxu0 0
    %1472 = vmatprep.subr.bf16.mxu0 0
    %1473 = vmatpush1.bf16.msra.mxu0 0
    %1474 = vmatprep.subr.bf16.mxu0 0
    %1475 = vmatpush1.bf16.msra.mxu0 0
    %1476 = vmatprep.subr.bf16.mxu0 0
    %1477 = vmatpush1.bf16.msra.mxu0 0
    %1478 = vmatprep.subr.bf16.mxu0 0
    %1479 = vmatpush1.bf16.msra.mxu0 0
    %1480 = vmatprep.subr.bf16.mxu0 0
    %1481 = vmatpush1.bf16.msra.mxu0 0
    %1482 = vmatprep.mubr.bf16.mxu0 0
    %1483 = vmatmul.mubr.bf16.gmra.mrb[0].mxu0 %v1448
    %v1484 = vpop.f32.mrb[0].mxu0
    %v1485 = vadd.f32 %v772, %v1484
    %v1486 = vpop.f32.mrb[0].mxu0
    %v1487 = vpop.f32.mrb[0].mxu0
    %v1488 = vpop.f32.mrb[0].mxu0
    %1489 = vdwg.mxu0
    %s1490 = scalar_lea.vmem [#allocation18], 4
    %1491 = vst [vmem:[%s1490] sm:$0x3] %v1485
    %v1492 = vlaneseq
    %v1493 = vshrl.u32 %v1492, 7
    %v1494 = vsub.s32 %v567, %v1493
    %v1495 = vrot.slane %v1337, %v1494
    %v1496 = vlaneseq
    %v1497 = vshrl.u32 %v1496, 7
    %v1498 = vsub.s32 %v567, %v1497
    %v1499 = vrot.slane %v1342, %v1498
    %v1500 = vsel %vm576, %v1499, %v1495
    %s1502 = scalar_lea.vmem [#allocation19], 4
    %1503 = vst.msk [vmem:[%s1502] sm:$0x3] %vm579, %v1500
    %1504 = vmatprep.subr.bf16.mxu0 0
    %1505 = vmatpush1.bf16.msra.mxu0 %v440
    %1506 = vmatprep.subr.bf16.mxu0 0
    %1507 = vmatpush1.bf16.msra.mxu0 %v441
    %1508 = vmatprep.subr.bf16.mxu0 0
    %1509 = vmatpush1.bf16.msra.mxu0 0
    %1510 = vmatprep.subr.bf16.mxu0 0
    %1511 = vmatpush1.bf16.msra.mxu0 0
    %1512 = vmatprep.subr.bf16.mxu0 0
    %1513 = vmatpush1.bf16.msra.mxu0 0
    %1514 = vmatprep.subr.bf16.mxu0 0
    %1515 = vmatpush1.bf16.msra.mxu0 0
    %1516 = vmatprep.subr.bf16.mxu0 0
    %1517 = vmatpush1.bf16.msra.mxu0 0
    %1518 = vmatprep.subr.bf16.mxu0 0
    %1519 = vmatpush1.bf16.msra.mxu0 0
    %1520 = vmatprep.subr.bf16.mxu0 0
    %1521 = vmatpush1.bf16.msra.mxu0 0
    %1522 = vmatprep.subr.bf16.mxu0 0
    %1523 = vmatpush1.bf16.msra.mxu0 0
    %1524 = vmatprep.subr.bf16.mxu0 0
    %1525 = vmatpush1.bf16.msra.mxu0 0
    %1526 = vmatprep.subr.bf16.mxu0 0
    %1527 = vmatpush1.bf16.msra.mxu0 0
    %1528 = vmatprep.subr.bf16.mxu0 0
    %1529 = vmatpush1.bf16.msra.mxu0 0
    %1530 = vmatprep.subr.bf16.mxu0 0
    %1531 = vmatpush1.bf16.msra.mxu0 0
    %1532 = vmatprep.subr.bf16.mxu0 0
    %1533 = vmatpush1.bf16.msra.mxu0 0
    %1534 = vmatprep.subr.bf16.mxu0 0
    %1535 = vmatpush1.bf16.msra.mxu0 0
    %1536 = vmatprep.mubr.bf16.mxu0 0
    %1537 = vmatmul.mubr.bf16.gmra.mrb[0].mxu0 %v1448
    %v1538 = vpop.f32.mrb[0].mxu0
    %v1539 = vadd.f32 0.0, %v1538
    %v1540 = vpop.f32.mrb[0].mxu0
    %v1541 = vpop.f32.mrb[0].mxu0
    %v1542 = vpop.f32.mrb[0].mxu0
    %1543 = vdwg.mxu0
    %v1546 = vunpack.c.l.s4 1966171168
    %v1547 = vunpack.c.0.s8 %v1546
    %v1548 = vlaneseq
    %v1549 = vshrl.u32 %v1548, 7
    %v1550 = vsub.s32 %v1547, %v1549
    %v1551 = vrot.slane %v1539, %v1550
    %v1552 = vcombine.high %v1551, %v1551
    %v1554 = vunpack.c.l.s4 1966171168
    %v1555 = vunpack.c.0.s8 %v1554
    %v1556 = vlaneseq
    %v1557 = vshrl.u32 %v1556, 7
    %v1558 = vsub.s32 %v1555, %v1557
    %v1559 = vrot.slane %v1551, %v1558
    %v1561 = vunpack.c.l.s4 1966171168
    %v1562 = vunpack.c.0.s8 %v1561
    %v1563 = vlaneseq
    %v1564 = vshrl.u32 %v1563, 7
    %v1565 = vsub.s32 %v1562, %v1564
    %v1566 = vrot.slane %v1552, %v1565
    %v1567 = vlaneseq
    %v1568 = vshrl.u32 %v1567, 7
    %v1569 = vsub.s32 0, %v1568
    %v1570 = vrot.slane %v1559, %v1569
    %v1571 = vlaneseq
    %v1572 = vshrl.u32 %v1571, 7
    %v1573 = vsub.s32 0, %v1572
    %v1574 = vrot.slane %v1566, %v1573
    %v1577 = vadd.f32 %v1570, %v412
    %v1578 = vadd.f32 %v1574, %v413
    %v1579 = vtanh.pop %v1577
    %v1580 = vtanh.pop %v1578
    %v1581 = vmul.f32 %v1579, %v529
    %v1582 = vmul.f32 %v1580, %v529
    %v1583 = vsel %vm444, %v1581, 0.0
    %1584 = vadd.xlane.f32.xlu0 %v1583
    %v1585 = vpop.xlane.xlu0 %1584
    %v1586 = vsel %vm444, %v1582, 0.0
    %1587 = vadd.xlane.f32.xlu0 %v1586
    %v1588 = vpop.xlane.xlu0 %1587
    %v1589 = vadd.f32 %v1585, %v546
    %v1590 = vadd.f32 %v1588, %v553
    %1593 = vset.pattern.permute.xlu0 0
    %1594 = vperm.xlu0 %1593, %v1589
    %v1595 = vpop.permute.xlu0 %1594
    %1596 = vset.pattern.permute.xlu0 0
    %1597 = vperm.xlu0 %1596, %v1590
    %v1598 = vpop.permute.xlu0 %1597
    %v1599 = vlaneseq
    %v1600 = vshrl.u32 %v1599, 7
    %v1601 = vsub.s32 %v567, %v1600
    %v1602 = vrot.slane %v1595, %v1601
    %v1603 = vlaneseq
    %v1604 = vshrl.u32 %v1603, 7
    %v1605 = vsub.s32 %v567, %v1604
    %v1606 = vrot.slane %v1598, %v1605
    %v1607 = vsel %vm576, %v1606, %v1602
    %v1609 = vsel %vm579, %v1607, -inf
    %1610 = vmax.xlane.f32.xlu0 %v1609
    %v1611 = vpop.xlane.xlu0 %1610
    %v1613 = vlaneseq
    %v1614 = vshrl.u32 %v1613, 7
    %v1615 = vsub.s32 0, %v1614
    %v1616 = vrot.slane %v1611, %v1615
    %v1617 = vlaneseq
    %v1618 = vshrl.u32 %v1617, 7
    %v1619 = vsub.s32 1, %v1618
    %v1620 = vrot.slane %v1611, %v1619
    %v1623 = vsub.f32 %v1589, %v1616
    %v1624 = vsub.f32 %v1590, %v1620
    %v1625 = vmul.f32 %v1623, 1.442695
    %v1626 = vpow.pop %v1625
    %v1627 = vmul.f32 %v1624, 1.442695
    %v1628 = vpow.pop %v1627
    %1631 = vset.pattern.permute.xlu0 0
    %1632 = vperm.xlu0 %1631, %v1626
    %v1633 = vpop.permute.xlu0 %1632
    %1634 = vset.pattern.permute.xlu0 0
    %1635 = vperm.xlu0 %1634, %v1628
    %v1636 = vpop.permute.xlu0 %1635
    %v1637 = vlaneseq
    %v1638 = vshrl.u32 %v1637, 7
    %v1639 = vsub.s32 %v567, %v1638
    %v1640 = vrot.slane %v1633, %v1639
    %v1641 = vlaneseq
    %v1642 = vshrl.u32 %v1641, 7
    %v1643 = vsub.s32 %v567, %v1642
    %v1644 = vrot.slane %v1636, %v1643
    %v1645 = vsel %vm576, %v1644, %v1640
    %v1647 = vsel %vm579, %v1645, 0.0
    %1648 = vadd.xlane.f32.xlu0 %v1647
    %v1649 = vpop.xlane.xlu0 %1648
    %v1650 = vrcp.pop %v1649
    %v1652 = vlaneseq
    %v1653 = vshrl.u32 %v1652, 7
    %v1654 = vsub.s32 0, %v1653
    %v1655 = vrot.slane %v1650, %v1654
    %v1656 = vlaneseq
    %v1657 = vshrl.u32 %v1656, 7
    %v1658 = vsub.s32 1, %v1657
    %v1659 = vrot.slane %v1650, %v1658
    %v1662 = vmul.f32 %v1626, %v1655
    %v1663 = vmul.f32 %v1628, %v1659
    %1665 = vset.pattern.permute.xlu0 0
    %1666 = vperm.xlu0 %1665, %v1662
    %v1667 = vpop.permute.xlu0 %1666
    %1670 = vset.pattern.permute.xlu0 0
    %1671 = vperm.xlu0 %1670, %v1663
    %v1672 = vpop.permute.xlu0 %1671
    %v1674 = vmul.f32 %v1667, %v410
    %v1675 = vmul.f32 %v1672, %v411
    %v1676 = vsel %vm444, %v1674, 0.0
    %v1677 = vrot.slane %v1676, 4
    %v1678 = vadd.f32 %v1676, %v1677
    %v1679 = vrot.slane %v1678, 2
    %v1680 = vadd.f32 %v1678, %v1679
    %v1681 = vrot.slane %v1680, 1
    %v1682 = vadd.f32 %v1680, %v1681
    %v1683 = vsel %vm444, %v1675, 0.0
    %v1684 = vrot.slane %v1683, 4
    %v1685 = vadd.f32 %v1683, %v1684
    %v1686 = vrot.slane %v1685, 2
    %v1687 = vadd.f32 %v1685, %v1686
    %v1688 = vrot.slane %v1687, 1
    %v1689 = vadd.f32 %v1687, %v1688
    %v1690 = vpack.c.bf16 %v1682, %v1682
    %v1691 = vpack.c.bf16 %v1689, %v1689
    %s1692 = scalar_lea.vmem [#allocation3], 6
    %v1693 = vld [vmem:[%s1692] sm:$0x3]
    %v1696 = vunpack.c.l.b16 %v1690
    %v1697 = vunpack.c.l.b16 %v1691
    %v1698 = vsel %vm576, %v1697, %v1696
    %v1699 = vpack.c.b16 %v1698, %v1698
    %v1701 = vsel %vm444, %v1699, 0
    %1703 = vmatprep.subr.bf16.mxu0 0
    %1704 = vmatpush1.bf16.msra.mxu0 %v678
    %1705 = vmatprep.subr.bf16.mxu0 0
    %1706 = vmatpush1.bf16.msra.mxu0 %v679
    %1707 = vmatprep.subr.bf16.mxu0 0
    %1708 = vmatpush1.bf16.msra.mxu0 0
    %1709 = vmatprep.subr.bf16.mxu0 0
    %1710 = vmatpush1.bf16.msra.mxu0 0
    %1711 = vmatprep.subr.bf16.mxu0 0
    %1712 = vmatpush1.bf16.msra.mxu0 0
    %1713 = vmatprep.subr.bf16.mxu0 0
    %1714 = vmatpush1.bf16.msra.mxu0 0
    %1715 = vmatprep.subr.bf16.mxu0 0
    %1716 = vmatpush1.bf16.msra.mxu0 0
    %1717 = vmatprep.subr.bf16.mxu0 0
    %1718 = vmatpush1.bf16.msra.mxu0 0
    %1719 = vmatprep.subr.bf16.mxu0 0
    %1720 = vmatpush1.bf16.msra.mxu0 0
    %1721 = vmatprep.subr.bf16.mxu0 0
    %1722 = vmatpush1.bf16.msra.mxu0 0
    %1723 = vmatprep.subr.bf16.mxu0 0
    %1724 = vmatpush1.bf16.msra.mxu0 0
    %1725 = vmatprep.subr.bf16.mxu0 0
    %1726 = vmatpush1.bf16.msra.mxu0 0
    %1727 = vmatprep.subr.bf16.mxu0 0
    %1728 = vmatpush1.bf16.msra.mxu0 0
    %1729 = vmatprep.subr.bf16.mxu0 0
    %1730 = vmatpush1.bf16.msra.mxu0 0
    %1731 = vmatprep.subr.bf16.mxu0 0
    %1732 = vmatpush1.bf16.msra.mxu0 0
    %1733 = vmatprep.subr.bf16.mxu0 0
    %1734 = vmatpush1.bf16.msra.mxu0 0
    %1735 = vmatprep.mubr.bf16.mxu0 0
    %1736 = vmatmul.mubr.bf16.gmra.mrb[0].mxu0 %v1701
    %v1737 = vpop.f32.mrb[0].mxu0
    %v1738 = vadd.f32 %v1693, %v1737
    %v1739 = vpop.f32.mrb[0].mxu0
    %v1740 = vpop.f32.mrb[0].mxu0
    %v1741 = vpop.f32.mrb[0].mxu0
    %1742 = vdwg.mxu0
    %1743 = vrot.lane.b32.xlu0 %v1539, 96
    %v1744 = vpop.permute.xlu0 %1743
    %v1746 = vadd.f32 %v1738, %v1744
    %v1747 = vxor.u32 %v1746, 2147483648
    %v1748 = vmul.f32 %v1747, 1.442695
    %v1749 = vpow.pop %v1748
    %v1750 = vadd.f32 %v1749, 1.0
    %v1751 = vrcp.pop %v1750
    %v1752 = vmul.f32 1.0, %v1751
    %v1753 = vadd.f32 %v1539, %v741
    %1755 = vrot.lane.b32.xlu0 %v1753, 32
    %v1756 = vpop.permute.xlu0 %1755
    %v1758 = vmul.f32 %v1752, %v1756
    %1760 = vrot.lane.b32.xlu0 %v1758, 64
    %v1761 = vpop.permute.xlu0 %1760
    %v1763 = vadd.f32 %v1738, %v1761
    %v1764 = vtanh.pop %v1763
    %v1765 = vsub.f32 1.0, %v1752
    %1767 = vrot.lane.b32.xlu0 %v1764, 96
    %v1768 = vpop.permute.xlu0 %1767
    %v1770 = vmul.f32 %v1765, %v1768
    %v1771 = vmul.f32 %v1752, %v1442
    %v1772 = vadd.f32 %v1770, %v1771
    %v1773 = vpack.c.bf16 %v1772, %v1772
    %1775 = vrot.lane.b32.xlu0 %v1773, 96
    %v1776 = vpop.permute.xlu0 %1775
    %v1778 = vsel %vm444, %v1776, 0
    %1780 = vmatprep.subr.bf16.mxu0 0
    %1781 = vmatpush1.bf16.msra.mxu0 %v785
    %1782 = vmatprep.subr.bf16.mxu0 0
    %1783 = vmatpush1.bf16.msra.mxu0 %v786
    %1784 = vmatprep.subr.bf16.mxu0 0
    %1785 = vmatpush1.bf16.msra.mxu0 0
    %1786 = vmatprep.subr.bf16.mxu0 0
    %1787 = vmatpush1.bf16.msra.mxu0 0
    %1788 = vmatprep.subr.bf16.mxu0 0
    %1789 = vmatpush1.bf16.msra.mxu0 0
    %1790 = vmatprep.subr.bf16.mxu0 0
    %1791 = vmatpush1.bf16.msra.mxu0 0
    %1792 = vmatprep.subr.bf16.mxu0 0
    %1793 = vmatpush1.bf16.msra.mxu0 0
    %1794 = vmatprep.subr.bf16.mxu0 0
    %1795 = vmatpush1.bf16.msra.mxu0 0
    %1796 = vmatprep.subr.bf16.mxu0 0
    %1797 = vmatpush1.bf16.msra.mxu0 0
    %1798 = vmatprep.subr.bf16.mxu0 0
    %1799 = vmatpush1.bf16.msra.mxu0 0
    %1800 = vmatprep.subr.bf16.mxu0 0
    %1801 = vmatpush1.bf16.msra.mxu0 0
    %1802 = vmatprep.subr.bf16.mxu0 0
    %1803 = vmatpush1.bf16.msra.mxu0 0
    %1804 = vmatprep.subr.bf16.mxu0 0
    %1805 = vmatpush1.bf16.msra.mxu0 0
    %1806 = vmatprep.subr.bf16.mxu0 0
    %1807 = vmatpush1.bf16.msra.mxu0 0
    %1808 = vmatprep.subr.bf16.mxu0 0
    %1809 = vmatpush1.bf16.msra.mxu0 0
    %1810 = vmatprep.subr.bf16.mxu0 0
    %1811 = vmatpush1.bf16.msra.mxu0 0
    %1812 = vmatprep.mubr.bf16.mxu0 0
    %1813 = vmatmul.mubr.bf16.gmra.mrb[0].mxu0 %v1778
    %v1814 = vpop.f32.mrb[0].mxu0
    %v1815 = vadd.f32 %v772, %v1814
    %v1816 = vpop.f32.mrb[0].mxu0
    %v1817 = vpop.f32.mrb[0].mxu0
    %v1818 = vpop.f32.mrb[0].mxu0
    %1819 = vdwg.mxu0
    %s1820 = scalar_lea.vmem [#allocation18], 6
    %1821 = vst [vmem:[%s1820] sm:$0x3] %v1815
    %v1822 = vlaneseq
    %v1823 = vshrl.u32 %v1822, 7
    %v1824 = vsub.s32 %v567, %v1823
    %v1825 = vrot.slane %v1667, %v1824
    %v1826 = vlaneseq
    %v1827 = vshrl.u32 %v1826, 7
    %v1828 = vsub.s32 %v567, %v1827
    %v1829 = vrot.slane %v1672, %v1828
    %v1830 = vsel %vm576, %v1829, %v1825
    %s1832 = scalar_lea.vmem [#allocation19], 6
    %1833 = vst.msk [vmem:[%s1832] sm:$0x3] %vm579, %v1830
    %1834 = vmatprep.subr.bf16.mxu0 0
    %1835 = vmatpush1.bf16.msra.mxu0 %v440
    %1836 = vmatprep.subr.bf16.mxu0 0
    %1837 = vmatpush1.bf16.msra.mxu0 %v441
    %1838 = vmatprep.subr.bf16.mxu0 0
    %1839 = vmatpush1.bf16.msra.mxu0 0
    %1840 = vmatprep.subr.bf16.mxu0 0
    %1841 = vmatpush1.bf16.msra.mxu0 0
    %1842 = vmatprep.subr.bf16.mxu0 0
    %1843 = vmatpush1.bf16.msra.mxu0 0
    %1844 = vmatprep.subr.bf16.mxu0 0
    %1845 = vmatpush1.bf16.msra.mxu0 0
    %1846 = vmatprep.subr.bf16.mxu0 0
    %1847 = vmatpush1.bf16.msra.mxu0 0
    %1848 = vmatprep.subr.bf16.mxu0 0
    %1849 = vmatpush1.bf16.msra.mxu0 0
    %1850 = vmatprep.subr.bf16.mxu0 0
    %1851 = vmatpush1.bf16.msra.mxu0 0
    %1852 = vmatprep.subr.bf16.mxu0 0
    %1853 = vmatpush1.bf16.msra.mxu0 0
    %1854 = vmatprep.subr.bf16.mxu0 0
    %1855 = vmatpush1.bf16.msra.mxu0 0
    %1856 = vmatprep.subr.bf16.mxu0 0
    %1857 = vmatpush1.bf16.msra.mxu0 0
    %1858 = vmatprep.subr.bf16.mxu0 0
    %1859 = vmatpush1.bf16.msra.mxu0 0
    %1860 = vmatprep.subr.bf16.mxu0 0
    %1861 = vmatpush1.bf16.msra.mxu0 0
    %1862 = vmatprep.subr.bf16.mxu0 0
    %1863 = vmatpush1.bf16.msra.mxu0 0
    %1864 = vmatprep.subr.bf16.mxu0 0
    %1865 = vmatpush1.bf16.msra.mxu0 0
    %1866 = vmatprep.mubr.bf16.mxu0 0
    %1867 = vmatmul.mubr.bf16.gmra.mrb[0].mxu0 %v1778
    %v1868 = vpop.f32.mrb[0].mxu0
    %v1869 = vadd.f32 0.0, %v1868
    %v1870 = vpop.f32.mrb[0].mxu0
    %v1871 = vpop.f32.mrb[0].mxu0
    %v1872 = vpop.f32.mrb[0].mxu0
    %1873 = vdwg.mxu0
    %v1876 = vunpack.c.l.s4 1966171168
    %v1877 = vunpack.c.0.s8 %v1876
    %v1878 = vlaneseq
    %v1879 = vshrl.u32 %v1878, 7
    %v1880 = vsub.s32 %v1877, %v1879
    %v1881 = vrot.slane %v1869, %v1880
    %v1882 = vcombine.high %v1881, %v1881
    %v1884 = vunpack.c.l.s4 1966171168
    %v1885 = vunpack.c.0.s8 %v1884
    %v1886 = vlaneseq
    %v1887 = vshrl.u32 %v1886, 7
    %v1888 = vsub.s32 %v1885, %v1887
    %v1889 = vrot.slane %v1881, %v1888
    %v1891 = vunpack.c.l.s4 1966171168
    %v1892 = vunpack.c.0.s8 %v1891
    %v1893 = vlaneseq
    %v1894 = vshrl.u32 %v1893, 7
    %v1895 = vsub.s32 %v1892, %v1894
    %v1896 = vrot.slane %v1882, %v1895
    %v1897 = vlaneseq
    %v1898 = vshrl.u32 %v1897, 7
    %v1899 = vsub.s32 0, %v1898
    %v1900 = vrot.slane %v1889, %v1899
    %v1901 = vlaneseq
    %v1902 = vshrl.u32 %v1901, 7
    %v1903 = vsub.s32 0, %v1902
    %v1904 = vrot.slane %v1896, %v1903
    %v1907 = vadd.f32 %v1900, %v412
    %v1908 = vadd.f32 %v1904, %v413
    %v1909 = vtanh.pop %v1907
    %v1910 = vtanh.pop %v1908
    %v1911 = vmul.f32 %v1909, %v529
    %v1912 = vmul.f32 %v1910, %v529
    %v1913 = vsel %vm444, %v1911, 0.0
    %1914 = vadd.xlane.f32.xlu0 %v1913
    %v1915 = vpop.xlane.xlu0 %1914
    %v1916 = vsel %vm444, %v1912, 0.0
    %1917 = vadd.xlane.f32.xlu0 %v1916
    %v1918 = vpop.xlane.xlu0 %1917
    %v1919 = vadd.f32 %v1915, %v546
    %v1920 = vadd.f32 %v1918, %v553
    %1923 = vset.pattern.permute.xlu0 0
    %1924 = vperm.xlu0 %1923, %v1919
    %v1925 = vpop.permute.xlu0 %1924
    %1926 = vset.pattern.permute.xlu0 0
    %1927 = vperm.xlu0 %1926, %v1920
    %v1928 = vpop.permute.xlu0 %1927
    %v1929 = vlaneseq
    %v1930 = vshrl.u32 %v1929, 7
    %v1931 = vsub.s32 %v567, %v1930
    %v1932 = vrot.slane %v1925, %v1931
    %v1933 = vlaneseq
    %v1934 = vshrl.u32 %v1933, 7
    %v1935 = vsub.s32 %v567, %v1934
    %v1936 = vrot.slane %v1928, %v1935
    %v1937 = vsel %vm576, %v1936, %v1932
    %v1939 = vsel %vm579, %v1937, -inf
    %1940 = vmax.xlane.f32.xlu0 %v1939
    %v1941 = vpop.xlane.xlu0 %1940
    %v1943 = vlaneseq
    %v1944 = vshrl.u32 %v1943, 7
    %v1945 = vsub.s32 0, %v1944
    %v1946 = vrot.slane %v1941, %v1945
    %v1947 = vlaneseq
    %v1948 = vshrl.u32 %v1947, 7
    %v1949 = vsub.s32 1, %v1948
    %v1950 = vrot.slane %v1941, %v1949
    %v1953 = vsub.f32 %v1919, %v1946
    %v1954 = vsub.f32 %v1920, %v1950
    %v1955 = vmul.f32 %v1953, 1.442695
    %v1956 = vpow.pop %v1955
    %v1957 = vmul.f32 %v1954, 1.442695
    %v1958 = vpow.pop %v1957
    %1961 = vset.pattern.permute.xlu0 0
    %1962 = vperm.xlu0 %1961, %v1956
    %v1963 = vpop.permute.xlu0 %1962
    %1964 = vset.pattern.permute.xlu0 0
    %1965 = vperm.xlu0 %1964, %v1958
    %v1966 = vpop.permute.xlu0 %1965
    %v1967 = vlaneseq
    %v1968 = vshrl.u32 %v1967, 7
    %v1969 = vsub.s32 %v567, %v1968
    %v1970 = vrot.slane %v1963, %v1969
    %v1971 = vlaneseq
    %v1972 = vshrl.u32 %v1971, 7
    %v1973 = vsub.s32 %v567, %v1972
    %v1974 = vrot.slane %v1966, %v1973
    %v1975 = vsel %vm576, %v1974, %v1970
    %v1977 = vsel %vm579, %v1975, 0.0
    %1978 = vadd.xlane.f32.xlu0 %v1977
    %v1979 = vpop.xlane.xlu0 %1978
    %v1980 = vrcp.pop %v1979
    %v1982 = vlaneseq
    %v1983 = vshrl.u32 %v1982, 7
    %v1984 = vsub.s32 0, %v1983
    %v1985 = vrot.slane %v1980, %v1984
    %v1986 = vlaneseq
    %v1987 = vshrl.u32 %v1986, 7
    %v1988 = vsub.s32 1, %v1987
    %v1989 = vrot.slane %v1980, %v1988
    %v1992 = vmul.f32 %v1956, %v1985
    %v1993 = vmul.f32 %v1958, %v1989
    %1995 = vset.pattern.permute.xlu0 0
    %1996 = vperm.xlu0 %1995, %v1992
    %v1997 = vpop.permute.xlu0 %1996
    %2000 = vset.pattern.permute.xlu0 0
    %2001 = vperm.xlu0 %2000, %v1993
    %v2002 = vpop.permute.xlu0 %2001
    %v2004 = vmul.f32 %v1997, %v410
    %v2005 = vmul.f32 %v2002, %v411
    %v2006 = vsel %vm444, %v2004, 0.0
    %v2007 = vrot.slane %v2006, 4
    %v2008 = vadd.f32 %v2006, %v2007
    %v2009 = vrot.slane %v2008, 2
    %v2010 = vadd.f32 %v2008, %v2009
    %v2011 = vrot.slane %v2010, 1
    %v2012 = vadd.f32 %v2010, %v2011
    %v2013 = vsel %vm444, %v2005, 0.0
    %v2014 = vrot.slane %v2013, 4
    %v2015 = vadd.f32 %v2013, %v2014
    %v2016 = vrot.slane %v2015, 2
    %v2017 = vadd.f32 %v2015, %v2016
    %v2018 = vrot.slane %v2017, 1
    %v2019 = vadd.f32 %v2017, %v2018
    %v2020 = vpack.c.bf16 %v2012, %v2012
    %v2021 = vpack.c.bf16 %v2019, %v2019
    %s2022 = scalar_lea.vmem [#allocation3], 8
    %v2023 = vld [vmem:[%s2022] sm:$0x3]
    %v2026 = vunpack.c.l.b16 %v2020
    %v2027 = vunpack.c.l.b16 %v2021
    %v2028 = vsel %vm576, %v2027, %v2026
    %v2029 = vpack.c.b16 %v2028, %v2028
    %v2031 = vsel %vm444, %v2029, 0
    %2033 = vmatprep.subr.bf16.mxu0 0
    %2034 = vmatpush1.bf16.msra.mxu0 %v678
    %2035 = vmatprep.subr.bf16.mxu0 0
    %2036 = vmatpush1.bf16.msra.mxu0 %v679
    %2037 = vmatprep.subr.bf16.mxu0 0
    %2038 = vmatpush1.bf16.msra.mxu0 0
    %2039 = vmatprep.subr.bf16.mxu0 0
    %2040 = vmatpush1.bf16.msra.mxu0 0
    %2041 = vmatprep.subr.bf16.mxu0 0
    %2042 = vmatpush1.bf16.msra.mxu0 0
    %2043 = vmatprep.subr.bf16.mxu0 0
    %2044 = vmatpush1.bf16.msra.mxu0 0
    %2045 = vmatprep.subr.bf16.mxu0 0
    %2046 = vmatpush1.bf16.msra.mxu0 0
    %2047 = vmatprep.subr.bf16.mxu0 0
    %2048 = vmatpush1.bf16.msra.mxu0 0
    %2049 = vmatprep.subr.bf16.mxu0 0
    %2050 = vmatpush1.bf16.msra.mxu0 0
    %2051 = vmatprep.subr.bf16.mxu0 0
    %2052 = vmatpush1.bf16.msra.mxu0 0
    %2053 = vmatprep.subr.bf16.mxu0 0
    %2054 = vmatpush1.bf16.msra.mxu0 0
    %2055 = vmatprep.subr.bf16.mxu0 0
    %2056 = vmatpush1.bf16.msra.mxu0 0
    %2057 = vmatprep.subr.bf16.mxu0 0
    %2058 = vmatpush1.bf16.msra.mxu0 0
    %2059 = vmatprep.subr.bf16.mxu0 0
    %2060 = vmatpush1.bf16.msra.mxu0 0
    %2061 = vmatprep.subr.bf16.mxu0 0
    %2062 = vmatpush1.bf16.msra.mxu0 0
    %2063 = vmatprep.subr.bf16.mxu0 0
    %2064 = vmatpush1.bf16.msra.mxu0 0
    %2065 = vmatprep.mubr.bf16.mxu0 0
    %2066 = vmatmul.mubr.bf16.gmra.mrb[0].mxu0 %v2031
    %v2067 = vpop.f32.mrb[0].mxu0
    %v2068 = vadd.f32 %v2023, %v2067
    %v2069 = vpop.f32.mrb[0].mxu0
    %v2070 = vpop.f32.mrb[0].mxu0
    %v2071 = vpop.f32.mrb[0].mxu0
    %2072 = vdwg.mxu0
    %2073 = vrot.lane.b32.xlu0 %v1869, 96
    %v2074 = vpop.permute.xlu0 %2073
    %v2076 = vadd.f32 %v2068, %v2074
    %v2077 = vxor.u32 %v2076, 2147483648
    %v2078 = vmul.f32 %v2077, 1.442695
    %v2079 = vpow.pop %v2078
    %v2080 = vadd.f32 %v2079, 1.0
    %v2081 = vrcp.pop %v2080
    %v2082 = vmul.f32 1.0, %v2081
    %v2083 = vadd.f32 %v1869, %v741
    %2085 = vrot.lane.b32.xlu0 %v2083, 32
    %v2086 = vpop.permute.xlu0 %2085
    %v2088 = vmul.f32 %v2082, %v2086
    %2090 = vrot.lane.b32.xlu0 %v2088, 64
    %v2091 = vpop.permute.xlu0 %2090
    %v2093 = vadd.f32 %v2068, %v2091
    %v2094 = vtanh.pop %v2093
    %v2095 = vsub.f32 1.0, %v2082
    %2097 = vrot.lane.b32.xlu0 %v2094, 96
    %v2098 = vpop.permute.xlu0 %2097
    %v2100 = vmul.f32 %v2095, %v2098
    %v2101 = vmul.f32 %v2082, %v1772
    %v2102 = vadd.f32 %v2100, %v2101
    %v2103 = vpack.c.bf16 %v2102, %v2102
    %2105 = vrot.lane.b32.xlu0 %v2103, 96
    %v2106 = vpop.permute.xlu0 %2105
    %v2108 = vsel %vm444, %v2106, 0
    %2110 = vmatprep.subr.bf16.mxu0 0
    %2111 = vmatpush1.bf16.msra.mxu0 %v785
    %2112 = vmatprep.subr.bf16.mxu0 0
    %2113 = vmatpush1.bf16.msra.mxu0 %v786
    %2114 = vmatprep.subr.bf16.mxu0 0
    %2115 = vmatpush1.bf16.msra.mxu0 0
    %2116 = vmatprep.subr.bf16.mxu0 0
    %2117 = vmatpush1.bf16.msra.mxu0 0
    %2118 = vmatprep.subr.bf16.mxu0 0
    %2119 = vmatpush1.bf16.msra.mxu0 0
    %2120 = vmatprep.subr.bf16.mxu0 0
    %2121 = vmatpush1.bf16.msra.mxu0 0
    %2122 = vmatprep.subr.bf16.mxu0 0
    %2123 = vmatpush1.bf16.msra.mxu0 0
    %2124 = vmatprep.subr.bf16.mxu0 0
    %2125 = vmatpush1.bf16.msra.mxu0 0
    %2126 = vmatprep.subr.bf16.mxu0 0
    %2127 = vmatpush1.bf16.msra.mxu0 0
    %2128 = vmatprep.subr.bf16.mxu0 0
    %2129 = vmatpush1.bf16.msra.mxu0 0
    %2130 = vmatprep.subr.bf16.mxu0 0
    %2131 = vmatpush1.bf16.msra.mxu0 0
    %2132 = vmatprep.subr.bf16.mxu0 0
    %2133 = vmatpush1.bf16.msra.mxu0 0
    %2134 = vmatprep.subr.bf16.mxu0 0
    %2135 = vmatpush1.bf16.msra.mxu0 0
    %2136 = vmatprep.subr.bf16.mxu0 0
    %2137 = vmatpush1.bf16.msra.mxu0 0
    %2138 = vmatprep.subr.bf16.mxu0 0
    %2139 = vmatpush1.bf16.msra.mxu0 0
    %2140 = vmatprep.subr.bf16.mxu0 0
    %2141 = vmatpush1.bf16.msra.mxu0 0
    %2142 = vmatprep.mubr.bf16.mxu0 0
    %2143 = vmatmul.mubr.bf16.gmra.mrb[0].mxu0 %v2108
    %v2144 = vpop.f32.mrb[0].mxu0
    %v2145 = vadd.f32 %v772, %v2144
    %v2146 = vpop.f32.mrb[0].mxu0
    %v2147 = vpop.f32.mrb[0].mxu0
    %v2148 = vpop.f32.mrb[0].mxu0
    %2149 = vdwg.mxu0
    %s2150 = scalar_lea.vmem [#allocation18], 8
    %2151 = vst [vmem:[%s2150] sm:$0x3] %v2145
    %v2152 = vlaneseq
    %v2153 = vshrl.u32 %v2152, 7
    %v2154 = vsub.s32 %v567, %v2153
    %v2155 = vrot.slane %v1997, %v2154
    %v2156 = vlaneseq
    %v2157 = vshrl.u32 %v2156, 7
    %v2158 = vsub.s32 %v567, %v2157
    %v2159 = vrot.slane %v2002, %v2158
    %v2160 = vsel %vm576, %v2159, %v2155
    %s2162 = scalar_lea.vmem [#allocation19], 8
    %2163 = vst.msk [vmem:[%s2162] sm:$0x3] %vm579, %v2160
    %2164 = vmatprep.subr.bf16.mxu0 0
    %2165 = vmatpush1.bf16.msra.mxu0 %v440
    %2166 = vmatprep.subr.bf16.mxu0 0
    %2167 = vmatpush1.bf16.msra.mxu0 %v441
    %2168 = vmatprep.subr.bf16.mxu0 0
    %2169 = vmatpush1.bf16.msra.mxu0 0
    %2170 = vmatprep.subr.bf16.mxu0 0
    %2171 = vmatpush1.bf16.msra.mxu0 0
    %2172 = vmatprep.subr.bf16.mxu0 0
    %2173 = vmatpush1.bf16.msra.mxu0 0
    %2174 = vmatprep.subr.bf16.mxu0 0
    %2175 = vmatpush1.bf16.msra.mxu0 0
    %2176 = vmatprep.subr.bf16.mxu0 0
    %2177 = vmatpush1.bf16.msra.mxu0 0
    %2178 = vmatprep.subr.bf16.mxu0 0
    %2179 = vmatpush1.bf16.msra.mxu0 0
    %2180 = vmatprep.subr.bf16.mxu0 0
    %2181 = vmatpush1.bf16.msra.mxu0 0
    %2182 = vmatprep.subr.bf16.mxu0 0
    %2183 = vmatpush1.bf16.msra.mxu0 0
    %2184 = vmatprep.subr.bf16.mxu0 0
    %2185 = vmatpush1.bf16.msra.mxu0 0
    %2186 = vmatprep.subr.bf16.mxu0 0
    %2187 = vmatpush1.bf16.msra.mxu0 0
    %2188 = vmatprep.subr.bf16.mxu0 0
    %2189 = vmatpush1.bf16.msra.mxu0 0
    %2190 = vmatprep.subr.bf16.mxu0 0
    %2191 = vmatpush1.bf16.msra.mxu0 0
    %2192 = vmatprep.subr.bf16.mxu0 0
    %2193 = vmatpush1.bf16.msra.mxu0 0
    %2194 = vmatprep.subr.bf16.mxu0 0
    %2195 = vmatpush1.bf16.msra.mxu0 0
    %2196 = vmatprep.mubr.bf16.mxu0 0
    %2197 = vmatmul.mubr.bf16.gmra.mrb[0].mxu0 %v2108
    %v2198 = vpop.f32.mrb[0].mxu0
    %v2199 = vadd.f32 0.0, %v2198
    %v2200 = vpop.f32.mrb[0].mxu0
    %v2201 = vpop.f32.mrb[0].mxu0
    %v2202 = vpop.f32.mrb[0].mxu0
    %2203 = vdwg.mxu0
    %v2206 = vunpack.c.l.s4 1966171168
    %v2207 = vunpack.c.0.s8 %v2206
    %v2208 = vlaneseq
    %v2209 = vshrl.u32 %v2208, 7
    %v2210 = vsub.s32 %v2207, %v2209
    %v2211 = vrot.slane %v2199, %v2210
    %v2212 = vcombine.high %v2211, %v2211
    %v2214 = vunpack.c.l.s4 1966171168
    %v2215 = vunpack.c.0.s8 %v2214
    %v2216 = vlaneseq
    %v2217 = vshrl.u32 %v2216, 7
    %v2218 = vsub.s32 %v2215, %v2217
    %v2219 = vrot.slane %v2211, %v2218
    %v2221 = vunpack.c.l.s4 1966171168
    %v2222 = vunpack.c.0.s8 %v2221
    %v2223 = vlaneseq
    %v2224 = vshrl.u32 %v2223, 7
    %v2225 = vsub.s32 %v2222, %v2224
    %v2226 = vrot.slane %v2212, %v2225
    %v2227 = vlaneseq
    %v2228 = vshrl.u32 %v2227, 7
    %v2229 = vsub.s32 0, %v2228
    %v2230 = vrot.slane %v2219, %v2229
    %v2231 = vlaneseq
    %v2232 = vshrl.u32 %v2231, 7
    %v2233 = vsub.s32 0, %v2232
    %v2234 = vrot.slane %v2226, %v2233
    %v2237 = vadd.f32 %v2230, %v412
    %v2238 = vadd.f32 %v2234, %v413
    %v2239 = vtanh.pop %v2237
    %v2240 = vtanh.pop %v2238
    %v2241 = vmul.f32 %v2239, %v529
    %v2242 = vmul.f32 %v2240, %v529
    %v2243 = vsel %vm444, %v2241, 0.0
    %2244 = vadd.xlane.f32.xlu0 %v2243
    %v2245 = vpop.xlane.xlu0 %2244
    %v2246 = vsel %vm444, %v2242, 0.0
    %2247 = vadd.xlane.f32.xlu0 %v2246
    %v2248 = vpop.xlane.xlu0 %2247
    %v2249 = vadd.f32 %v2245, %v546
    %v2250 = vadd.f32 %v2248, %v553
    %2253 = vset.pattern.permute.xlu0 0
    %2254 = vperm.xlu0 %2253, %v2249
    %v2255 = vpop.permute.xlu0 %2254
    %2256 = vset.pattern.permute.xlu0 0
    %2257 = vperm.xlu0 %2256, %v2250
    %v2258 = vpop.permute.xlu0 %2257
    %v2259 = vlaneseq
    %v2260 = vshrl.u32 %v2259, 7
    %v2261 = vsub.s32 %v567, %v2260
    %v2262 = vrot.slane %v2255, %v2261
    %v2263 = vlaneseq
    %v2264 = vshrl.u32 %v2263, 7
    %v2265 = vsub.s32 %v567, %v2264
    %v2266 = vrot.slane %v2258, %v2265
    %v2267 = vsel %vm576, %v2266, %v2262
    %v2269 = vsel %vm579, %v2267, -inf
    %2270 = vmax.xlane.f32.xlu0 %v2269
    %v2271 = vpop.xlane.xlu0 %2270
    %v2273 = vlaneseq
    %v2274 = vshrl.u32 %v2273, 7
    %v2275 = vsub.s32 0, %v2274
    %v2276 = vrot.slane %v2271, %v2275
    %v2277 = vlaneseq
    %v2278 = vshrl.u32 %v2277, 7
    %v2279 = vsub.s32 1, %v2278
    %v2280 = vrot.slane %v2271, %v2279
    %v2283 = vsub.f32 %v2249, %v2276
    %v2284 = vsub.f32 %v2250, %v2280
    %v2285 = vmul.f32 %v2283, 1.442695
    %v2286 = vpow.pop %v2285
    %v2287 = vmul.f32 %v2284, 1.442695
    %v2288 = vpow.pop %v2287
    %2291 = vset.pattern.permute.xlu0 0
    %2292 = vperm.xlu0 %2291, %v2286
    %v2293 = vpop.permute.xlu0 %2292
    %2294 = vset.pattern.permute.xlu0 0
    %2295 = vperm.xlu0 %2294, %v2288
    %v2296 = vpop.permute.xlu0 %2295
    %v2297 = vlaneseq
    %v2298 = vshrl.u32 %v2297, 7
    %v2299 = vsub.s32 %v567, %v2298
    %v2300 = vrot.slane %v2293, %v2299
    %v2301 = vlaneseq
    %v2302 = vshrl.u32 %v2301, 7
    %v2303 = vsub.s32 %v567, %v2302
    %v2304 = vrot.slane %v2296, %v2303
    %v2305 = vsel %vm576, %v2304, %v2300
    %v2307 = vsel %vm579, %v2305, 0.0
    %2308 = vadd.xlane.f32.xlu0 %v2307
    %v2309 = vpop.xlane.xlu0 %2308
    %v2310 = vrcp.pop %v2309
    %v2312 = vlaneseq
    %v2313 = vshrl.u32 %v2312, 7
    %v2314 = vsub.s32 0, %v2313
    %v2315 = vrot.slane %v2310, %v2314
    %v2316 = vlaneseq
    %v2317 = vshrl.u32 %v2316, 7
    %v2318 = vsub.s32 1, %v2317
    %v2319 = vrot.slane %v2310, %v2318
    %v2322 = vmul.f32 %v2286, %v2315
    %v2323 = vmul.f32 %v2288, %v2319
    %2325 = vset.pattern.permute.xlu0 0
    %2326 = vperm.xlu0 %2325, %v2322
    %v2327 = vpop.permute.xlu0 %2326
    %2330 = vset.pattern.permute.xlu0 0
    %2331 = vperm.xlu0 %2330, %v2323
    %v2332 = vpop.permute.xlu0 %2331
    %v2334 = vmul.f32 %v2327, %v410
    %v2335 = vmul.f32 %v2332, %v411
    %v2336 = vsel %vm444, %v2334, 0.0
    %v2337 = vrot.slane %v2336, 4
    %v2338 = vadd.f32 %v2336, %v2337
    %v2339 = vrot.slane %v2338, 2
    %v2340 = vadd.f32 %v2338, %v2339
    %v2341 = vrot.slane %v2340, 1
    %v2342 = vadd.f32 %v2340, %v2341
    %v2343 = vsel %vm444, %v2335, 0.0
    %v2344 = vrot.slane %v2343, 4
    %v2345 = vadd.f32 %v2343, %v2344
    %v2346 = vrot.slane %v2345, 2
    %v2347 = vadd.f32 %v2345, %v2346
    %v2348 = vrot.slane %v2347, 1
    %v2349 = vadd.f32 %v2347, %v2348
    %v2350 = vpack.c.bf16 %v2342, %v2342
    %v2351 = vpack.c.bf16 %v2349, %v2349
    %s2352 = scalar_lea.vmem [#allocation3], 10
    %v2353 = vld [vmem:[%s2352] sm:$0x3]
    %v2356 = vunpack.c.l.b16 %v2350
    %v2357 = vunpack.c.l.b16 %v2351
    %v2358 = vsel %vm576, %v2357, %v2356
    %v2359 = vpack.c.b16 %v2358, %v2358
    %v2361 = vsel %vm444, %v2359, 0
    %2363 = vmatprep.subr.bf16.mxu0 0
    %2364 = vmatpush1.bf16.msra.mxu0 %v678
    %2365 = vmatprep.subr.bf16.mxu0 0
    %2366 = vmatpush1.bf16.msra.mxu0 %v679
    %2367 = vmatprep.subr.bf16.mxu0 0
    %2368 = vmatpush1.bf16.msra.mxu0 0
    %2369 = vmatprep.subr.bf16.mxu0 0
    %2370 = vmatpush1.bf16.msra.mxu0 0
    %2371 = vmatprep.subr.bf16.mxu0 0
    %2372 = vmatpush1.bf16.msra.mxu0 0
    %2373 = vmatprep.subr.bf16.mxu0 0
    %2374 = vmatpush1.bf16.msra.mxu0 0
    %2375 = vmatprep.subr.bf16.mxu0 0
    %2376 = vmatpush1.bf16.msra.mxu0 0
    %2377 = vmatprep.subr.bf16.mxu0 0
    %2378 = vmatpush1.bf16.msra.mxu0 0
    %2379 = vmatprep.subr.bf16.mxu0 0
    %2380 = vmatpush1.bf16.msra.mxu0 0
    %2381 = vmatprep.subr.bf16.mxu0 0
    %2382 = vmatpush1.bf16.msra.mxu0 0
    %2383 = vmatprep.subr.bf16.mxu0 0
    %2384 = vmatpush1.bf16.msra.mxu0 0
    %2385 = vmatprep.subr.bf16.mxu0 0
    %2386 = vmatpush1.bf16.msra.mxu0 0
    %2387 = vmatprep.subr.bf16.mxu0 0
    %2388 = vmatpush1.bf16.msra.mxu0 0
    %2389 = vmatprep.subr.bf16.mxu0 0
    %2390 = vmatpush1.bf16.msra.mxu0 0
    %2391 = vmatprep.subr.bf16.mxu0 0
    %2392 = vmatpush1.bf16.msra.mxu0 0
    %2393 = vmatprep.subr.bf16.mxu0 0
    %2394 = vmatpush1.bf16.msra.mxu0 0
    %2395 = vmatprep.mubr.bf16.mxu0 0
    %2396 = vmatmul.mubr.bf16.gmra.mrb[0].mxu0 %v2361
    %v2397 = vpop.f32.mrb[0].mxu0
    %v2398 = vadd.f32 %v2353, %v2397
    %v2399 = vpop.f32.mrb[0].mxu0
    %v2400 = vpop.f32.mrb[0].mxu0
    %v2401 = vpop.f32.mrb[0].mxu0
    %2402 = vdwg.mxu0
    %2403 = vrot.lane.b32.xlu0 %v2199, 96
    %v2404 = vpop.permute.xlu0 %2403
    %v2406 = vadd.f32 %v2398, %v2404
    %v2407 = vxor.u32 %v2406, 2147483648
    %v2408 = vmul.f32 %v2407, 1.442695
    %v2409 = vpow.pop %v2408
    %v2410 = vadd.f32 %v2409, 1.0
    %v2411 = vrcp.pop %v2410
    %v2412 = vmul.f32 1.0, %v2411
    %v2413 = vadd.f32 %v2199, %v741
    %2415 = vrot.lane.b32.xlu0 %v2413, 32
    %v2416 = vpop.permute.xlu0 %2415
    %v2418 = vmul.f32 %v2412, %v2416
    %2420 = vrot.lane.b32.xlu0 %v2418, 64
    %v2421 = vpop.permute.xlu0 %2420
    %v2423 = vadd.f32 %v2398, %v2421
    %v2424 = vtanh.pop %v2423
    %v2425 = vsub.f32 1.0, %v2412
    %2427 = vrot.lane.b32.xlu0 %v2424, 96
    %v2428 = vpop.permute.xlu0 %2427
    %v2430 = vmul.f32 %v2425, %v2428
    %v2431 = vmul.f32 %v2412, %v2102
    %v2432 = vadd.f32 %v2430, %v2431
    %v2433 = vpack.c.bf16 %v2432, %v2432
    %2435 = vrot.lane.b32.xlu0 %v2433, 96
    %v2436 = vpop.permute.xlu0 %2435
    %v2438 = vsel %vm444, %v2436, 0
    %2440 = vmatprep.subr.bf16.mxu0 0
    %2441 = vmatpush1.bf16.msra.mxu0 %v785
    %2442 = vmatprep.subr.bf16.mxu0 0
    %2443 = vmatpush1.bf16.msra.mxu0 %v786
    %2444 = vmatprep.subr.bf16.mxu0 0
    %2445 = vmatpush1.bf16.msra.mxu0 0
    %2446 = vmatprep.subr.bf16.mxu0 0
    %2447 = vmatpush1.bf16.msra.mxu0 0
    %2448 = vmatprep.subr.bf16.mxu0 0
    %2449 = vmatpush1.bf16.msra.mxu0 0
    %2450 = vmatprep.subr.bf16.mxu0 0
    %2451 = vmatpush1.bf16.msra.mxu0 0
    %2452 = vmatprep.subr.bf16.mxu0 0
    %2453 = vmatpush1.bf16.msra.mxu0 0
    %2454 = vmatprep.subr.bf16.mxu0 0
    %2455 = vmatpush1.bf16.msra.mxu0 0
    %2456 = vmatprep.subr.bf16.mxu0 0
    %2457 = vmatpush1.bf16.msra.mxu0 0
    %2458 = vmatprep.subr.bf16.mxu0 0
    %2459 = vmatpush1.bf16.msra.mxu0 0
    %2460 = vmatprep.subr.bf16.mxu0 0
    %2461 = vmatpush1.bf16.msra.mxu0 0
    %2462 = vmatprep.subr.bf16.mxu0 0
    %2463 = vmatpush1.bf16.msra.mxu0 0
    %2464 = vmatprep.subr.bf16.mxu0 0
    %2465 = vmatpush1.bf16.msra.mxu0 0
    %2466 = vmatprep.subr.bf16.mxu0 0
    %2467 = vmatpush1.bf16.msra.mxu0 0
    %2468 = vmatprep.subr.bf16.mxu0 0
    %2469 = vmatpush1.bf16.msra.mxu0 0
    %2470 = vmatprep.subr.bf16.mxu0 0
    %2471 = vmatpush1.bf16.msra.mxu0 0
    %2472 = vmatprep.mubr.bf16.mxu0 0
    %2473 = vmatmul.mubr.bf16.gmra.mrb[0].mxu0 %v2438
    %v2474 = vpop.f32.mrb[0].mxu0
    %v2475 = vadd.f32 %v772, %v2474
    %v2476 = vpop.f32.mrb[0].mxu0
    %v2477 = vpop.f32.mrb[0].mxu0
    %v2478 = vpop.f32.mrb[0].mxu0
    %2479 = vdwg.mxu0
    %s2480 = scalar_lea.vmem [#allocation18], 10
    %2481 = vst [vmem:[%s2480] sm:$0x3] %v2475
    %v2482 = vlaneseq
    %v2483 = vshrl.u32 %v2482, 7
    %v2484 = vsub.s32 %v567, %v2483
    %v2485 = vrot.slane %v2327, %v2484
    %v2486 = vlaneseq
    %v2487 = vshrl.u32 %v2486, 7
    %v2488 = vsub.s32 %v567, %v2487
    %v2489 = vrot.slane %v2332, %v2488
    %v2490 = vsel %vm576, %v2489, %v2485
    %s2492 = scalar_lea.vmem [#allocation19], 10
    %2493 = vst.msk [vmem:[%s2492] sm:$0x3] %vm579, %v2490
    %2494 = vmatprep.subr.bf16.mxu0 0
    %2495 = vmatpush1.bf16.msra.mxu0 %v440
    %2496 = vmatprep.subr.bf16.mxu0 0
    %2497 = vmatpush1.bf16.msra.mxu0 %v441
    %2498 = vmatprep.subr.bf16.mxu0 0
    %2499 = vmatpush1.bf16.msra.mxu0 0
    %2500 = vmatprep.subr.bf16.mxu0 0
    %2501 = vmatpush1.bf16.msra.mxu0 0
    %2502 = vmatprep.subr.bf16.mxu0 0
    %2503 = vmatpush1.bf16.msra.mxu0 0
    %2504 = vmatprep.subr.bf16.mxu0 0
    %2505 = vmatpush1.bf16.msra.mxu0 0
    %2506 = vmatprep.subr.bf16.mxu0 0
    %2507 = vmatpush1.bf16.msra.mxu0 0
    %2508 = vmatprep.subr.bf16.mxu0 0
    %2509 = vmatpush1.bf16.msra.mxu0 0
    %2510 = vmatprep.subr.bf16.mxu0 0
    %2511 = vmatpush1.bf16.msra.mxu0 0
    %2512 = vmatprep.subr.bf16.mxu0 0
    %2513 = vmatpush1.bf16.msra.mxu0 0
    %2514 = vmatprep.subr.bf16.mxu0 0
    %2515 = vmatpush1.bf16.msra.mxu0 0
    %2516 = vmatprep.subr.bf16.mxu0 0
    %2517 = vmatpush1.bf16.msra.mxu0 0
    %2518 = vmatprep.subr.bf16.mxu0 0
    %2519 = vmatpush1.bf16.msra.mxu0 0
    %2520 = vmatprep.subr.bf16.mxu0 0
    %2521 = vmatpush1.bf16.msra.mxu0 0
    %2522 = vmatprep.subr.bf16.mxu0 0
    %2523 = vmatpush1.bf16.msra.mxu0 0
    %2524 = vmatprep.subr.bf16.mxu0 0
    %2525 = vmatpush1.bf16.msra.mxu0 0
    %2526 = vmatprep.mubr.bf16.mxu0 0
    %2527 = vmatmul.mubr.bf16.gmra.mrb[0].mxu0 %v2438
    %v2528 = vpop.f32.mrb[0].mxu0
    %v2529 = vadd.f32 0.0, %v2528
    %v2530 = vpop.f32.mrb[0].mxu0
    %v2531 = vpop.f32.mrb[0].mxu0
    %v2532 = vpop.f32.mrb[0].mxu0
    %2533 = vdwg.mxu0
    %v2536 = vunpack.c.l.s4 1966171168
    %v2537 = vunpack.c.0.s8 %v2536
    %v2538 = vlaneseq
    %v2539 = vshrl.u32 %v2538, 7
    %v2540 = vsub.s32 %v2537, %v2539
    %v2541 = vrot.slane %v2529, %v2540
    %v2542 = vcombine.high %v2541, %v2541
    %v2544 = vunpack.c.l.s4 1966171168
    %v2545 = vunpack.c.0.s8 %v2544
    %v2546 = vlaneseq
    %v2547 = vshrl.u32 %v2546, 7
    %v2548 = vsub.s32 %v2545, %v2547
    %v2549 = vrot.slane %v2541, %v2548
    %v2551 = vunpack.c.l.s4 1966171168
    %v2552 = vunpack.c.0.s8 %v2551
    %v2553 = vlaneseq
    %v2554 = vshrl.u32 %v2553, 7
    %v2555 = vsub.s32 %v2552, %v2554
    %v2556 = vrot.slane %v2542, %v2555
    %v2557 = vlaneseq
    %v2558 = vshrl.u32 %v2557, 7
    %v2559 = vsub.s32 0, %v2558
    %v2560 = vrot.slane %v2549, %v2559
    %v2561 = vlaneseq
    %v2562 = vshrl.u32 %v2561, 7
    %v2563 = vsub.s32 0, %v2562
    %v2564 = vrot.slane %v2556, %v2563
    %v2567 = vadd.f32 %v2560, %v412
    %v2568 = vadd.f32 %v2564, %v413
    %v2569 = vtanh.pop %v2567
    %v2570 = vtanh.pop %v2568
    %v2571 = vmul.f32 %v2569, %v529
    %v2572 = vmul.f32 %v2570, %v529
    %v2573 = vsel %vm444, %v2571, 0.0
    %2574 = vadd.xlane.f32.xlu0 %v2573
    %v2575 = vpop.xlane.xlu0 %2574
    %v2576 = vsel %vm444, %v2572, 0.0
    %2577 = vadd.xlane.f32.xlu0 %v2576
    %v2578 = vpop.xlane.xlu0 %2577
    %v2579 = vadd.f32 %v2575, %v546
    %v2580 = vadd.f32 %v2578, %v553
    %2583 = vset.pattern.permute.xlu0 0
    %2584 = vperm.xlu0 %2583, %v2579
    %v2585 = vpop.permute.xlu0 %2584
    %2586 = vset.pattern.permute.xlu0 0
    %2587 = vperm.xlu0 %2586, %v2580
    %v2588 = vpop.permute.xlu0 %2587
    %v2589 = vlaneseq
    %v2590 = vshrl.u32 %v2589, 7
    %v2591 = vsub.s32 %v567, %v2590
    %v2592 = vrot.slane %v2585, %v2591
    %v2593 = vlaneseq
    %v2594 = vshrl.u32 %v2593, 7
    %v2595 = vsub.s32 %v567, %v2594
    %v2596 = vrot.slane %v2588, %v2595
    %v2597 = vsel %vm576, %v2596, %v2592
    %v2599 = vsel %vm579, %v2597, -inf
    %2600 = vmax.xlane.f32.xlu0 %v2599
    %v2601 = vpop.xlane.xlu0 %2600
    %v2603 = vlaneseq
    %v2604 = vshrl.u32 %v2603, 7
    %v2605 = vsub.s32 0, %v2604
    %v2606 = vrot.slane %v2601, %v2605
    %v2607 = vlaneseq
    %v2608 = vshrl.u32 %v2607, 7
    %v2609 = vsub.s32 1, %v2608
    %v2610 = vrot.slane %v2601, %v2609
    %v2613 = vsub.f32 %v2579, %v2606
    %v2614 = vsub.f32 %v2580, %v2610
    %v2615 = vmul.f32 %v2613, 1.442695
    %v2616 = vpow.pop %v2615
    %v2617 = vmul.f32 %v2614, 1.442695
    %v2618 = vpow.pop %v2617
    %2621 = vset.pattern.permute.xlu0 0
    %2622 = vperm.xlu0 %2621, %v2616
    %v2623 = vpop.permute.xlu0 %2622
    %2624 = vset.pattern.permute.xlu0 0
    %2625 = vperm.xlu0 %2624, %v2618
    %v2626 = vpop.permute.xlu0 %2625
    %v2627 = vlaneseq
    %v2628 = vshrl.u32 %v2627, 7
    %v2629 = vsub.s32 %v567, %v2628
    %v2630 = vrot.slane %v2623, %v2629
    %v2631 = vlaneseq
    %v2632 = vshrl.u32 %v2631, 7
    %v2633 = vsub.s32 %v567, %v2632
    %v2634 = vrot.slane %v2626, %v2633
    %v2635 = vsel %vm576, %v2634, %v2630
    %v2637 = vsel %vm579, %v2635, 0.0
    %2638 = vadd.xlane.f32.xlu0 %v2637
    %v2639 = vpop.xlane.xlu0 %2638
    %v2640 = vrcp.pop %v2639
    %v2642 = vlaneseq
    %v2643 = vshrl.u32 %v2642, 7
    %v2644 = vsub.s32 0, %v2643
    %v2645 = vrot.slane %v2640, %v2644
    %v2646 = vlaneseq
    %v2647 = vshrl.u32 %v2646, 7
    %v2648 = vsub.s32 1, %v2647
    %v2649 = vrot.slane %v2640, %v2648
    %v2652 = vmul.f32 %v2616, %v2645
    %v2653 = vmul.f32 %v2618, %v2649
    %2655 = vset.pattern.permute.xlu0 0
    %2656 = vperm.xlu0 %2655, %v2652
    %v2657 = vpop.permute.xlu0 %2656
    %2660 = vset.pattern.permute.xlu0 0
    %2661 = vperm.xlu0 %2660, %v2653
    %v2662 = vpop.permute.xlu0 %2661
    %v2664 = vmul.f32 %v2657, %v410
    %v2665 = vmul.f32 %v2662, %v411
    %v2666 = vsel %vm444, %v2664, 0.0
    %v2667 = vrot.slane %v2666, 4
    %v2668 = vadd.f32 %v2666, %v2667
    %v2669 = vrot.slane %v2668, 2
    %v2670 = vadd.f32 %v2668, %v2669
    %v2671 = vrot.slane %v2670, 1
    %v2672 = vadd.f32 %v2670, %v2671
    %v2673 = vsel %vm444, %v2665, 0.0
    %v2674 = vrot.slane %v2673, 4
    %v2675 = vadd.f32 %v2673, %v2674
    %v2676 = vrot.slane %v2675, 2
    %v2677 = vadd.f32 %v2675, %v2676
    %v2678 = vrot.slane %v2677, 1
    %v2679 = vadd.f32 %v2677, %v2678
    %v2680 = vpack.c.bf16 %v2672, %v2672
    %v2681 = vpack.c.bf16 %v2679, %v2679
    %s2682 = scalar_lea.vmem [#allocation3], 12
    %v2683 = vld [vmem:[%s2682] sm:$0x3]
    %v2686 = vunpack.c.l.b16 %v2680
    %v2687 = vunpack.c.l.b16 %v2681
    %v2688 = vsel %vm576, %v2687, %v2686
    %v2689 = vpack.c.b16 %v2688, %v2688
    %v2691 = vsel %vm444, %v2689, 0
    %2693 = vmatprep.subr.bf16.mxu0 0
    %2694 = vmatpush1.bf16.msra.mxu0 %v678
    %2695 = vmatprep.subr.bf16.mxu0 0
    %2696 = vmatpush1.bf16.msra.mxu0 %v679
    %2697 = vmatprep.subr.bf16.mxu0 0
    %2698 = vmatpush1.bf16.msra.mxu0 0
    %2699 = vmatprep.subr.bf16.mxu0 0
    %2700 = vmatpush1.bf16.msra.mxu0 0
    %2701 = vmatprep.subr.bf16.mxu0 0
    %2702 = vmatpush1.bf16.msra.mxu0 0
    %2703 = vmatprep.subr.bf16.mxu0 0
    %2704 = vmatpush1.bf16.msra.mxu0 0
    %2705 = vmatprep.subr.bf16.mxu0 0
    %2706 = vmatpush1.bf16.msra.mxu0 0
    %2707 = vmatprep.subr.bf16.mxu0 0
    %2708 = vmatpush1.bf16.msra.mxu0 0
    %2709 = vmatprep.subr.bf16.mxu0 0
    %2710 = vmatpush1.bf16.msra.mxu0 0
    %2711 = vmatprep.subr.bf16.mxu0 0
    %2712 = vmatpush1.bf16.msra.mxu0 0
    %2713 = vmatprep.subr.bf16.mxu0 0
    %2714 = vmatpush1.bf16.msra.mxu0 0
    %2715 = vmatprep.subr.bf16.mxu0 0
    %2716 = vmatpush1.bf16.msra.mxu0 0
    %2717 = vmatprep.subr.bf16.mxu0 0
    %2718 = vmatpush1.bf16.msra.mxu0 0
    %2719 = vmatprep.subr.bf16.mxu0 0
    %2720 = vmatpush1.bf16.msra.mxu0 0
    %2721 = vmatprep.subr.bf16.mxu0 0
    %2722 = vmatpush1.bf16.msra.mxu0 0
    %2723 = vmatprep.subr.bf16.mxu0 0
    %2724 = vmatpush1.bf16.msra.mxu0 0
    %2725 = vmatprep.mubr.bf16.mxu0 0
    %2726 = vmatmul.mubr.bf16.gmra.mrb[0].mxu0 %v2691
    %v2727 = vpop.f32.mrb[0].mxu0
    %v2728 = vadd.f32 %v2683, %v2727
    %v2729 = vpop.f32.mrb[0].mxu0
    %v2730 = vpop.f32.mrb[0].mxu0
    %v2731 = vpop.f32.mrb[0].mxu0
    %2732 = vdwg.mxu0
    %2733 = vrot.lane.b32.xlu0 %v2529, 96
    %v2734 = vpop.permute.xlu0 %2733
    %v2736 = vadd.f32 %v2728, %v2734
    %v2737 = vxor.u32 %v2736, 2147483648
    %v2738 = vmul.f32 %v2737, 1.442695
    %v2739 = vpow.pop %v2738
    %v2740 = vadd.f32 %v2739, 1.0
    %v2741 = vrcp.pop %v2740
    %v2742 = vmul.f32 1.0, %v2741
    %v2743 = vadd.f32 %v2529, %v741
    %2745 = vrot.lane.b32.xlu0 %v2743, 32
    %v2746 = vpop.permute.xlu0 %2745
    %v2748 = vmul.f32 %v2742, %v2746
    %2750 = vrot.lane.b32.xlu0 %v2748, 64
    %v2751 = vpop.permute.xlu0 %2750
    %v2753 = vadd.f32 %v2728, %v2751
    %v2754 = vtanh.pop %v2753
    %v2755 = vsub.f32 1.0, %v2742
    %2757 = vrot.lane.b32.xlu0 %v2754, 96
    %v2758 = vpop.permute.xlu0 %2757
    %v2760 = vmul.f32 %v2755, %v2758
    %v2761 = vmul.f32 %v2742, %v2432
    %v2762 = vadd.f32 %v2760, %v2761
    %v2763 = vpack.c.bf16 %v2762, %v2762
    %2765 = vrot.lane.b32.xlu0 %v2763, 96
    %v2766 = vpop.permute.xlu0 %2765
    %v2768 = vsel %vm444, %v2766, 0
    %2770 = vmatprep.subr.bf16.mxu0 0
    %2771 = vmatpush1.bf16.msra.mxu0 %v785
    %2772 = vmatprep.subr.bf16.mxu0 0
    %2773 = vmatpush1.bf16.msra.mxu0 %v786
    %2774 = vmatprep.subr.bf16.mxu0 0
    %2775 = vmatpush1.bf16.msra.mxu0 0
    %2776 = vmatprep.subr.bf16.mxu0 0
    %2777 = vmatpush1.bf16.msra.mxu0 0
    %2778 = vmatprep.subr.bf16.mxu0 0
    %2779 = vmatpush1.bf16.msra.mxu0 0
    %2780 = vmatprep.subr.bf16.mxu0 0
    %2781 = vmatpush1.bf16.msra.mxu0 0
    %2782 = vmatprep.subr.bf16.mxu0 0
    %2783 = vmatpush1.bf16.msra.mxu0 0
    %2784 = vmatprep.subr.bf16.mxu0 0
    %2785 = vmatpush1.bf16.msra.mxu0 0
    %2786 = vmatprep.subr.bf16.mxu0 0
    %2787 = vmatpush1.bf16.msra.mxu0 0
    %2788 = vmatprep.subr.bf16.mxu0 0
    %2789 = vmatpush1.bf16.msra.mxu0 0
    %2790 = vmatprep.subr.bf16.mxu0 0
    %2791 = vmatpush1.bf16.msra.mxu0 0
    %2792 = vmatprep.subr.bf16.mxu0 0
    %2793 = vmatpush1.bf16.msra.mxu0 0
    %2794 = vmatprep.subr.bf16.mxu0 0
    %2795 = vmatpush1.bf16.msra.mxu0 0
    %2796 = vmatprep.subr.bf16.mxu0 0
    %2797 = vmatpush1.bf16.msra.mxu0 0
    %2798 = vmatprep.subr.bf16.mxu0 0
    %2799 = vmatpush1.bf16.msra.mxu0 0
    %2800 = vmatprep.subr.bf16.mxu0 0
    %2801 = vmatpush1.bf16.msra.mxu0 0
    %2802 = vmatprep.mubr.bf16.mxu0 0
    %2803 = vmatmul.mubr.bf16.gmra.mrb[0].mxu0 %v2768
    %v2804 = vpop.f32.mrb[0].mxu0
    %v2805 = vadd.f32 %v772, %v2804
    %v2806 = vpop.f32.mrb[0].mxu0
    %v2807 = vpop.f32.mrb[0].mxu0
    %v2808 = vpop.f32.mrb[0].mxu0
    %2809 = vdwg.mxu0
    %s2810 = scalar_lea.vmem [#allocation18], 12
    %2811 = vst [vmem:[%s2810] sm:$0x3] %v2805
    %v2812 = vlaneseq
    %v2813 = vshrl.u32 %v2812, 7
    %v2814 = vsub.s32 %v567, %v2813
    %v2815 = vrot.slane %v2657, %v2814
    %v2816 = vlaneseq
    %v2817 = vshrl.u32 %v2816, 7
    %v2818 = vsub.s32 %v567, %v2817
    %v2819 = vrot.slane %v2662, %v2818
    %v2820 = vsel %vm576, %v2819, %v2815
    %s2822 = scalar_lea.vmem [#allocation19], 12
    %2823 = vst.msk [vmem:[%s2822] sm:$0x3] %vm579, %v2820
    %2824 = vmatprep.subr.bf16.mxu0 0
    %2825 = vmatpush1.bf16.msra.mxu0 %v440
    %2826 = vmatprep.subr.bf16.mxu0 0
    %2827 = vmatpush1.bf16.msra.mxu0 %v441
    %2828 = vmatprep.subr.bf16.mxu0 0
    %2829 = vmatpush1.bf16.msra.mxu0 0
    %2830 = vmatprep.subr.bf16.mxu0 0
    %2831 = vmatpush1.bf16.msra.mxu0 0
    %2832 = vmatprep.subr.bf16.mxu0 0
    %2833 = vmatpush1.bf16.msra.mxu0 0
    %2834 = vmatprep.subr.bf16.mxu0 0
    %2835 = vmatpush1.bf16.msra.mxu0 0
    %2836 = vmatprep.subr.bf16.mxu0 0
    %2837 = vmatpush1.bf16.msra.mxu0 0
    %2838 = vmatprep.subr.bf16.mxu0 0
    %2839 = vmatpush1.bf16.msra.mxu0 0
    %2840 = vmatprep.subr.bf16.mxu0 0
    %2841 = vmatpush1.bf16.msra.mxu0 0
    %2842 = vmatprep.subr.bf16.mxu0 0
    %2843 = vmatpush1.bf16.msra.mxu0 0
    %2844 = vmatprep.subr.bf16.mxu0 0
    %2845 = vmatpush1.bf16.msra.mxu0 0
    %2846 = vmatprep.subr.bf16.mxu0 0
    %2847 = vmatpush1.bf16.msra.mxu0 0
    %2848 = vmatprep.subr.bf16.mxu0 0
    %2849 = vmatpush1.bf16.msra.mxu0 0
    %2850 = vmatprep.subr.bf16.mxu0 0
    %2851 = vmatpush1.bf16.msra.mxu0 0
    %2852 = vmatprep.subr.bf16.mxu0 0
    %2853 = vmatpush1.bf16.msra.mxu0 0
    %2854 = vmatprep.subr.bf16.mxu0 0
    %2855 = vmatpush1.bf16.msra.mxu0 0
    %2856 = vmatprep.mubr.bf16.mxu0 0
    %2857 = vmatmul.mubr.bf16.gmra.mrb[0].mxu0 %v2768
    %v2858 = vpop.f32.mrb[0].mxu0
    %v2859 = vadd.f32 0.0, %v2858
    %v2860 = vpop.f32.mrb[0].mxu0
    %v2861 = vpop.f32.mrb[0].mxu0
    %v2862 = vpop.f32.mrb[0].mxu0
    %2863 = vdwg.mxu0
    %v2866 = vunpack.c.l.s4 1966171168
    %v2867 = vunpack.c.0.s8 %v2866
    %v2868 = vlaneseq
    %v2869 = vshrl.u32 %v2868, 7
    %v2870 = vsub.s32 %v2867, %v2869
    %v2871 = vrot.slane %v2859, %v2870
    %v2872 = vcombine.high %v2871, %v2871
    %v2874 = vunpack.c.l.s4 1966171168
    %v2875 = vunpack.c.0.s8 %v2874
    %v2876 = vlaneseq
    %v2877 = vshrl.u32 %v2876, 7
    %v2878 = vsub.s32 %v2875, %v2877
    %v2879 = vrot.slane %v2871, %v2878
    %v2881 = vunpack.c.l.s4 1966171168
    %v2882 = vunpack.c.0.s8 %v2881
    %v2883 = vlaneseq
    %v2884 = vshrl.u32 %v2883, 7
    %v2885 = vsub.s32 %v2882, %v2884
    %v2886 = vrot.slane %v2872, %v2885
    %v2887 = vlaneseq
    %v2888 = vshrl.u32 %v2887, 7
    %v2889 = vsub.s32 0, %v2888
    %v2890 = vrot.slane %v2879, %v2889
    %v2891 = vlaneseq
    %v2892 = vshrl.u32 %v2891, 7
    %v2893 = vsub.s32 0, %v2892
    %v2894 = vrot.slane %v2886, %v2893
    %v2897 = vadd.f32 %v2890, %v412
    %v2898 = vadd.f32 %v2894, %v413
    %v2899 = vtanh.pop %v2897
    %v2900 = vtanh.pop %v2898
    %v2901 = vmul.f32 %v2899, %v529
    %v2902 = vmul.f32 %v2900, %v529
    %v2903 = vsel %vm444, %v2901, 0.0
    %2904 = vadd.xlane.f32.xlu0 %v2903
    %v2905 = vpop.xlane.xlu0 %2904
    %v2906 = vsel %vm444, %v2902, 0.0
    %2907 = vadd.xlane.f32.xlu0 %v2906
    %v2908 = vpop.xlane.xlu0 %2907
    %v2909 = vadd.f32 %v2905, %v546
    %v2910 = vadd.f32 %v2908, %v553
    %2913 = vset.pattern.permute.xlu0 0
    %2914 = vperm.xlu0 %2913, %v2909
    %v2915 = vpop.permute.xlu0 %2914
    %2916 = vset.pattern.permute.xlu0 0
    %2917 = vperm.xlu0 %2916, %v2910
    %v2918 = vpop.permute.xlu0 %2917
    %v2919 = vlaneseq
    %v2920 = vshrl.u32 %v2919, 7
    %v2921 = vsub.s32 %v567, %v2920
    %v2922 = vrot.slane %v2915, %v2921
    %v2923 = vlaneseq
    %v2924 = vshrl.u32 %v2923, 7
    %v2925 = vsub.s32 %v567, %v2924
    %v2926 = vrot.slane %v2918, %v2925
    %v2927 = vsel %vm576, %v2926, %v2922
    %v2929 = vsel %vm579, %v2927, -inf
    %2930 = vmax.xlane.f32.xlu0 %v2929
    %v2931 = vpop.xlane.xlu0 %2930
    %v2933 = vlaneseq
    %v2934 = vshrl.u32 %v2933, 7
    %v2935 = vsub.s32 0, %v2934
    %v2936 = vrot.slane %v2931, %v2935
    %v2937 = vlaneseq
    %v2938 = vshrl.u32 %v2937, 7
    %v2939 = vsub.s32 1, %v2938
    %v2940 = vrot.slane %v2931, %v2939
    %v2943 = vsub.f32 %v2909, %v2936
    %v2944 = vsub.f32 %v2910, %v2940
    %v2945 = vmul.f32 %v2943, 1.442695
    %v2946 = vpow.pop %v2945
    %v2947 = vmul.f32 %v2944, 1.442695
    %v2948 = vpow.pop %v2947
    %2951 = vset.pattern.permute.xlu0 0
    %2952 = vperm.xlu0 %2951, %v2946
    %v2953 = vpop.permute.xlu0 %2952
    %2954 = vset.pattern.permute.xlu0 0
    %2955 = vperm.xlu0 %2954, %v2948
    %v2956 = vpop.permute.xlu0 %2955
    %v2957 = vlaneseq
    %v2958 = vshrl.u32 %v2957, 7
    %v2959 = vsub.s32 %v567, %v2958
    %v2960 = vrot.slane %v2953, %v2959
    %v2961 = vlaneseq
    %v2962 = vshrl.u32 %v2961, 7
    %v2963 = vsub.s32 %v567, %v2962
    %v2964 = vrot.slane %v2956, %v2963
    %v2965 = vsel %vm576, %v2964, %v2960
    %v2967 = vsel %vm579, %v2965, 0.0
    %2968 = vadd.xlane.f32.xlu0 %v2967
    %v2969 = vpop.xlane.xlu0 %2968
    %v2970 = vrcp.pop %v2969
    %v2972 = vlaneseq
    %v2973 = vshrl.u32 %v2972, 7
    %v2974 = vsub.s32 0, %v2973
    %v2975 = vrot.slane %v2970, %v2974
    %v2976 = vlaneseq
    %v2977 = vshrl.u32 %v2976, 7
    %v2978 = vsub.s32 1, %v2977
    %v2979 = vrot.slane %v2970, %v2978
    %v2982 = vmul.f32 %v2946, %v2975
    %v2983 = vmul.f32 %v2948, %v2979
    %2985 = vset.pattern.permute.xlu0 0
    %2986 = vperm.xlu0 %2985, %v2982
    %v2987 = vpop.permute.xlu0 %2986
    %2990 = vset.pattern.permute.xlu0 0
    %2991 = vperm.xlu0 %2990, %v2983
    %v2992 = vpop.permute.xlu0 %2991
    %v2994 = vmul.f32 %v2987, %v410
    %v2995 = vmul.f32 %v2992, %v411
    %v2996 = vsel %vm444, %v2994, 0.0
    %v2997 = vrot.slane %v2996, 4
    %v2998 = vadd.f32 %v2996, %v2997
    %v2999 = vrot.slane %v2998, 2
    %v3000 = vadd.f32 %v2998, %v2999
    %v3001 = vrot.slane %v3000, 1
    %v3002 = vadd.f32 %v3000, %v3001
    %v3003 = vsel %vm444, %v2995, 0.0
    %v3004 = vrot.slane %v3003, 4
    %v3005 = vadd.f32 %v3003, %v3004
    %v3006 = vrot.slane %v3005, 2
    %v3007 = vadd.f32 %v3005, %v3006
    %v3008 = vrot.slane %v3007, 1
    %v3009 = vadd.f32 %v3007, %v3008
    %v3010 = vpack.c.bf16 %v3002, %v3002
    %v3011 = vpack.c.bf16 %v3009, %v3009
    %s3012 = scalar_lea.vmem [#allocation3], 14
    %v3013 = vld [vmem:[%s3012] sm:$0x3]
    %v3016 = vunpack.c.l.b16 %v3010
    %v3017 = vunpack.c.l.b16 %v3011
    %v3018 = vsel %vm576, %v3017, %v3016
    %v3019 = vpack.c.b16 %v3018, %v3018
    %v3021 = vsel %vm444, %v3019, 0
    %3023 = vmatprep.subr.bf16.mxu0 0
    %3024 = vmatpush1.bf16.msra.mxu0 %v678
    %3025 = vmatprep.subr.bf16.mxu0 0
    %3026 = vmatpush1.bf16.msra.mxu0 %v679
    %3027 = vmatprep.subr.bf16.mxu0 0
    %3028 = vmatpush1.bf16.msra.mxu0 0
    %3029 = vmatprep.subr.bf16.mxu0 0
    %3030 = vmatpush1.bf16.msra.mxu0 0
    %3031 = vmatprep.subr.bf16.mxu0 0
    %3032 = vmatpush1.bf16.msra.mxu0 0
    %3033 = vmatprep.subr.bf16.mxu0 0
    %3034 = vmatpush1.bf16.msra.mxu0 0
    %3035 = vmatprep.subr.bf16.mxu0 0
    %3036 = vmatpush1.bf16.msra.mxu0 0
    %3037 = vmatprep.subr.bf16.mxu0 0
    %3038 = vmatpush1.bf16.msra.mxu0 0
    %3039 = vmatprep.subr.bf16.mxu0 0
    %3040 = vmatpush1.bf16.msra.mxu0 0
    %3041 = vmatprep.subr.bf16.mxu0 0
    %3042 = vmatpush1.bf16.msra.mxu0 0
    %3043 = vmatprep.subr.bf16.mxu0 0
    %3044 = vmatpush1.bf16.msra.mxu0 0
    %3045 = vmatprep.subr.bf16.mxu0 0
    %3046 = vmatpush1.bf16.msra.mxu0 0
    %3047 = vmatprep.subr.bf16.mxu0 0
    %3048 = vmatpush1.bf16.msra.mxu0 0
    %3049 = vmatprep.subr.bf16.mxu0 0
    %3050 = vmatpush1.bf16.msra.mxu0 0
    %3051 = vmatprep.subr.bf16.mxu0 0
    %3052 = vmatpush1.bf16.msra.mxu0 0
    %3053 = vmatprep.subr.bf16.mxu0 0
    %3054 = vmatpush1.bf16.msra.mxu0 0
    %3055 = vmatprep.mubr.bf16.mxu0 0
    %3056 = vmatmul.mubr.bf16.gmra.mrb[0].mxu0 %v3021
    %v3057 = vpop.f32.mrb[0].mxu0
    %v3058 = vadd.f32 %v3013, %v3057
    %v3059 = vpop.f32.mrb[0].mxu0
    %v3060 = vpop.f32.mrb[0].mxu0
    %v3061 = vpop.f32.mrb[0].mxu0
    %3062 = vdwg.mxu0
    %3063 = vrot.lane.b32.xlu0 %v2859, 96
    %v3064 = vpop.permute.xlu0 %3063
    %v3066 = vadd.f32 %v3058, %v3064
    %v3067 = vxor.u32 %v3066, 2147483648
    %v3068 = vmul.f32 %v3067, 1.442695
    %v3069 = vpow.pop %v3068
    %v3070 = vadd.f32 %v3069, 1.0
    %v3071 = vrcp.pop %v3070
    %v3072 = vmul.f32 1.0, %v3071
    %v3073 = vadd.f32 %v2859, %v741
    %3075 = vrot.lane.b32.xlu0 %v3073, 32
    %v3076 = vpop.permute.xlu0 %3075
    %v3078 = vmul.f32 %v3072, %v3076
    %3080 = vrot.lane.b32.xlu0 %v3078, 64
    %v3081 = vpop.permute.xlu0 %3080
    %v3083 = vadd.f32 %v3058, %v3081
    %v3084 = vtanh.pop %v3083
    %v3085 = vsub.f32 1.0, %v3072
    %3087 = vrot.lane.b32.xlu0 %v3084, 96
    %v3088 = vpop.permute.xlu0 %3087
    %v3090 = vmul.f32 %v3085, %v3088
    %v3091 = vmul.f32 %v3072, %v2762
    %v3092 = vadd.f32 %v3090, %v3091
    %v3093 = vpack.c.bf16 %v3092, %v3092
    %3095 = vrot.lane.b32.xlu0 %v3093, 96
    %v3096 = vpop.permute.xlu0 %3095
    %v3098 = vsel %vm444, %v3096, 0
    %3100 = vmatprep.subr.bf16.mxu0 0
    %3101 = vmatpush1.bf16.msra.mxu0 %v785
    %3102 = vmatprep.subr.bf16.mxu0 0
    %3103 = vmatpush1.bf16.msra.mxu0 %v786
    %3104 = vmatprep.subr.bf16.mxu0 0
    %3105 = vmatpush1.bf16.msra.mxu0 0
    %3106 = vmatprep.subr.bf16.mxu0 0
    %3107 = vmatpush1.bf16.msra.mxu0 0
    %3108 = vmatprep.subr.bf16.mxu0 0
    %3109 = vmatpush1.bf16.msra.mxu0 0
    %3110 = vmatprep.subr.bf16.mxu0 0
    %3111 = vmatpush1.bf16.msra.mxu0 0
    %3112 = vmatprep.subr.bf16.mxu0 0
    %3113 = vmatpush1.bf16.msra.mxu0 0
    %3114 = vmatprep.subr.bf16.mxu0 0
    %3115 = vmatpush1.bf16.msra.mxu0 0
    %3116 = vmatprep.subr.bf16.mxu0 0
    %3117 = vmatpush1.bf16.msra.mxu0 0
    %3118 = vmatprep.subr.bf16.mxu0 0
    %3119 = vmatpush1.bf16.msra.mxu0 0
    %3120 = vmatprep.subr.bf16.mxu0 0
    %3121 = vmatpush1.bf16.msra.mxu0 0
    %3122 = vmatprep.subr.bf16.mxu0 0
    %3123 = vmatpush1.bf16.msra.mxu0 0
    %3124 = vmatprep.subr.bf16.mxu0 0
    %3125 = vmatpush1.bf16.msra.mxu0 0
    %3126 = vmatprep.subr.bf16.mxu0 0
    %3127 = vmatpush1.bf16.msra.mxu0 0
    %3128 = vmatprep.subr.bf16.mxu0 0
    %3129 = vmatpush1.bf16.msra.mxu0 0
    %3130 = vmatprep.subr.bf16.mxu0 0
    %3131 = vmatpush1.bf16.msra.mxu0 0
    %3132 = vmatprep.mubr.bf16.mxu0 0
    %3133 = vmatmul.mubr.bf16.gmra.mrb[0].mxu0 %v3098
    %v3134 = vpop.f32.mrb[0].mxu0
    %v3135 = vadd.f32 %v772, %v3134
    %v3136 = vpop.f32.mrb[0].mxu0
    %v3137 = vpop.f32.mrb[0].mxu0
    %v3138 = vpop.f32.mrb[0].mxu0
    %3139 = vdwg.mxu0
    %s3140 = scalar_lea.vmem [#allocation18], 14
    %3141 = vst [vmem:[%s3140] sm:$0x3] %v3135
    %v3142 = vlaneseq
    %v3143 = vshrl.u32 %v3142, 7
    %v3144 = vsub.s32 %v567, %v3143
    %v3145 = vrot.slane %v2987, %v3144
    %v3146 = vlaneseq
    %v3147 = vshrl.u32 %v3146, 7
    %v3148 = vsub.s32 %v567, %v3147
    %v3149 = vrot.slane %v2992, %v3148
    %v3150 = vsel %vm576, %v3149, %v3145
    %s3152 = scalar_lea.vmem [#allocation19], 14
    %3153 = vst.msk [vmem:[%s3152] sm:$0x3] %vm579, %v3150
    %3155 = vrot.lane.b32.xlu0 %v3092, 96
    %v3156 = vpop.permute.xlu0 %3155
    %vm3158 = vcmask 254976
    %3159 = vst.msk [vmem:[#allocation21] sm:$0x3] %vm3158, %v3156
    // Predicated region
    $region90: #{tpu_custom_call.1} parent=1 // pred_check
      _
    $region91: #{tpu_custom_call.1} parent=1 // pred_check_branch
      %3161 = sbr.rel (0) target = $region93
    $region92: #{tpu_custom_call.1} parent=1 // pred_region
      %s3163 = ssub.s32 256, 256
      %3164 = vsyncadd [#allocation6], %s3163
      %s3165 = sshll.u32 [#allocation18], 4
      %s3166 = int_to_ptr.vmem [resolvable:$true] %s3165
      %3171 = dma.vmem_to_hbm [thread:$0]  %s3166, 256, %s13, [#allocation6], 32, 32, 2
    $region93: #{tpu_custom_call.1} parent=1 // pred_fallthru
      _
    // Predicated region
    $region94: #{tpu_custom_call.1} parent=1 // pred_check
      _
    $region95: #{tpu_custom_call.1} parent=1 // pred_check_branch
      %3173 = sbr.rel (0) target = $region97
    $region96: #{tpu_custom_call.1} parent=1 // pred_region
      %s3175 = ssub.s32 256, 256
      %3176 = vsyncadd [#allocation20], %s3175
      %s3177 = sshll.u32 [#allocation19], 4
      %s3178 = int_to_ptr.vmem [resolvable:$true] %s3177
      %3183 = dma.vmem_to_hbm [thread:$0]  %s3178, 256, %s14, [#allocation20], 32, 32, 2
    $region97: #{tpu_custom_call.1} parent=1 // pred_fallthru
      _
    // Predicated region
    $region98: #{tpu_custom_call.1} parent=1 // pred_check
      _
    $region99: #{tpu_custom_call.1} parent=1 // pred_check_branch
      %3185 = sbr.rel (0) target = $region101
    $region100: #{tpu_custom_call.1} parent=1 // pred_region
      %s3187 = ssub.s32 32, 32
      %3188 = vsyncadd [#allocation20], %s3187
      %s3190 = sshll.u32 [#allocation21], 4
      %s3191 = int_to_ptr.vmem [resolvable:$true] %s3190
      %3193 = dma.vmem_to_hbm [thread:$0]  %s3191, 32, %s15, [#allocation20]
    $region101: #{tpu_custom_call.1} parent=1 // pred_fallthru
      _
    // Predicated region
    $region102: #{tpu_custom_call.1} parent=1 // pred_check
      _
    $region103: #{tpu_custom_call.1} parent=1 // pred_check_branch
      %3195 = sbr.rel (0) target = $region105
    $region104: #{tpu_custom_call.1} parent=1 // pred_region
      %3196 = dma.done [#allocation6], 256
    $region105: #{tpu_custom_call.1} parent=1 // pred_fallthru
      _
    // Predicated region
    $region106: #{tpu_custom_call.1} parent=1 // pred_check
      _
    $region107: #{tpu_custom_call.1} parent=1 // pred_check_branch
      %3198 = sbr.rel (0) target = $region109
    $region108: #{tpu_custom_call.1} parent=1 // pred_region
      %3199 = dma.done [#allocation20], 256
    $region109: #{tpu_custom_call.1} parent=1 // pred_fallthru
      _
    // Predicated region
    $region110: #{tpu_custom_call.1} parent=1 // pred_check
      _
    $region111: #{tpu_custom_call.1} parent=1 // pred_check_branch
      %3201 = sbr.rel (0) target = $region113
    $region112: #{tpu_custom_call.1} parent=1 // pred_region
      %3202 = dma.done [#allocation20], 32
    $region113: #{tpu_custom_call.1} parent=1 // pred_fallthru
      _
    %3203 = vsyncpa [#allocation5], 1
    %3204 = vsyncpa [#allocation8], 1
    %3205 = vsyncpa [#allocation11], 1
    %3206 = vsyncpa [#allocation14], 1
    %3207 = vsyncpa [#allocation17], 1
    %3208 = vsyncpa [#allocation6], 1
    %3209 = vsyncpa [#allocation20], 1

</llo_original>
